<compile_context>
chip_gen: v5e
topology: v5e:2x2
jax: 0.10.0
libtpu: 0.0.40
codegen_flags: <defaults>
</compile_context>

<pallas_src>
import functools
import math

import jax
import jax.numpy as jnp
from jax.experimental import pallas as pl
from jax.experimental.pallas import tpu as pltpu


# ----------------------------- small helpers --------------------------------

def _round_up(n, m):
    return ((n + m - 1) // m) * m


def _pick_row_tile(rows, max_tile=256):
    if rows <= max_tile:
        return rows
    t = max_tile - (max_tile % 8)
    while t >= 8 and rows % t != 0:
        t -= 8
    return t if (t >= 8 and rows % t == 0) else rows


def _layer_norm(x, g, b, eps=1e-5):
    mu = jnp.mean(x, axis=-1, keepdims=True)
    xc = x - mu
    var = jnp.mean(xc * xc, axis=-1, keepdims=True)
    return xc * jax.lax.rsqrt(var + eps) * g + b


def _gelu_exact(x):
    # matches torch's activation='gelu' (exact erf form)
    return 0.5 * x * (1.0 + jax.lax.erf(x * (1.0 / math.sqrt(2.0))))


# ------------------------------- kernels ------------------------------------

def _patch_embed_kernel(p_ref, w_ref, b_ref, o_ref):
    # (rows_tile, C*p*p) @ (C*p*p, D) + (1, D)  — bf16 operands, f32 accumulate
    o_ref[...] = (
        jnp.dot(p_ref[...].astype(jnp.bfloat16), w_ref[...],
                preferred_element_type=jnp.float32)
        + b_ref[...]
    )


def _encoder_stack_kernel(
    x_ref, wqkv_ref, bqkv_ref, wo_ref, bo_ref,
    w1_ref, b1_ref, w2_ref, b2_ref,
    g1_ref, be1_ref, g2_ref, be2_ref,
    lng_ref, lnb_ref, o_ref,
    *, tt, seq, num_heads, head_dim,
):
    # Grid = (token_tiles, depth). Block rows = tt * seq, row = t_local*seq + s.
    # Output block index is constant along depth -> resident accumulator.
    l = pl.program_id(1)
    last = pl.num_programs(1) - 1
    d = num_heads * head_dim
    rows = tt * seq

    @pl.when(l == 0)
    def _():
        # seed the resident activation with the kernel input (layer 0 input)
        o_ref[...] = x_ref[...]

    x = o_ref[...]                                     # (rows, d) f32
    xb = x.astype(jnp.bfloat16)

    # fused QKV projection: one wide MXU pass, f32 accumulation
    qkv = (jnp.dot(xb, wqkv_ref[0], preferred_element_type=jnp.float32)
           + bqkv_ref[0])                              # (rows, 3d)

    scale = 1.0 / math.sqrt(head_dim)
    ctx_heads = []
    for h in range(num_heads):
        qs = slice(0 * d + h * head_dim, 0 * d + (h + 1) * head_dim)
        ks = slice(1 * d + h * head_dim, 1 * d + (h + 1) * head_dim)
        vs = slice(2 * d + h * head_dim, 2 * d + (h + 1) * head_dim)
        qh = (qkv[:, qs] * scale).astype(jnp.bfloat16).reshape(tt, seq, head_dim)
        kh = qkv[:, ks].astype(jnp.bfloat16).reshape(tt, seq, head_dim)
        vh = qkv[:, vs].astype(jnp.bfloat16).reshape(tt, seq, head_dim)

        # scores over the attended ("sequence" = batch) axis, batched over
        # tokens — runs on the MXU
        s = jnp.einsum('tqd,tkd->tqk', qh, kh,
                       preferred_element_type=jnp.float32)       # (tt, seq, seq)
        m = jnp.max(s, axis=-1, keepdims=True)
        p = jnp.exp(s - m)
        p = p * pl.reciprocal(jnp.sum(p, axis=-1, keepdims=True), approx=True)
        c = jnp.einsum('tqk,tkd->tqd', p.astype(jnp.bfloat16), vh,
                       preferred_element_type=jnp.float32)       # (tt, seq, hd)
        ctx_heads.append(c.reshape(rows, head_dim))
    ctx = jnp.concatenate(ctx_heads, axis=1)           # (rows, d)

    attn = (jnp.dot(ctx.astype(jnp.bfloat16), wo_ref[0],
                    preferred_element_type=jnp.float32)
            + bo_ref[0])

    # post-norm layer (norm_first=False): x = LN1(x + SA(x)); x = LN2(x + FF(x))
    x1 = _layer_norm(x + attn, g1_ref[0], be1_ref[0])
    hmid = _gelu_exact(
        jnp.dot(x1.astype(jnp.bfloat16), w1_ref[0],
                preferred_element_type=jnp.float32) + b1_ref[0])
    ffo = (jnp.dot(hmid.astype(jnp.bfloat16), w2_ref[0],
                   preferred_element_type=jnp.float32)
           + b2_ref[0])
    x2 = _layer_norm(x1 + ffo, g2_ref[0], be2_ref[0])

    @pl.when(l < last)
    def _():
        o_ref[...] = x2

    @pl.when(l == last)
    def _():
        # fuse the model's final LayerNorm into the last depth step
        o_ref[...] = _layer_norm(x2, lng_ref[...], lnb_ref[...])


# ------------------------------- wrappers ------------------------------------

def patch_embed(patches2d, w_t, b_row):
    rows, k = patches2d.shape
    d = w_t.shape[1]
    row_tile = _pick_row_tile(rows)
    return pl.pallas_call(
        _patch_embed_kernel,
        out_shape=jax.ShapeDtypeStruct((rows, d), jnp.float32),
        grid=(rows // row_tile,),
        in_specs=[
            pl.BlockSpec((row_tile, k), lambda i: (i, 0)),
            pl.BlockSpec((k, d), lambda i: (0, 0)),
            pl.BlockSpec((1, d), lambda i: (0, 0)),
        ],
        out_specs=pl.BlockSpec((row_tile, d), lambda i: (i, 0)),
        compiler_params=pltpu.CompilerParams(
            dimension_semantics=("parallel",),
            vmem_limit_bytes=32 * 1024 * 1024),
    )(patches2d, w_t, b_row)


def encoder_stack(slab, params, *, t_pad, seq, num_heads, head_dim, token_tile):
    d = num_heads * head_dim
    depth = params["wqkv"].shape[0]
    rows_blk = token_tile * seq
    grid = (t_pad // token_tile, depth)

    def per_layer_spec(a):   # stacked (depth, r, c) tensors, select layer l
        return pl.BlockSpec((1, a.shape[1], a.shape[2]), lambda t, l: (l, 0, 0))

    def full_spec(a):        # shared small 2D tensors
        return pl.BlockSpec(a.shape, lambda t, l: (0, 0))

    kern = functools.partial(
        _encoder_stack_kernel, tt=token_tile, seq=seq,
        num_heads=num_heads, head_dim=head_dim)

    stacked = ["wqkv", "bqkv", "wo", "bo", "w1", "b1", "w2", "b2",
               "g1", "be1", "g2", "be2"]
    args = [slab] + [params[n] for n in stacked] + [params["ln_g"], params["ln_b"]]
    in_specs = ([pl.BlockSpec((rows_blk, d), lambda t, l: (t, 0))]
                + [per_layer_spec(params[n]) for n in stacked]
                + [full_spec(params["ln_g"]), full_spec(params["ln_b"])])

    return pl.pallas_call(
        kern,
        out_shape=jax.ShapeDtypeStruct(slab.shape, jnp.float32),
        grid=grid,
        in_specs=in_specs,
        out_specs=pl.BlockSpec((rows_blk, d), lambda t, l: (t, 0)),
        compiler_params=pltpu.CompilerParams(
            dimension_semantics=("parallel", "arbitrary"),
            vmem_limit_bytes=32 * 1024 * 1024),
    )(*args)


def vit_forward(x, params, *, patch_size, embed_dim, num_heads, token_tile=8):
    B, C, H, W = x.shape
    hp, wp = H // patch_size, W // patch_size
    n_patches = hp * wp
    n_tokens = n_patches + 1
    head_dim = embed_dim // num_heads

    # --- patch extraction (== Conv2d stride=kernel=patch_size), XLA glue ---
    patches = x.reshape(B, C, hp, patch_size, wp, patch_size)
    patches = patches.transpose(0, 2, 4, 1, 3, 5)            # (B, hp, wp, C, p, p)
    patches2d = patches.reshape(B * n_patches, C * patch_size * patch_size)

    emb = patch_embed(patches2d, params["conv_w_t"], params["conv_b"])
    emb = emb.reshape(B, n_patches, embed_dim)

    # --- cls token + positional embedding (glue); dropout = identity (eval) ---
    cls = jnp.broadcast_to(params["cls_token"], (B, 1, embed_dim))
    tok = jnp.concatenate([cls, emb], axis=1) + params["pos_embed"]   # (B, N1, D)

    # --- token-major slab (attention runs over the B axis, batched per token),
    #     token count padded up to a multiple of the token tile ---
    xs = tok.transpose(1, 0, 2)                               # (n_tokens, B, D)
    t_pad = _round_up(n_tokens, token_tile)
    xs = jnp.pad(xs, ((0, t_pad - n_tokens), (0, 0), (0, 0)))
    slab = xs.reshape(t_pad * B, embed_dim)

    # --- full transformer stack + final LayerNorm in one Pallas call ---
    out = encoder_stack(slab, params, t_pad=t_pad, seq=B,
                        num_heads=num_heads, head_dim=head_dim,
                        token_tile=token_tile)

    # --- drop cls token + padding, back to (B, n_patches, D) ---
    out = out.reshape(t_pad, B, embed_dim)[1:n_tokens]
    return out.transpose(1, 0, 2)


# ------------------------------ parameter init --------------------------------

def init_params(key, *, img_size, patch_size, in_channels, embed_dim, depth,
                num_heads, mlp_ratio=4.0):
    n_patches = (img_size // patch_size) ** 2
    ff = int(embed_dim * mlp_ratio)
    d = embed_dim
    keys = iter(jax.random.split(key, 4 + depth * 8))

    def nrm(shape, std=0.02):
        return (std * jax.random.normal(next(keys), shape)).astype(jnp.float32)

    conv_w = nrm((d, in_channels, patch_size, patch_size))
    conv_b = nrm((d,))
    cls_token = nrm((1, 1, d))
    pos_embed = nrm((1, n_patches + 1, d))

    wqkv, bqkv, wo, bo = [], [], [], []
    w1, b1, w2, b2 = [], [], [], []
    g1, be1, g2, be2 = [], [], [], []
    for _ in range(depth):
        in_proj_w = nrm((3 * d, d))     # rows: [q; k; v]
        in_proj_b = nrm((3 * d,))
        out_proj_w = nrm((d, d))
        out_proj_b = nrm((d,))
        lin1_w = nrm((ff, d))
        lin1_b = nrm((ff,))
        lin2_w = nrm((d, ff))
        lin2_b = nrm((d,))
        wqkv.append(in_proj_w.T)                    # (D, 3D) fused q|k|v
        bqkv.append(in_proj_b.reshape(1, 3 * d))
        wo.append(out_proj_w.T)
        bo.append(out_proj_b.reshape(1, d))
        w1.append(lin1_w.T)
        b1.append(lin1_b.reshape(1, ff))
        w2.append(lin2_w.T)
        b2.append(lin2_b.reshape(1, d))
        g1.append(jnp.ones((1, d), jnp.float32))
        be1.append(jnp.zeros((1, d), jnp.float32))
        g2.append(jnp.ones((1, d), jnp.float32))
        be2.append(jnp.zeros((1, d), jnp.float32))

    stack = lambda xs, dt: jnp.stack(xs).astype(dt)
    return {
        "conv_w_t": conv_w.reshape(d, -1).T.astype(jnp.bfloat16),  # (C*p*p, D)
        "conv_b": conv_b.reshape(1, d),
        "cls_token": cls_token,
        "pos_embed": pos_embed,
        # stacked per-layer tensors; MXU weights stored bf16, bias/LN in f32
        "wqkv": stack(wqkv, jnp.bfloat16), "bqkv": stack(bqkv, jnp.float32),
        "wo": stack(wo, jnp.bfloat16),     "bo": stack(bo, jnp.float32),
        "w1": stack(w1, jnp.bfloat16),     "b1": stack(b1, jnp.float32),
        "w2": stack(w2, jnp.bfloat16),     "b2": stack(b2, jnp.float32),
        "g1": stack(g1, jnp.float32),      "be1": stack(be1, jnp.float32),
        "g2": stack(g2, jnp.float32),      "be2": stack(be2, jnp.float32),
        "ln_g": jnp.ones((1, d), jnp.float32),
        "ln_b": jnp.zeros((1, d), jnp.float32),
    }


# ---------------------------------- main --------------------------------------

if __name__ == "__main__":
    # small-shape config consistent with the module
    B = 2
    img_size, patch_size, in_channels = 16, 4, 3
    embed_dim, depth, num_heads = 32, 2, 4

    key = jax.random.PRNGKey(0)
    k_x, k_p = jax.random.split(key)

    x = jax.random.normal(k_x, (B, in_channels, img_size, img_size), jnp.float32)
    params = init_params(
        k_p, img_size=img_size, patch_size=patch_size, in_channels=in_channels,
        embed_dim=embed_dim, depth=depth, num_heads=num_heads,
    )

    fwd = jax.jit(functools.partial(
        vit_forward, patch_size=patch_size, embed_dim=embed_dim,
        num_heads=num_heads))
    out = jax.block_until_ready(fwd(x, params))

    n_patches = (img_size // patch_size) ** 2
    assert out.shape == (B, n_patches, embed_dim), out.shape
    assert bool(jnp.all(jnp.isfinite(out)))
    print("KERNEL_OK")
</pallas_src>

<mosaic_0001>
module attributes {stable_mosaic.version = 11 : i64} {
  func.func @_patch_embed_kernel(%arg0: i32, %arg1: memref<32x48xf32, #tpu.memory_space<vmem>>, %arg2: memref<48x32xbf16, #tpu.memory_space<vmem>>, %arg3: memref<1x32xf32, #tpu.memory_space<vmem>>, %arg4: memref<32x32xf32, #tpu.memory_space<vmem>>) attributes {dimension_semantics = [#tpu.dimension_semantics<parallel>], iteration_bounds = array<i64: 1>, scalar_prefetch = 0 : i64, scratch_operands = 0 : i64, tpu.core_type = #tpu.core_type<tc>, window_params = [{transform_indices = @transform_0, window_bounds = array<i64: 32, 48>}, {pipeline_mode = #tpu.pipeline_mode<synchronous>, transform_indices = @transform_1, window_bounds = array<i64: 48, 32>}, {pipeline_mode = #tpu.pipeline_mode<synchronous>, transform_indices = @transform_2, window_bounds = array<i64: 1, 32>}, {transform_indices = @transform_3, window_bounds = array<i64: 32, 32>}]} {
    %c0 = arith.constant 0 : index
    %c0_0 = arith.constant 0 : index
    %0 = vector.load %arg1[%c0, %c0_0] : memref<32x48xf32, #tpu.memory_space<vmem>>, vector<32x48xf32>
    %1 = arith.truncf %0 : vector<32x48xf32> to vector<32x48xbf16>
    %c0_1 = arith.constant 0 : index
    %c0_2 = arith.constant 0 : index
    %2 = vector.load %arg2[%c0_1, %c0_2] : memref<48x32xbf16, #tpu.memory_space<vmem>>, vector<48x32xbf16>
    %cst = arith.constant dense<0.000000e+00> : vector<32x32xf32>
    %3 = tpu.matmul %1, %2, %cst {dimension_numbers = #tpu.dot_dimension_numbers<[1], [0], [0], [1], [0, 0, 1, 1], [], []>} : vector<32x48xbf16>, vector<48x32xbf16>, vector<32x32xf32> -> vector<32x32xf32>
    %c0_3 = arith.constant 0 : index
    %c0_4 = arith.constant 0 : index
    %4 = vector.load %arg3[%c0_3, %c0_4] : memref<1x32xf32, #tpu.memory_space<vmem>>, vector<1x32xf32>
    %5 = vector.broadcast %4 : vector<1x32xf32> to vector<32x32xf32>
    %6 = arith.addf %3, %5 : vector<32x32xf32>
    %c0_5 = arith.constant 0 : index
    %c0_6 = arith.constant 0 : index
    %7 = vector.load %arg4[%c0_5, %c0_6] : memref<32x32xf32, #tpu.memory_space<vmem>>, vector<32x32xf32>
    tpu.vector_store %arg4[%c0_5, %c0_6], %6 {strides = array<i32>} : memref<32x32xf32, #tpu.memory_space<vmem>>, vector<32x32xf32>,
    return
  }
  func.func @transform_0(%arg0: i32) -> (i32, i32) {
    %c0_i32 = arith.constant 0 : i32
    %c0_i32_0 = arith.constant 0 : i32
    return %arg0, %c0_i32 : i32, i32
  }
  func.func @transform_1(%arg0: i32) -> (i32, i32) {
    %c0_i32 = arith.constant 0 : i32
    %c0_i32_0 = arith.constant 0 : i32
    %c0_i32_1 = arith.constant 0 : i32
    return %c0_i32, %c0_i32_0 : i32, i32
  }
  func.func @transform_2(%arg0: i32) -> (i32, i32) {
    %c0_i32 = arith.constant 0 : i32
    %c0_i32_0 = arith.constant 0 : i32
    %c0_i32_1 = arith.constant 0 : i32
    return %c0_i32, %c0_i32_0 : i32, i32
  }
  func.func @transform_3(%arg0: i32) -> (i32, i32) {
    %c0_i32 = arith.constant 0 : i32
    %c0_i32_0 = arith.constant 0 : i32
    return %arg0, %c0_i32 : i32, i32
  }
}

module attributes {stable_mosaic.version = 11 : i64} {
  func.func @_encoder_stack_kernel(%arg0: i32, %arg1: i32, %arg2: memref<16x32xf32, #tpu.memory_space<vmem>>, %arg3: memref<1x32x96xbf16, #tpu.memory_space<vmem>>, %arg4: memref<1x1x96xf32, #tpu.memory_space<vmem>>, %arg5: memref<1x32x32xbf16, #tpu.memory_space<vmem>>, %arg6: memref<1x1x32xf32, #tpu.memory_space<vmem>>, %arg7: memref<1x32x128xbf16, #tpu.memory_space<vmem>>, %arg8: memref<1x1x128xf32, #tpu.memory_space<vmem>>, %arg9: memref<1x128x32xbf16, #tpu.memory_space<vmem>>, %arg10: memref<1x1x32xf32, #tpu.memory_space<vmem>>, %arg11: memref<1x1x32xf32, #tpu.memory_space<vmem>>, %arg12: memref<1x1x32xf32, #tpu.memory_space<vmem>>, %arg13: memref<1x1x32xf32, #tpu.memory_space<vmem>>, %arg14: memref<1x1x32xf32, #tpu.memory_space<vmem>>, %arg15: memref<1x32xf32, #tpu.memory_space<vmem>>, %arg16: memref<1x32xf32, #tpu.memory_space<vmem>>, %arg17: memref<16x32xf32, #tpu.memory_space<vmem>>) attributes {dimension_semantics = [#tpu.dimension_semantics<parallel>, #tpu.dimension_semantics<arbitrary>], iteration_bounds = array<i64: 3, 2>, scalar_prefetch = 0 : i64, scratch_operands = 0 : i64, tpu.core_type = #tpu.core_type<tc>, window_params = [{transform_indices = @transform_0, window_bounds = array<i64: 16, 32>}, {transform_indices = @transform_1, window_bounds = array<i64: 1, 32, 96>}, {transform_indices = @transform_2, window_bounds = array<i64: 1, 1, 96>}, {transform_indices = @transform_3, window_bounds = array<i64: 1, 32, 32>}, {transform_indices = @transform_4, window_bounds = array<i64: 1, 1, 32>}, {transform_indices = @transform_5, window_bounds = array<i64: 1, 32, 128>}, {transform_indices = @transform_6, window_bounds = array<i64: 1, 1, 128>}, {transform_indices = @transform_7, window_bounds = array<i64: 1, 128, 32>}, {transform_indices = @transform_8, window_bounds = array<i64: 1, 1, 32>}, {transform_indices = @transform_9, window_bounds = array<i64: 1, 1, 32>}, {transform_indices = @transform_10, window_bounds = array<i64: 1, 1, 32>}, {transform_indices = @transform_11, window_bounds = array<i64: 1, 1, 32>}, {transform_indices = @transform_12, window_bounds = array<i64: 1, 1, 32>}, {pipeline_mode = #tpu.pipeline_mode<synchronous>, transform_indices = @transform_13, window_bounds = array<i64: 1, 32>}, {pipeline_mode = #tpu.pipeline_mode<synchronous>, transform_indices = @transform_14, window_bounds = array<i64: 1, 32>}, {transform_indices = @transform_15, window_bounds = array<i64: 16, 32>}]} {
    %c0_i32 = arith.constant 0 : i32
    %0 = arith.cmpi eq, %arg1, %c0_i32 : i32
    %1 = arith.extui %0 : i1 to i32
    %c0_i32_0 = arith.constant 0 : i32
    %2 = arith.cmpi ne, %1, %c0_i32_0 : i32
    scf.if %2 {
      %c0_77 = arith.constant 0 : index
      %c0_78 = arith.constant 0 : index
      %201 = vector.load %arg2[%c0_77, %c0_78] : memref<16x32xf32, #tpu.memory_space<vmem>>, vector<16x32xf32>
      %c0_79 = arith.constant 0 : index
      %c0_80 = arith.constant 0 : index
      %202 = vector.load %arg17[%c0_79, %c0_80] : memref<16x32xf32, #tpu.memory_space<vmem>>, vector<16x32xf32>
      tpu.vector_store %arg17[%c0_79, %c0_80], %201 {strides = array<i32>} : memref<16x32xf32, #tpu.memory_space<vmem>>, vector<16x32xf32>,
    } else {
    }
    %c0 = arith.constant 0 : index
    %c0_1 = arith.constant 0 : index
    %3 = vector.load %arg17[%c0, %c0_1] : memref<16x32xf32, #tpu.memory_space<vmem>>, vector<16x32xf32>
    %4 = arith.truncf %3 : vector<16x32xf32> to vector<16x32xbf16>
    %c0_2 = arith.constant 0 : index
    %c0_3 = arith.constant 0 : index
    %c0_4 = arith.constant 0 : index
    %5 = vector.load %arg3[%c0_2, %c0_3, %c0_4] : memref<1x32x96xbf16, #tpu.memory_space<vmem>>, vector<1x32x96xbf16>
    %6 = vector.shape_cast %5 : vector<1x32x96xbf16> to vector<32x96xbf16>
    %cst = arith.constant dense<0.000000e+00> : vector<16x96xf32>
    %7 = tpu.matmul %4, %6, %cst {dimension_numbers = #tpu.dot_dimension_numbers<[1], [0], [0], [1], [0, 0, 1, 1], [], []>} : vector<16x32xbf16>, vector<32x96xbf16>, vector<16x96xf32> -> vector<16x96xf32>
    %c0_5 = arith.constant 0 : index
    %c0_6 = arith.constant 0 : index
    %c0_7 = arith.constant 0 : index
    %8 = vector.load %arg4[%c0_5, %c0_6, %c0_7] : memref<1x1x96xf32, #tpu.memory_space<vmem>>, vector<1x1x96xf32>
    %9 = vector.shape_cast %8 : vector<1x1x96xf32> to vector<1x96xf32>
    %10 = vector.broadcast %9 : vector<1x96xf32> to vector<16x96xf32>
    %11 = arith.addf %7, %10 : vector<16x96xf32>
    %12 = vector.extract_strided_slice %11 {offsets = [0, 0], sizes = [16, 8], strides = [1, 1]} : vector<16x96xf32> to vector<16x8xf32>
    %cst_8 = arith.constant 0.353553385 : f32
    %13 = vector.broadcast %cst_8 : f32 to vector<16x8xf32>
    %14 = arith.mulf %12, %13 : vector<16x8xf32>
    %15 = arith.truncf %14 : vector<16x8xf32> to vector<16x8xbf16>
    %16 = vector.shape_cast %15 : vector<16x8xbf16> to vector<8x2x8xbf16>
    %17 = vector.extract_strided_slice %11 {offsets = [0, 32], sizes = [16, 8], strides = [1, 1]} : vector<16x96xf32> to vector<16x8xf32>
    %18 = arith.truncf %17 : vector<16x8xf32> to vector<16x8xbf16>
    %19 = vector.shape_cast %18 : vector<16x8xbf16> to vector<8x2x8xbf16>
    %20 = vector.extract_strided_slice %11 {offsets = [0, 64], sizes = [16, 8], strides = [1, 1]} : vector<16x96xf32> to vector<16x8xf32>
    %21 = arith.truncf %20 : vector<16x8xf32> to vector<16x8xbf16>
    %22 = vector.shape_cast %21 : vector<16x8xbf16> to vector<8x2x8xbf16>
    "tpu.trace_start"() <{level = 10 : i32, message = "tqd,tkd->tqk"}> : () -> ()
    %cst_9 = arith.constant dense<0.000000e+00> : vector<8x2x2xf32>
    %23 = tpu.matmul %16, %19, %cst_9 {dimension_numbers = #tpu.dot_dimension_numbers<[2], [2], [1], [1], [0, 0, 0, 1, 1, 1], [0], [0]>} : vector<8x2x8xbf16>, vector<8x2x8xbf16>, vector<8x2x2xf32> -> vector<8x2x2xf32>
    "tpu.trace_stop"() : () -> ()
    %cst_10 = arith.constant dense<0xFF800000> : vector<8x2xf32>
    %24 = vector.multi_reduction <maximumf>, %23, %cst_10 [2] : vector<8x2x2xf32> to vector<8x2xf32>
    %25 = vector.shape_cast %24 : vector<8x2xf32> to vector<8x2x1xf32>
    %26 = vector.broadcast %25 : vector<8x2x1xf32> to vector<8x2x2xf32>
    %27 = arith.subf %23, %26 : vector<8x2x2xf32>
    %28 = math.exp %27 : vector<8x2x2xf32>
    %cst_11 = arith.constant dense<0.000000e+00> : vector<8x2xf32>
    %29 = vector.multi_reduction <add>, %28, %cst_11 [2] : vector<8x2x2xf32> to vector<8x2xf32>
    %30 = vector.shape_cast %29 : vector<8x2xf32> to vector<8x2x1xf32>
    %31 = tpu.reciprocal %30 {approx = true} : vector<8x2x1xf32> -> vector<8x2x1xf32>
    %32 = vector.broadcast %31 : vector<8x2x1xf32> to vector<8x2x2xf32>
    %33 = arith.mulf %28, %32 : vector<8x2x2xf32>
    %34 = arith.truncf %33 : vector<8x2x2xf32> to vector<8x2x2xbf16>
    "tpu.trace_start"() <{level = 10 : i32, message = "tqk,tkd->tqd"}> : () -> ()
    %cst_12 = arith.constant dense<0.000000e+00> : vector<8x2x8xf32>
    %35 = tpu.matmul %34, %22, %cst_12 {dimension_numbers = #tpu.dot_dimension_numbers<[2], [1], [1], [2], [0, 0, 0, 1, 1, 2], [0], [0]>} : vector<8x2x2xbf16>, vector<8x2x8xbf16>, vector<8x2x8xf32> -> vector<8x2x8xf32>
    "tpu.trace_stop"() : () -> ()
    %36 = vector.shape_cast %35 : vector<8x2x8xf32> to vector<16x8xf32>
    %37 = vector.extract_strided_slice %11 {offsets = [0, 8], sizes = [16, 8], strides = [1, 1]} : vector<16x96xf32> to vector<16x8xf32>
    %cst_13 = arith.constant 0.353553385 : f32
    %38 = vector.broadcast %cst_13 : f32 to vector<16x8xf32>
    %39 = arith.mulf %37, %38 : vector<16x8xf32>
    %40 = arith.truncf %39 : vector<16x8xf32> to vector<16x8xbf16>
    %41 = vector.shape_cast %40 : vector<16x8xbf16> to vector<8x2x8xbf16>
    %42 = vector.extract_strided_slice %11 {offsets = [0, 40], sizes = [16, 8], strides = [1, 1]} : vector<16x96xf32> to vector<16x8xf32>
    %43 = arith.truncf %42 : vector<16x8xf32> to vector<16x8xbf16>
    %44 = vector.shape_cast %43 : vector<16x8xbf16> to vector<8x2x8xbf16>
    %45 = vector.extract_strided_slice %11 {offsets = [0, 72], sizes = [16, 8], strides = [1, 1]} : vector<16x96xf32> to vector<16x8xf32>
    %46 = arith.truncf %45 : vector<16x8xf32> to vector<16x8xbf16>
    %47 = vector.shape_cast %46 : vector<16x8xbf16> to vector<8x2x8xbf16>
    "tpu.trace_start"() <{level = 10 : i32, message = "tqd,tkd->tqk"}> : () -> ()
    %cst_14 = arith.constant dense<0.000000e+00> : vector<8x2x2xf32>
    %48 = tpu.matmul %41, %44, %cst_14 {dimension_numbers = #tpu.dot_dimension_numbers<[2], [2], [1], [1], [0, 0, 0, 1, 1, 1], [0], [0]>} : vector<8x2x8xbf16>, vector<8x2x8xbf16>, vector<8x2x2xf32> -> vector<8x2x2xf32>
    "tpu.trace_stop"() : () -> ()
    %cst_15 = arith.constant dense<0xFF800000> : vector<8x2xf32>
    %49 = vector.multi_reduction <maximumf>, %48, %cst_15 [2] : vector<8x2x2xf32> to vector<8x2xf32>
    %50 = vector.shape_cast %49 : vector<8x2xf32> to vector<8x2x1xf32>
    %51 = vector.broadcast %50 : vector<8x2x1xf32> to vector<8x2x2xf32>
    %52 = arith.subf %48, %51 : vector<8x2x2xf32>
    %53 = math.exp %52 : vector<8x2x2xf32>
    %cst_16 = arith.constant dense<0.000000e+00> : vector<8x2xf32>
    %54 = vector.multi_reduction <add>, %53, %cst_16 [2] : vector<8x2x2xf32> to vector<8x2xf32>
    %55 = vector.shape_cast %54 : vector<8x2xf32> to vector<8x2x1xf32>
    %56 = tpu.reciprocal %55 {approx = true} : vector<8x2x1xf32> -> vector<8x2x1xf32>
    %57 = vector.broadcast %56 : vector<8x2x1xf32> to vector<8x2x2xf32>
    %58 = arith.mulf %53, %57 : vector<8x2x2xf32>
    %59 = arith.truncf %58 : vector<8x2x2xf32> to vector<8x2x2xbf16>
    "tpu.trace_start"() <{level = 10 : i32, message = "tqk,tkd->tqd"}> : () -> ()
    %cst_17 = arith.constant dense<0.000000e+00> : vector<8x2x8xf32>
    %60 = tpu.matmul %59, %47, %cst_17 {dimension_numbers = #tpu.dot_dimension_numbers<[2], [1], [1], [2], [0, 0, 0, 1, 1, 2], [0], [0]>} : vector<8x2x2xbf16>, vector<8x2x8xbf16>, vector<8x2x8xf32> -> vector<8x2x8xf32>
    "tpu.trace_stop"() : () -> ()
    %61 = vector.shape_cast %60 : vector<8x2x8xf32> to vector<16x8xf32>
    %62 = vector.extract_strided_slice %11 {offsets = [0, 16], sizes = [16, 8], strides = [1, 1]} : vector<16x96xf32> to vector<16x8xf32>
    %cst_18 = arith.constant 0.353553385 : f32
    %63 = vector.broadcast %cst_18 : f32 to vector<16x8xf32>
    %64 = arith.mulf %62, %63 : vector<16x8xf32>
    %65 = arith.truncf %64 : vector<16x8xf32> to vector<16x8xbf16>
    %66 = vector.shape_cast %65 : vector<16x8xbf16> to vector<8x2x8xbf16>
    %67 = vector.extract_strided_slice %11 {offsets = [0, 48], sizes = [16, 8], strides = [1, 1]} : vector<16x96xf32> to vector<16x8xf32>
    %68 = arith.truncf %67 : vector<16x8xf32> to vector<16x8xbf16>
    %69 = vector.shape_cast %68 : vector<16x8xbf16> to vector<8x2x8xbf16>
    %70 = vector.extract_strided_slice %11 {offsets = [0, 80], sizes = [16, 8], strides = [1, 1]} : vector<16x96xf32> to vector<16x8xf32>
    %71 = arith.truncf %70 : vector<16x8xf32> to vector<16x8xbf16>
    %72 = vector.shape_cast %71 : vector<16x8xbf16> to vector<8x2x8xbf16>
    "tpu.trace_start"() <{level = 10 : i32, message = "tqd,tkd->tqk"}> : () -> ()
    %cst_19 = arith.constant dense<0.000000e+00> : vector<8x2x2xf32>
    %73 = tpu.matmul %66, %69, %cst_19 {dimension_numbers = #tpu.dot_dimension_numbers<[2], [2], [1], [1], [0, 0, 0, 1, 1, 1], [0], [0]>} : vector<8x2x8xbf16>, vector<8x2x8xbf16>, vector<8x2x2xf32> -> vector<8x2x2xf32>
    "tpu.trace_stop"() : () -> ()
    %cst_20 = arith.constant dense<0xFF800000> : vector<8x2xf32>
    %74 = vector.multi_reduction <maximumf>, %73, %cst_20 [2] : vector<8x2x2xf32> to vector<8x2xf32>
    %75 = vector.shape_cast %74 : vector<8x2xf32> to vector<8x2x1xf32>
    %76 = vector.broadcast %75 : vector<8x2x1xf32> to vector<8x2x2xf32>
    %77 = arith.subf %73, %76 : vector<8x2x2xf32>
    %78 = math.exp %77 : vector<8x2x2xf32>
    %cst_21 = arith.constant dense<0.000000e+00> : vector<8x2xf32>
    %79 = vector.multi_reduction <add>, %78, %cst_21 [2] : vector<8x2x2xf32> to vector<8x2xf32>
    %80 = vector.shape_cast %79 : vector<8x2xf32> to vector<8x2x1xf32>
    %81 = tpu.reciprocal %80 {approx = true} : vector<8x2x1xf32> -> vector<8x2x1xf32>
    %82 = vector.broadcast %81 : vector<8x2x1xf32> to vector<8x2x2xf32>
    %83 = arith.mulf %78, %82 : vector<8x2x2xf32>
    %84 = arith.truncf %83 : vector<8x2x2xf32> to vector<8x2x2xbf16>
    "tpu.trace_start"() <{level = 10 : i32, message = "tqk,tkd->tqd"}> : () -> ()
    %cst_22 = arith.constant dense<0.000000e+00> : vector<8x2x8xf32>
    %85 = tpu.matmul %84, %72, %cst_22 {dimension_numbers = #tpu.dot_dimension_numbers<[2], [1], [1], [2], [0, 0, 0, 1, 1, 2], [0], [0]>} : vector<8x2x2xbf16>, vector<8x2x8xbf16>, vector<8x2x8xf32> -> vector<8x2x8xf32>
    "tpu.trace_stop"() : () -> ()
    %86 = vector.shape_cast %85 : vector<8x2x8xf32> to vector<16x8xf32>
    %87 = vector.extract_strided_slice %11 {offsets = [0, 24], sizes = [16, 8], strides = [1, 1]} : vector<16x96xf32> to vector<16x8xf32>
    %cst_23 = arith.constant 0.353553385 : f32
    %88 = vector.broadcast %cst_23 : f32 to vector<16x8xf32>
    %89 = arith.mulf %87, %88 : vector<16x8xf32>
    %90 = arith.truncf %89 : vector<16x8xf32> to vector<16x8xbf16>
    %91 = vector.shape_cast %90 : vector<16x8xbf16> to vector<8x2x8xbf16>
    %92 = vector.extract_strided_slice %11 {offsets = [0, 56], sizes = [16, 8], strides = [1, 1]} : vector<16x96xf32> to vector<16x8xf32>
    %93 = arith.truncf %92 : vector<16x8xf32> to vector<16x8xbf16>
    %94 = vector.shape_cast %93 : vector<16x8xbf16> to vector<8x2x8xbf16>
    %95 = vector.extract_strided_slice %11 {offsets = [0, 88], sizes = [16, 8], strides = [1, 1]} : vector<16x96xf32> to vector<16x8xf32>
    %96 = arith.truncf %95 : vector<16x8xf32> to vector<16x8xbf16>
    %97 = vector.shape_cast %96 : vector<16x8xbf16> to vector<8x2x8xbf16>
    "tpu.trace_start"() <{level = 10 : i32, message = "tqd,tkd->tqk"}> : () -> ()
    %cst_24 = arith.constant dense<0.000000e+00> : vector<8x2x2xf32>
    %98 = tpu.matmul %91, %94, %cst_24 {dimension_numbers = #tpu.dot_dimension_numbers<[2], [2], [1], [1], [0, 0, 0, 1, 1, 1], [0], [0]>} : vector<8x2x8xbf16>, vector<8x2x8xbf16>, vector<8x2x2xf32> -> vector<8x2x2xf32>
    "tpu.trace_stop"() : () -> ()
    %cst_25 = arith.constant dense<0xFF800000> : vector<8x2xf32>
    %99 = vector.multi_reduction <maximumf>, %98, %cst_25 [2] : vector<8x2x2xf32> to vector<8x2xf32>
    %100 = vector.shape_cast %99 : vector<8x2xf32> to vector<8x2x1xf32>
    %101 = vector.broadcast %100 : vector<8x2x1xf32> to vector<8x2x2xf32>
    %102 = arith.subf %98, %101 : vector<8x2x2xf32>
    %103 = math.exp %102 : vector<8x2x2xf32>
    %cst_26 = arith.constant dense<0.000000e+00> : vector<8x2xf32>
    %104 = vector.multi_reduction <add>, %103, %cst_26 [2] : vector<8x2x2xf32> to vector<8x2xf32>
    %105 = vector.shape_cast %104 : vector<8x2xf32> to vector<8x2x1xf32>
    %106 = tpu.reciprocal %105 {approx = true} : vector<8x2x1xf32> -> vector<8x2x1xf32>
    %107 = vector.broadcast %106 : vector<8x2x1xf32> to vector<8x2x2xf32>
    %108 = arith.mulf %103, %107 : vector<8x2x2xf32>
    %109 = arith.truncf %108 : vector<8x2x2xf32> to vector<8x2x2xbf16>
    "tpu.trace_start"() <{level = 10 : i32, message = "tqk,tkd->tqd"}> : () -> ()
    %cst_27 = arith.constant dense<0.000000e+00> : vector<8x2x8xf32>
    %110 = tpu.matmul %109, %97, %cst_27 {dimension_numbers = #tpu.dot_dimension_numbers<[2], [1], [1], [2], [0, 0, 0, 1, 1, 2], [0], [0]>} : vector<8x2x2xbf16>, vector<8x2x8xbf16>, vector<8x2x8xf32> -> vector<8x2x8xf32>
    "tpu.trace_stop"() : () -> ()
    %111 = vector.shape_cast %110 : vector<8x2x8xf32> to vector<16x8xf32>
    %112 = tpu.concatenate %36, %61, %86, %111 in 1 : vector<16x8xf32>, vector<16x8xf32>, vector<16x8xf32>, vector<16x8xf32> -> vector<16x32xf32>
    %113 = arith.truncf %112 : vector<16x32xf32> to vector<16x32xbf16>
    %c0_28 = arith.constant 0 : index
    %c0_29 = arith.constant 0 : index
    %c0_30 = arith.constant 0 : index
    %114 = vector.load %arg5[%c0_28, %c0_29, %c0_30] : memref<1x32x32xbf16, #tpu.memory_space<vmem>>, vector<1x32x32xbf16>
    %115 = vector.shape_cast %114 : vector<1x32x32xbf16> to vector<32x32xbf16>
    %cst_31 = arith.constant dense<0.000000e+00> : vector<16x32xf32>
    %116 = tpu.matmul %113, %115, %cst_31 {dimension_numbers = #tpu.dot_dimension_numbers<[1], [0], [0], [1], [0, 0, 1, 1], [], []>} : vector<16x32xbf16>, vector<32x32xbf16>, vector<16x32xf32> -> vector<16x32xf32>
    %c0_32 = arith.constant 0 : index
    %c0_33 = arith.constant 0 : index
    %c0_34 = arith.constant 0 : index
    %117 = vector.load %arg6[%c0_32, %c0_33, %c0_34] : memref<1x1x32xf32, #tpu.memory_space<vmem>>, vector<1x1x32xf32>
    %118 = vector.shape_cast %117 : vector<1x1x32xf32> to vector<1x32xf32>
    %119 = vector.broadcast %118 : vector<1x32xf32> to vector<16x32xf32>
    %120 = arith.addf %116, %119 : vector<16x32xf32>
    %121 = arith.addf %3, %120 : vector<16x32xf32>
    %c0_35 = arith.constant 0 : index
    %c0_36 = arith.constant 0 : index
    %c0_37 = arith.constant 0 : index
    %122 = vector.load %arg11[%c0_35, %c0_36, %c0_37] : memref<1x1x32xf32, #tpu.memory_space<vmem>>, vector<1x1x32xf32>
    %123 = vector.shape_cast %122 : vector<1x1x32xf32> to vector<1x32xf32>
    %c0_38 = arith.constant 0 : index
    %c0_39 = arith.constant 0 : index
    %c0_40 = arith.constant 0 : index
    %124 = vector.load %arg12[%c0_38, %c0_39, %c0_40] : memref<1x1x32xf32, #tpu.memory_space<vmem>>, vector<1x1x32xf32>
    %125 = vector.shape_cast %124 : vector<1x1x32xf32> to vector<1x32xf32>
    %cst_41 = arith.constant dense<0.000000e+00> : vector<16xf32>
    %126 = vector.multi_reduction <add>, %121, %cst_41 [1] : vector<16x32xf32> to vector<16xf32>
    %127 = vector.shape_cast %126 : vector<16xf32> to vector<16x1xf32>
    %cst_42 = arith.constant 3.200000e+01 : f32
    %128 = vector.broadcast %cst_42 : f32 to vector<16x1xf32>
    %129 = arith.divf %127, %128 : vector<16x1xf32>
    %130 = vector.broadcast %129 : vector<16x1xf32> to vector<16x32xf32>
    %131 = arith.subf %121, %130 : vector<16x32xf32>
    %132 = arith.mulf %131, %131 : vector<16x32xf32>
    %cst_43 = arith.constant dense<0.000000e+00> : vector<16xf32>
    %133 = vector.multi_reduction <add>, %132, %cst_43 [1] : vector<16x32xf32> to vector<16xf32>
    %134 = vector.shape_cast %133 : vector<16xf32> to vector<16x1xf32>
    %cst_44 = arith.constant 3.200000e+01 : f32
    %135 = vector.broadcast %cst_44 : f32 to vector<16x1xf32>
    %136 = arith.divf %134, %135 : vector<16x1xf32>
    %cst_45 = arith.constant 9.99999974E-6 : f32
    %137 = vector.broadcast %cst_45 : f32 to vector<16x1xf32>
    %138 = arith.addf %136, %137 : vector<16x1xf32>
    %139 = math.rsqrt %138 : vector<16x1xf32>
    %140 = vector.broadcast %139 : vector<16x1xf32> to vector<16x32xf32>
    %141 = arith.mulf %131, %140 : vector<16x32xf32>
    %142 = vector.broadcast %123 : vector<1x32xf32> to vector<16x32xf32>
    %143 = arith.mulf %141, %142 : vector<16x32xf32>
    %144 = vector.broadcast %125 : vector<1x32xf32> to vector<16x32xf32>
    %145 = arith.addf %143, %144 : vector<16x32xf32>
    %146 = arith.truncf %145 : vector<16x32xf32> to vector<16x32xbf16>
    %c0_46 = arith.constant 0 : index
    %c0_47 = arith.constant 0 : index
    %c0_48 = arith.constant 0 : index
    %147 = vector.load %arg7[%c0_46, %c0_47, %c0_48] : memref<1x32x128xbf16, #tpu.memory_space<vmem>>, vector<1x32x128xbf16>
    %148 = vector.shape_cast %147 : vector<1x32x128xbf16> to vector<32x128xbf16>
    %cst_49 = arith.constant dense<0.000000e+00> : vector<16x128xf32>
    %149 = tpu.matmul %146, %148, %cst_49 {dimension_numbers = #tpu.dot_dimension_numbers<[1], [0], [0], [1], [0, 0, 1, 1], [], []>} : vector<16x32xbf16>, vector<32x128xbf16>, vector<16x128xf32> -> vector<16x128xf32>
    %c0_50 = arith.constant 0 : index
    %c0_51 = arith.constant 0 : index
    %c0_52 = arith.constant 0 : index
    %150 = vector.load %arg8[%c0_50, %c0_51, %c0_52] : memref<1x1x128xf32, #tpu.memory_space<vmem>>, vector<1x1x128xf32>
    %151 = vector.shape_cast %150 : vector<1x1x128xf32> to vector<1x128xf32>
    %152 = vector.broadcast %151 : vector<1x128xf32> to vector<16x128xf32>
    %153 = arith.addf %149, %152 : vector<16x128xf32>
    %cst_53 = arith.constant 5.000000e-01 : f32
    %154 = vector.broadcast %cst_53 : f32 to vector<16x128xf32>
    %155 = arith.mulf %154, %153 : vector<16x128xf32>
    %cst_54 = arith.constant 0.707106769 : f32
    %156 = vector.broadcast %cst_54 : f32 to vector<16x128xf32>
    %157 = arith.mulf %153, %156 : vector<16x128xf32>
    %158 = math.erf %157 : vector<16x128xf32>
    %cst_55 = arith.constant 1.000000e+00 : f32
    %159 = vector.broadcast %cst_55 : f32 to vector<16x128xf32>
    %160 = arith.addf %159, %158 : vector<16x128xf32>
    %161 = arith.mulf %155, %160 : vector<16x128xf32>
    %162 = arith.truncf %161 : vector<16x128xf32> to vector<16x128xbf16>
    %c0_56 = arith.constant 0 : index
    %c0_57 = arith.constant 0 : index
    %c0_58 = arith.constant 0 : index
    %163 = vector.load %arg9[%c0_56, %c0_57, %c0_58] : memref<1x128x32xbf16, #tpu.memory_space<vmem>>, vector<1x128x32xbf16>
    %164 = vector.shape_cast %163 : vector<1x128x32xbf16> to vector<128x32xbf16>
    %cst_59 = arith.constant dense<0.000000e+00> : vector<16x32xf32>
    %165 = tpu.matmul %162, %164, %cst_59 {dimension_numbers = #tpu.dot_dimension_numbers<[1], [0], [0], [1], [0, 0, 1, 1], [], []>} : vector<16x128xbf16>, vector<128x32xbf16>, vector<16x32xf32> -> vector<16x32xf32>
    %c0_60 = arith.constant 0 : index
    %c0_61 = arith.constant 0 : index
    %c0_62 = arith.constant 0 : index
    %166 = vector.load %arg10[%c0_60, %c0_61, %c0_62] : memref<1x1x32xf32, #tpu.memory_space<vmem>>, vector<1x1x32xf32>
    %167 = vector.shape_cast %166 : vector<1x1x32xf32> to vector<1x32xf32>
    %168 = vector.broadcast %167 : vector<1x32xf32> to vector<16x32xf32>
    %169 = arith.addf %165, %168 : vector<16x32xf32>
    %170 = arith.addf %145, %169 : vector<16x32xf32>
    %c0_63 = arith.constant 0 : index
    %c0_64 = arith.constant 0 : index
    %c0_65 = arith.constant 0 : index
    %171 = vector.load %arg13[%c0_63, %c0_64, %c0_65] : memref<1x1x32xf32, #tpu.memory_space<vmem>>, vector<1x1x32xf32>
    %172 = vector.shape_cast %171 : vector<1x1x32xf32> to vector<1x32xf32>
    %c0_66 = arith.constant 0 : index
    %c0_67 = arith.constant 0 : index
    %c0_68 = arith.constant 0 : index
    %173 = vector.load %arg14[%c0_66, %c0_67, %c0_68] : memref<1x1x32xf32, #tpu.memory_space<vmem>>, vector<1x1x32xf32>
    %174 = vector.shape_cast %173 : vector<1x1x32xf32> to vector<1x32xf32>
    %cst_69 = arith.constant dense<0.000000e+00> : vector<16xf32>
    %175 = vector.multi_reduction <add>, %170, %cst_69 [1] : vector<16x32xf32> to vector<16xf32>
    %176 = vector.shape_cast %175 : vector<16xf32> to vector<16x1xf32>
    %cst_70 = arith.constant 3.200000e+01 : f32
    %177 = vector.broadcast %cst_70 : f32 to vector<16x1xf32>
    %178 = arith.divf %176, %177 : vector<16x1xf32>
    %179 = vector.broadcast %178 : vector<16x1xf32> to vector<16x32xf32>
    %180 = arith.subf %170, %179 : vector<16x32xf32>
    %181 = arith.mulf %180, %180 : vector<16x32xf32>
    %cst_71 = arith.constant dense<0.000000e+00> : vector<16xf32>
    %182 = vector.multi_reduction <add>, %181, %cst_71 [1] : vector<16x32xf32> to vector<16xf32>
    %183 = vector.shape_cast %182 : vector<16xf32> to vector<16x1xf32>
    %cst_72 = arith.constant 3.200000e+01 : f32
    %184 = vector.broadcast %cst_72 : f32 to vector<16x1xf32>
    %185 = arith.divf %183, %184 : vector<16x1xf32>
    %cst_73 = arith.constant 9.99999974E-6 : f32
    %186 = vector.broadcast %cst_73 : f32 to vector<16x1xf32>
    %187 = arith.addf %185, %186 : vector<16x1xf32>
    %188 = math.rsqrt %187 : vector<16x1xf32>
    %189 = vector.broadcast %188 : vector<16x1xf32> to vector<16x32xf32>
    %190 = arith.mulf %180, %189 : vector<16x32xf32>
    %191 = vector.broadcast %172 : vector<1x32xf32> to vector<16x32xf32>
    %192 = arith.mulf %190, %191 : vector<16x32xf32>
    %193 = vector.broadcast %174 : vector<1x32xf32> to vector<16x32xf32>
    %194 = arith.addf %192, %193 : vector<16x32xf32>
    %c1_i32 = arith.constant 1 : i32
    %195 = arith.cmpi slt, %arg1, %c1_i32 : i32
    %196 = arith.extui %195 : i1 to i32
    %c0_i32_74 = arith.constant 0 : i32
    %197 = arith.cmpi ne, %196, %c0_i32_74 : i32
    scf.if %197 {
      %c0_77 = arith.constant 0 : index
      %c0_78 = arith.constant 0 : index
      %201 = vector.load %arg17[%c0_77, %c0_78] : memref<16x32xf32, #tpu.memory_space<vmem>>, vector<16x32xf32>
      tpu.vector_store %arg17[%c0_77, %c0_78], %194 {strides = array<i32>} : memref<16x32xf32, #tpu.memory_space<vmem>>, vector<16x32xf32>,
    } else {
    }
    %c1_i32_75 = arith.constant 1 : i32
    %198 = arith.cmpi eq, %arg1, %c1_i32_75 : i32
    %199 = arith.extui %198 : i1 to i32
    %c0_i32_76 = arith.constant 0 : i32
    %200 = arith.cmpi ne, %199, %c0_i32_76 : i32
    scf.if %200 {
      %c0_77 = arith.constant 0 : index
      %c0_78 = arith.constant 0 : index
      %201 = vector.load %arg15[%c0_77, %c0_78] : memref<1x32xf32, #tpu.memory_space<vmem>>, vector<1x32xf32>
      %c0_79 = arith.constant 0 : index
      %c0_80 = arith.constant 0 : index
      %202 = vector.load %arg16[%c0_79, %c0_80] : memref<1x32xf32, #tpu.memory_space<vmem>>, vector<1x32xf32>
      %cst_81 = arith.constant dense<0.000000e+00> : vector<16xf32>
      %203 = vector.multi_reduction <add>, %194, %cst_81 [1] : vector<16x32xf32> to vector<16xf32>
      %204 = vector.shape_cast %203 : vector<16xf32> to vector<16x1xf32>
      %cst_82 = arith.constant 3.200000e+01 : f32
      %205 = vector.broadcast %cst_82 : f32 to vector<16x1xf32>
      %206 = arith.divf %204, %205 : vector<16x1xf32>
      %207 = vector.broadcast %206 : vector<16x1xf32> to vector<16x32xf32>
      %208 = arith.subf %194, %207 : vector<16x32xf32>
      %209 = arith.mulf %208, %208 : vector<16x32xf32>
      %cst_83 = arith.constant dense<0.000000e+00> : vector<16xf32>
      %210 = vector.multi_reduction <add>, %209, %cst_83 [1] : vector<16x32xf32> to vector<16xf32>
      %211 = vector.shape_cast %210 : vector<16xf32> to vector<16x1xf32>
      %cst_84 = arith.constant 3.200000e+01 : f32
      %212 = vector.broadcast %cst_84 : f32 to vector<16x1xf32>
      %213 = arith.divf %211, %212 : vector<16x1xf32>
      %cst_85 = arith.constant 9.99999974E-6 : f32
      %214 = vector.broadcast %cst_85 : f32 to vector<16x1xf32>
      %215 = arith.addf %213, %214 : vector<16x1xf32>
      %216 = math.rsqrt %215 : vector<16x1xf32>
      %217 = vector.broadcast %216 : vector<16x1xf32> to vector<16x32xf32>
      %218 = arith.mulf %208, %217 : vector<16x32xf32>
      %219 = vector.broadcast %201 : vector<1x32xf32> to vector<16x32xf32>
      %220 = arith.mulf %218, %219 : vector<16x32xf32>
      %221 = vector.broadcast %202 : vector<1x32xf32> to vector<16x32xf32>
      %222 = arith.addf %220, %221 : vector<16x32xf32>
      %c0_86 = arith.constant 0 : index
      %c0_87 = arith.constant 0 : index
      %223 = vector.load %arg17[%c0_86, %c0_87] : memref<16x32xf32, #tpu.memory_space<vmem>>, vector<16x32xf32>
      tpu.vector_store %arg17[%c0_86, %c0_87], %222 {strides = array<i32>} : memref<16x32xf32, #tpu.memory_space<vmem>>, vector<16x32xf32>,
    } else {
    }
    return
  }
  func.func @transform_0(%arg0: i32, %arg1: i32) -> (i32, i32) {
    %c0_i32 = arith.constant 0 : i32
    %c0_i32_0 = arith.constant 0 : i32
    return %arg0, %c0_i32 : i32, i32
  }
  func.func @transform_1(%arg0: i32, %arg1: i32) -> (i32, i32, i32) {
    %c0_i32 = arith.constant 0 : i32
    %c0_i32_0 = arith.constant 0 : i32
    %c0_i32_1 = arith.constant 0 : i32
    return %arg1, %c0_i32, %c0_i32_0 : i32, i32, i32
  }
  func.func @transform_2(%arg0: i32, %arg1: i32) -> (i32, i32, i32) {
    %c0_i32 = arith.constant 0 : i32
    %c0_i32_0 = arith.constant 0 : i32
    %c0_i32_1 = arith.constant 0 : i32
    return %arg1, %c0_i32, %c0_i32_0 : i32, i32, i32
  }
  func.func @transform_3(%arg0: i32, %arg1: i32) -> (i32, i32, i32) {
    %c0_i32 = arith.constant 0 : i32
    %c0_i32_0 = arith.constant 0 : i32
    %c0_i32_1 = arith.constant 0 : i32
    return %arg1, %c0_i32, %c0_i32_0 : i32, i32, i32
  }
  func.func @transform_4(%arg0: i32, %arg1: i32) -> (i32, i32, i32) {
    %c0_i32 = arith.constant 0 : i32
    %c0_i32_0 = arith.constant 0 : i32
    %c0_i32_1 = arith.constant 0 : i32
    return %arg1, %c0_i32, %c0_i32_0 : i32, i32, i32
  }
  func.func @transform_5(%arg0: i32, %arg1: i32) -> (i32, i32, i32) {
    %c0_i32 = arith.constant 0 : i32
    %c0_i32_0 = arith.constant 0 : i32
    %c0_i32_1 = arith.constant 0 : i32
    return %arg1, %c0_i32, %c0_i32_0 : i32, i32, i32
  }
  func.func @transform_6(%arg0: i32, %arg1: i32) -> (i32, i32, i32) {
    %c0_i32 = arith.constant 0 : i32
    %c0_i32_0 = arith.constant 0 : i32
    %c0_i32_1 = arith.constant 0 : i32
    return %arg1, %c0_i32, %c0_i32_0 : i32, i32, i32
  }
  func.func @transform_7(%arg0: i32, %arg1: i32) -> (i32, i32, i32) {
    %c0_i32 = arith.constant 0 : i32
    %c0_i32_0 = arith.constant 0 : i32
    %c0_i32_1 = arith.constant 0 : i32
    return %arg1, %c0_i32, %c0_i32_0 : i32, i32, i32
  }
  func.func @transform_8(%arg0: i32, %arg1: i32) -> (i32, i32, i32) {
    %c0_i32 = arith.constant 0 : i32
    %c0_i32_0 = arith.constant 0 : i32
    %c0_i32_1 = arith.constant 0 : i32
    return %arg1, %c0_i32, %c0_i32_0 : i32, i32, i32
  }
  func.func @transform_9(%arg0: i32, %arg1: i32) -> (i32, i32, i32) {
    %c0_i32 = arith.constant 0 : i32
    %c0_i32_0 = arith.constant 0 : i32
    %c0_i32_1 = arith.constant 0 : i32
    return %arg1, %c0_i32, %c0_i32_0 : i32, i32, i32
  }
  func.func @transform_10(%arg0: i32, %arg1: i32) -> (i32, i32, i32) {
    %c0_i32 = arith.constant 0 : i32
    %c0_i32_0 = arith.constant 0 : i32
    %c0_i32_1 = arith.constant 0 : i32
    return %arg1, %c0_i32, %c0_i32_0 : i32, i32, i32
  }
  func.func @transform_11(%arg0: i32, %arg1: i32) -> (i32, i32, i32) {
    %c0_i32 = arith.constant 0 : i32
    %c0_i32_0 = arith.constant 0 : i32
    %c0_i32_1 = arith.constant 0 : i32
    return %arg1, %c0_i32, %c0_i32_0 : i32, i32, i32
  }
  func.func @transform_12(%arg0: i32, %arg1: i32) -> (i32, i32, i32) {
    %c0_i32 = arith.constant 0 : i32
    %c0_i32_0 = arith.constant 0 : i32
    %c0_i32_1 = arith.constant 0 : i32
    return %arg1, %c0_i32, %c0_i32_0 : i32, i32, i32
  }
  func.func @transform_13(%arg0: i32, %arg1: i32) -> (i32, i32) {
    %c0_i32 = arith.constant 0 : i32
    %c0_i32_0 = arith.constant 0 : i32
    %c0_i32_1 = arith.constant 0 : i32
    return %c0_i32, %c0_i32_0 : i32, i32
  }
  func.func @transform_14(%arg0: i32, %arg1: i32) -> (i32, i32) {
    %c0_i32 = arith.constant 0 : i32
    %c0_i32_0 = arith.constant 0 : i32
    %c0_i32_1 = arith.constant 0 : i32
    return %c0_i32, %c0_i32_0 : i32, i32
  }
  func.func @transform_15(%arg0: i32, %arg1: i32) -> (i32, i32) {
    %c0_i32 = arith.constant 0 : i32
    %c0_i32_0 = arith.constant 0 : i32
    return %arg0, %c0_i32 : i32, i32
  }
}

</mosaic_0001>

<llo_original>
// kernel: vit_forward.2
$region0: #{vit_forward.2}
  #allocation0 [shape = 'u32[]', space=smem, size = 0x4, offset = 0x4, fixed_abs, tag = 'smem constant byte address 0x4 - core index']
  #allocation1 [shape = 'u32[72,128]{1,0:T(1,128)}', space=vmem, size = 0x9000, scoped, tag = 'internal scratch']
  %s0 = inlined_call_operand.vmem [shape: f32[32,48], index: 0, kind: input, shape index: {}]
  %s1 = inlined_call_operand.vmem [shape: bf16[48,32], index: 1, kind: input, shape index: {}]
  %s2 = inlined_call_operand.vmem [shape: f32[1,32], index: 2, kind: input, shape index: {}]
  %s3 = inlined_call_operand.vmem [shape: f32[32,32], index: 3, kind: output, shape index: {}]
  %s4 = sld [smem:[#allocation0]]
  $region22: #{vit_forward.2} parent=0
    _
  %s6 = ssub.s32 1, %s4
  %s7 = scalar_select 0, %s6, %s4
  // Predicated region
  $region2: #{vit_forward.2} parent=0 // pred_check
    _
  $region3: #{vit_forward.2} parent=0 // pred_check_branch
    %9 = sbr.rel (0) target = $region5
  $region4: #{vit_forward.2} parent=0 // pred_region
    _
  $region5: #{vit_forward.2} parent=0 // pred_fallthru
    _
  // Predicated region
  $region6: #{vit_forward.2} parent=0 // pred_check
    _
  $region7: #{vit_forward.2} parent=0 // pred_check_branch
    %11 = sbr.rel (0) target = $region9
  $region8: #{vit_forward.2} parent=0 // pred_region
    _
  $region9: #{vit_forward.2} parent=0 // pred_fallthru
    _
  // Predicated region
  $region10: #{vit_forward.2} parent=0 // pred_check
    _
  $region11: #{vit_forward.2} parent=0 // pred_check_branch
    %13 = sbr.rel (0) target = $region13
  $region12: #{vit_forward.2} parent=0 // pred_region
    _
  $region13: #{vit_forward.2} parent=0 // pred_fallthru
    _
  %v15 = vld [vmem:[%s0] sm:$0xff]
  %v16 = vld [vmem:[%s0 + $0x8] sm:$0xff]
  %v17 = vld [vmem:[%s0 + $0x10] sm:$0xff]
  %v18 = vld [vmem:[%s0 + $0x18] sm:$0xff]
  %v19 = vpack.c.bf16 %v16, %v15
  %v20 = vpack.c.bf16 %v18, %v17
  %v21 = vld [vmem:[%s1] sm:$0xf]
  %v22 = vld [vmem:[%s1 + $0x4] sm:$0xf]
  %v23 = vld [vmem:[%s1 + $0x8] sm:$0xf]
  %v24 = vld [vmem:[%s1 + $0xc] sm:$0xf]
  %v25 = vld [vmem:[%s1 + $0x10] sm:$0xf]
  %v26 = vld [vmem:[%s1 + $0x14] sm:$0xf]
  %v27 = vld [vmem:[%s2] sm:$0x1]
  %v29 = vperm.slane %v27, 0
  %v37 = vunpack.c.l.b16 %v21
  %v38 = vunpack.c.l.b16 %v22
  %v39 = vunpack.c.l.b16 %v23
  %v40 = vunpack.c.l.b16 %v24
  %v41 = vunpack.c.l.b16 %v25
  %v42 = vunpack.c.l.b16 %v26
  %v43 = vpack.c.b16 %v38, %v37
  %v44 = vpack.c.b16 %v40, %v39
  %v45 = vpack.c.b16 %v42, %v41
  %vm49 = vcmask 392192
  %v51 = vsel %vm49, %v19, 0
  %v54 = vsel %vm49, %v20, 0
  %56 = vmatpush.bf16.msra.mxu0 0
  %57 = vmatpush.bf16.msra.mxu0 0
  %58 = vmatpush.bf16.msra.mxu0 0
  %59 = vmatpush.bf16.msra.mxu0 0
  %60 = vmatpush.bf16.msra.mxu0 0
  %61 = vmatpush.bf16.msra.mxu0 %v45
  %62 = vmatpush.bf16.msra.mxu0 %v44
  %63 = vmatpush.bf16.msra.mxu0 %v43
  %64 = vmatmul.bf16.gmra.mxu0 %v51
  %v65 = vpop.f32.mrf.mxu0
  %v66 = vadd.f32 %v29, %v65
  %v67 = vpop.f32.mrf.mxu0
  %v68 = vadd.f32 %v29, %v67
  %69 = vmatmul.bf16.gmra.mxu0 %v54
  %v70 = vpop.f32.mrf.mxu0
  %v71 = vadd.f32 %v29, %v70
  %v72 = vpop.f32.mrf.mxu0
  %v73 = vadd.f32 %v29, %v72
  %74 = vdwg.mxu0
  %vm75 = vcmask 261120
  %76 = vst.msk [vmem:[%s3] sm:$0xff] %vm75, %v66
  %77 = vst.msk [vmem:[%s3 + $0x8] sm:$0xff] %vm75, %v68
  %78 = vst.msk [vmem:[%s3 + $0x10] sm:$0xff] %vm75, %v71
  %79 = vst.msk [vmem:[%s3 + $0x18] sm:$0xff] %vm75, %v73
  // Predicated region
  $region14: #{vit_forward.2} parent=0 // pred_check
    _
  $region15: #{vit_forward.2} parent=0 // pred_check_branch
    %81 = sbr.rel (0) target = $region17
  $region16: #{vit_forward.2} parent=0 // pred_region
    _
  $region17: #{vit_forward.2} parent=0 // pred_fallthru
    _
  // Predicated region
  $region18: #{vit_forward.2} parent=0 // pred_check
    _
  $region19: #{vit_forward.2} parent=0 // pred_check_branch
    %83 = sbr.rel (0) target = $region21
  $region20: #{vit_forward.2} parent=0 // pred_region
    _
  $region21: #{vit_forward.2} parent=0 // pred_fallthru
    _

// kernel: vit_forward.3
$region0: #{vit_forward.3}
  #allocation0 [shape = 'u32[]', space=smem, size = 0x4, offset = 0x4, fixed_abs, tag = 'smem constant byte address 0x4 - core index']
  #allocation1 [shape = 'u32[72,128]{1,0:T(1,128)}', space=vmem, size = 0x9000, scoped, tag = 'internal scratch']
  %s0 = inlined_call_operand.vmem [shape: f32[48,32], index: 0, kind: input, shape index: {}]
  %s1 = inlined_call_operand.vmem [shape: bf16[2,32,96], index: 1, kind: input, shape index: {}]
  %s2 = inlined_call_operand.vmem [shape: f32[2,1,96], index: 2, kind: input, shape index: {}]
  %s3 = inlined_call_operand.vmem [shape: bf16[2,32,32], index: 3, kind: input, shape index: {}]
  %s4 = inlined_call_operand.vmem [shape: f32[2,1,32], index: 4, kind: input, shape index: {}]
  %s5 = inlined_call_operand.vmem [shape: bf16[2,32,128], index: 5, kind: input, shape index: {}]
  %s6 = inlined_call_operand.vmem [shape: f32[2,1,128], index: 6, kind: input, shape index: {}]
  %s7 = inlined_call_operand.vmem [shape: bf16[2,128,32], index: 7, kind: input, shape index: {}]
  %s8 = inlined_call_operand.vmem [shape: f32[2,1,32], index: 8, kind: input, shape index: {}]
  %s9 = inlined_call_operand.vmem [shape: f32[2,1,32], index: 9, kind: input, shape index: {}]
  %s10 = inlined_call_operand.vmem [shape: f32[2,1,32], index: 10, kind: input, shape index: {}]
  %s11 = inlined_call_operand.vmem [shape: f32[2,1,32], index: 11, kind: input, shape index: {}]
  %s12 = inlined_call_operand.vmem [shape: f32[2,1,32], index: 12, kind: input, shape index: {}]
  %s13 = inlined_call_operand.vmem [shape: f32[1,32], index: 13, kind: input, shape index: {}]
  %s14 = inlined_call_operand.vmem [shape: f32[1,32], index: 14, kind: input, shape index: {}]
  %s15 = inlined_call_operand.vmem [shape: f32[48,32], index: 15, kind: output, shape index: {}]
  %s16 = sld [smem:[#allocation0]]
  $region105: #{vit_forward.3} parent=0
    _
  %s18 = ssub.s32 1, %s16
  %s19 = scalar_select 0, %s18, %s16
  loop: start=0, step=1, limit=8
  $region2: #{vit_forward.3} parent=0 // loop_pre_header
    _
  $region3: #{vit_forward.3} parent=0 // loop_header
    %s21 = sphi 0, %s25
    %p22 = scmp.ge.s32.totalorder %s21, 8
    %s28 = sphi 0, %s40
    %s29 = sphi 0, %s36
    %s30 = sphi 0, %s28
    %s31 = sphi 0, %s29
    %s32 = sphi 0, %s30
    %s33 = sphi 0, %s31
    %s43 = sphi 0, %s45
    %s46 = sphi 0, %s43
    %s47 = sphi 0, %s46
    %s63 = sphi 0, %s47
    %s69 = sphi 0, %s71
    %s72 = sphi 0, %s69
    %s73 = sphi 0, %s72
    %s89 = sphi 0, %s73
    %s95 = sphi 0, %s97
    %s98 = sphi 0, %s95
    %s99 = sphi 0, %s98
    %s115 = sphi 0, %s99
    %s121 = sphi 0, %s123
    %s124 = sphi 0, %s121
    %s125 = sphi 0, %s124
    %s141 = sphi 0, %s125
    %s147 = sphi 0, %s149
    %s150 = sphi 0, %s147
    %s151 = sphi 0, %s150
    %s167 = sphi 0, %s151
    %s173 = sphi 0, %s175
    %s176 = sphi 0, %s173
    %s177 = sphi 0, %s176
    %s193 = sphi 0, %s177
    %s199 = sphi 0, %s201
    %s202 = sphi 0, %s199
    %s203 = sphi 0, %s202
    %s219 = sphi 0, %s203
    %s225 = sphi 0, %s227
    %s228 = sphi 0, %s225
    %s229 = sphi 0, %s228
    %s245 = sphi 0, %s229
    %s251 = sphi 0, %s253
    %s254 = sphi 0, %s251
    %s255 = sphi 0, %s254
    %s271 = sphi 0, %s255
    %s277 = sphi 0, %s279
    %s280 = sphi 0, %s277
    %s281 = sphi 0, %s280
    %s297 = sphi 0, %s281
    %s303 = sphi 0, %s305
    %s306 = sphi 0, %s303
    %s307 = sphi 0, %s306
    %s323 = sphi 0, %s307
    %s329 = sphi 0, %s331
    %s332 = sphi 0, %s329
    %s333 = sphi 0, %s332
    %s349 = sphi 0, %s333
    %s355 = sphi 0, %s357
    %s358 = sphi 0, %s355
    %s359 = sphi 0, %s358
    %s375 = sphi 0, %s359
    %s379 = sphi 0, %s379
    %s381 = sphi 0, %s379
    %s382 = sphi 0, %s381
    %s396 = sphi 0, %s382
    %s400 = sphi 0, %s400
    %s402 = sphi 0, %s400
    %s403 = sphi 0, %s402
    %s417 = sphi 0, %s403
    %s423 = sphi 0, %s425
    %s426 = sphi 0, %s423
    %s427 = sphi 0, %s426
    %s443 = sphi 0, %s427
  $region4: #{vit_forward.3} parent=0 // loop_header_branch
    %24 = sbr.rel (%p22) target = $region8
  $region5: #{vit_forward.3} parent=0 // loop_body
    %s26 = ssub.s32 %s21, 1
    %s27 = ssub.s32 %s21, 2
    %s34 = sadd.s32 1, %s29
    %p35 = scmp.ge.s32.totalorder %s34, 2
    %s36 = scalar_select %p35, 0, %s34
    %s37 = sadd.s32 1, %s28
    %s38 = scalar_select %p35, %s37, %s28
    %p39 = scmp.ge.s32.totalorder %s38, 3
    %s40 = scalar_select %p39, 0, %s38
    %s41 = ssub.s32 %s28, %s40
    %p42 = scmp.eq.s32.totalorder %s41, 0
    %s44 = sadd.s32 %s43, 1
    %s45 = scalar_select %p42, %s43, %s44
    %p48 = pneg %p42
    %p49 = scmp.eq.s32.totalorder %s21, 5
    %p50 = por %p48, %p49
    %p51 = scmp.ne.s32.totalorder %s43, %s46
    %p52 = scmp.eq.s32.totalorder %s21, 0
    %p53 = por %p51, %p52
    %p54 = scmp.ne.s32.totalorder %s43, %s46
    %p55 = scmp.eq.s32.totalorder %s26, 5
    %p56 = por %p54, %p55
    %p57 = scmp.ne.s32.totalorder %s46, %s47
    %p58 = scmp.eq.s32.totalorder %s26, 0
    %p59 = por %p57, %p58
    %p60 = scmp.ne.s32.totalorder %s46, %s47
    %p61 = scmp.eq.s32.totalorder %s27, 5
    %p62 = por %p60, %p61
    %p64 = scmp.ne.s32.totalorder %s47, %s63
    %p65 = scmp.eq.s32.totalorder %s27, 0
    %p66 = por %p64, %p65
    %s67 = ssub.s32 %s29, %s36
    %p68 = scmp.eq.s32.totalorder %s67, 0
    %s70 = sadd.s32 %s69, 1
    %s71 = scalar_select %p68, %s69, %s70
    %p74 = pneg %p68
    %p75 = scmp.eq.s32.totalorder %s21, 5
    %p76 = por %p74, %p75
    %p77 = scmp.ne.s32.totalorder %s69, %s72
    %p78 = scmp.eq.s32.totalorder %s21, 0
    %p79 = por %p77, %p78
    %p80 = scmp.ne.s32.totalorder %s69, %s72
    %p81 = scmp.eq.s32.totalorder %s26, 5
    %p82 = por %p80, %p81
    %p83 = scmp.ne.s32.totalorder %s72, %s73
    %p84 = scmp.eq.s32.totalorder %s26, 0
    %p85 = por %p83, %p84
    %p86 = scmp.ne.s32.totalorder %s72, %s73
    %p87 = scmp.eq.s32.totalorder %s27, 5
    %p88 = por %p86, %p87
    %p90 = scmp.ne.s32.totalorder %s73, %s89
    %p91 = scmp.eq.s32.totalorder %s27, 0
    %p92 = por %p90, %p91
    %s93 = ssub.s32 %s29, %s36
    %p94 = scmp.eq.s32.totalorder %s93, 0
    %s96 = sadd.s32 %s95, 1
    %s97 = scalar_select %p94, %s95, %s96
    %p100 = pneg %p94
    %p101 = scmp.eq.s32.totalorder %s21, 5
    %p102 = por %p100, %p101
    %p103 = scmp.ne.s32.totalorder %s95, %s98
    %p104 = scmp.eq.s32.totalorder %s21, 0
    %p105 = por %p103, %p104
    %p106 = scmp.ne.s32.totalorder %s95, %s98
    %p107 = scmp.eq.s32.totalorder %s26, 5
    %p108 = por %p106, %p107
    %p109 = scmp.ne.s32.totalorder %s98, %s99
    %p110 = scmp.eq.s32.totalorder %s26, 0
    %p111 = por %p109, %p110
    %p112 = scmp.ne.s32.totalorder %s98, %s99
    %p113 = scmp.eq.s32.totalorder %s27, 5
    %p114 = por %p112, %p113
    %p116 = scmp.ne.s32.totalorder %s99, %s115
    %p117 = scmp.eq.s32.totalorder %s27, 0
    %p118 = por %p116, %p117
    %s119 = ssub.s32 %s29, %s36
    %p120 = scmp.eq.s32.totalorder %s119, 0
    %s122 = sadd.s32 %s121, 1
    %s123 = scalar_select %p120, %s121, %s122
    %p126 = pneg %p120
    %p127 = scmp.eq.s32.totalorder %s21, 5
    %p128 = por %p126, %p127
    %p129 = scmp.ne.s32.totalorder %s121, %s124
    %p130 = scmp.eq.s32.totalorder %s21, 0
    %p131 = por %p129, %p130
    %p132 = scmp.ne.s32.totalorder %s121, %s124
    %p133 = scmp.eq.s32.totalorder %s26, 5
    %p134 = por %p132, %p133
    %p135 = scmp.ne.s32.totalorder %s124, %s125
    %p136 = scmp.eq.s32.totalorder %s26, 0
    %p137 = por %p135, %p136
    %p138 = scmp.ne.s32.totalorder %s124, %s125
    %p139 = scmp.eq.s32.totalorder %s27, 5
    %p140 = por %p138, %p139
    %p142 = scmp.ne.s32.totalorder %s125, %s141
    %p143 = scmp.eq.s32.totalorder %s27, 0
    %p144 = por %p142, %p143
    %s145 = ssub.s32 %s29, %s36
    %p146 = scmp.eq.s32.totalorder %s145, 0
    %s148 = sadd.s32 %s147, 1
    %s149 = scalar_select %p146, %s147, %s148
    %p152 = pneg %p146
    %p153 = scmp.eq.s32.totalorder %s21, 5
    %p154 = por %p152, %p153
    %p155 = scmp.ne.s32.totalorder %s147, %s150
    %p156 = scmp.eq.s32.totalorder %s21, 0
    %p157 = por %p155, %p156
    %p158 = scmp.ne.s32.totalorder %s147, %s150
    %p159 = scmp.eq.s32.totalorder %s26, 5
    %p160 = por %p158, %p159
    %p161 = scmp.ne.s32.totalorder %s150, %s151
    %p162 = scmp.eq.s32.totalorder %s26, 0
    %p163 = por %p161, %p162
    %p164 = scmp.ne.s32.totalorder %s150, %s151
    %p165 = scmp.eq.s32.totalorder %s27, 5
    %p166 = por %p164, %p165
    %p168 = scmp.ne.s32.totalorder %s151, %s167
    %p169 = scmp.eq.s32.totalorder %s27, 0
    %p170 = por %p168, %p169
    %s171 = ssub.s32 %s29, %s36
    %p172 = scmp.eq.s32.totalorder %s171, 0
    %s174 = sadd.s32 %s173, 1
    %s175 = scalar_select %p172, %s173, %s174
    %p178 = pneg %p172
    %p179 = scmp.eq.s32.totalorder %s21, 5
    %p180 = por %p178, %p179
    %p181 = scmp.ne.s32.totalorder %s173, %s176
    %p182 = scmp.eq.s32.totalorder %s21, 0
    %p183 = por %p181, %p182
    %p184 = scmp.ne.s32.totalorder %s173, %s176
    %p185 = scmp.eq.s32.totalorder %s26, 5
    %p186 = por %p184, %p185
    %p187 = scmp.ne.s32.totalorder %s176, %s177
    %p188 = scmp.eq.s32.totalorder %s26, 0
    %p189 = por %p187, %p188
    %p190 = scmp.ne.s32.totalorder %s176, %s177
    %p191 = scmp.eq.s32.totalorder %s27, 5
    %p192 = por %p190, %p191
    %p194 = scmp.ne.s32.totalorder %s177, %s193
    %p195 = scmp.eq.s32.totalorder %s27, 0
    %p196 = por %p194, %p195
    %s197 = ssub.s32 %s29, %s36
    %p198 = scmp.eq.s32.totalorder %s197, 0
    %s200 = sadd.s32 %s199, 1
    %s201 = scalar_select %p198, %s199, %s200
    %p204 = pneg %p198
    %p205 = scmp.eq.s32.totalorder %s21, 5
    %p206 = por %p204, %p205
    %p207 = scmp.ne.s32.totalorder %s199, %s202
    %p208 = scmp.eq.s32.totalorder %s21, 0
    %p209 = por %p207, %p208
    %p210 = scmp.ne.s32.totalorder %s199, %s202
    %p211 = scmp.eq.s32.totalorder %s26, 5
    %p212 = por %p210, %p211
    %p213 = scmp.ne.s32.totalorder %s202, %s203
    %p214 = scmp.eq.s32.totalorder %s26, 0
    %p215 = por %p213, %p214
    %p216 = scmp.ne.s32.totalorder %s202, %s203
    %p217 = scmp.eq.s32.totalorder %s27, 5
    %p218 = por %p216, %p217
    %p220 = scmp.ne.s32.totalorder %s203, %s219
    %p221 = scmp.eq.s32.totalorder %s27, 0
    %p222 = por %p220, %p221
    %s223 = ssub.s32 %s29, %s36
    %p224 = scmp.eq.s32.totalorder %s223, 0
    %s226 = sadd.s32 %s225, 1
    %s227 = scalar_select %p224, %s225, %s226
    %p230 = pneg %p224
    %p231 = scmp.eq.s32.totalorder %s21, 5
    %p232 = por %p230, %p231
    %p233 = scmp.ne.s32.totalorder %s225, %s228
    %p234 = scmp.eq.s32.totalorder %s21, 0
    %p235 = por %p233, %p234
    %p236 = scmp.ne.s32.totalorder %s225, %s228
    %p237 = scmp.eq.s32.totalorder %s26, 5
    %p238 = por %p236, %p237
    %p239 = scmp.ne.s32.totalorder %s228, %s229
    %p240 = scmp.eq.s32.totalorder %s26, 0
    %p241 = por %p239, %p240
    %p242 = scmp.ne.s32.totalorder %s228, %s229
    %p243 = scmp.eq.s32.totalorder %s27, 5
    %p244 = por %p242, %p243
    %p246 = scmp.ne.s32.totalorder %s229, %s245
    %p247 = scmp.eq.s32.totalorder %s27, 0
    %p248 = por %p246, %p247
    %s249 = ssub.s32 %s29, %s36
    %p250 = scmp.eq.s32.totalorder %s249, 0
    %s252 = sadd.s32 %s251, 1
    %s253 = scalar_select %p250, %s251, %s252
    %p256 = pneg %p250
    %p257 = scmp.eq.s32.totalorder %s21, 5
    %p258 = por %p256, %p257
    %p259 = scmp.ne.s32.totalorder %s251, %s254
    %p260 = scmp.eq.s32.totalorder %s21, 0
    %p261 = por %p259, %p260
    %p262 = scmp.ne.s32.totalorder %s251, %s254
    %p263 = scmp.eq.s32.totalorder %s26, 5
    %p264 = por %p262, %p263
    %p265 = scmp.ne.s32.totalorder %s254, %s255
    %p266 = scmp.eq.s32.totalorder %s26, 0
    %p267 = por %p265, %p266
    %p268 = scmp.ne.s32.totalorder %s254, %s255
    %p269 = scmp.eq.s32.totalorder %s27, 5
    %p270 = por %p268, %p269
    %p272 = scmp.ne.s32.totalorder %s255, %s271
    %p273 = scmp.eq.s32.totalorder %s27, 0
    %p274 = por %p272, %p273
    %s275 = ssub.s32 %s29, %s36
    %p276 = scmp.eq.s32.totalorder %s275, 0
    %s278 = sadd.s32 %s277, 1
    %s279 = scalar_select %p276, %s277, %s278
    %p282 = pneg %p276
    %p283 = scmp.eq.s32.totalorder %s21, 5
    %p284 = por %p282, %p283
    %p285 = scmp.ne.s32.totalorder %s277, %s280
    %p286 = scmp.eq.s32.totalorder %s21, 0
    %p287 = por %p285, %p286
    %p288 = scmp.ne.s32.totalorder %s277, %s280
    %p289 = scmp.eq.s32.totalorder %s26, 5
    %p290 = por %p288, %p289
    %p291 = scmp.ne.s32.totalorder %s280, %s281
    %p292 = scmp.eq.s32.totalorder %s26, 0
    %p293 = por %p291, %p292
    %p294 = scmp.ne.s32.totalorder %s280, %s281
    %p295 = scmp.eq.s32.totalorder %s27, 5
    %p296 = por %p294, %p295
    %p298 = scmp.ne.s32.totalorder %s281, %s297
    %p299 = scmp.eq.s32.totalorder %s27, 0
    %p300 = por %p298, %p299
    %s301 = ssub.s32 %s29, %s36
    %p302 = scmp.eq.s32.totalorder %s301, 0
    %s304 = sadd.s32 %s303, 1
    %s305 = scalar_select %p302, %s303, %s304
    %p308 = pneg %p302
    %p309 = scmp.eq.s32.totalorder %s21, 5
    %p310 = por %p308, %p309
    %p311 = scmp.ne.s32.totalorder %s303, %s306
    %p312 = scmp.eq.s32.totalorder %s21, 0
    %p313 = por %p311, %p312
    %p314 = scmp.ne.s32.totalorder %s303, %s306
    %p315 = scmp.eq.s32.totalorder %s26, 5
    %p316 = por %p314, %p315
    %p317 = scmp.ne.s32.totalorder %s306, %s307
    %p318 = scmp.eq.s32.totalorder %s26, 0
    %p319 = por %p317, %p318
    %p320 = scmp.ne.s32.totalorder %s306, %s307
    %p321 = scmp.eq.s32.totalorder %s27, 5
    %p322 = por %p320, %p321
    %p324 = scmp.ne.s32.totalorder %s307, %s323
    %p325 = scmp.eq.s32.totalorder %s27, 0
    %p326 = por %p324, %p325
    %s327 = ssub.s32 %s29, %s36
    %p328 = scmp.eq.s32.totalorder %s327, 0
    %s330 = sadd.s32 %s329, 1
    %s331 = scalar_select %p328, %s329, %s330
    %p334 = pneg %p328
    %p335 = scmp.eq.s32.totalorder %s21, 5
    %p336 = por %p334, %p335
    %p337 = scmp.ne.s32.totalorder %s329, %s332
    %p338 = scmp.eq.s32.totalorder %s21, 0
    %p339 = por %p337, %p338
    %p340 = scmp.ne.s32.totalorder %s329, %s332
    %p341 = scmp.eq.s32.totalorder %s26, 5
    %p342 = por %p340, %p341
    %p343 = scmp.ne.s32.totalorder %s332, %s333
    %p344 = scmp.eq.s32.totalorder %s26, 0
    %p345 = por %p343, %p344
    %p346 = scmp.ne.s32.totalorder %s332, %s333
    %p347 = scmp.eq.s32.totalorder %s27, 5
    %p348 = por %p346, %p347
    %p350 = scmp.ne.s32.totalorder %s333, %s349
    %p351 = scmp.eq.s32.totalorder %s27, 0
    %p352 = por %p350, %p351
    %s353 = ssub.s32 %s29, %s36
    %p354 = scmp.eq.s32.totalorder %s353, 0
    %s356 = sadd.s32 %s355, 1
    %s357 = scalar_select %p354, %s355, %s356
    %p360 = pneg %p354
    %p361 = scmp.eq.s32.totalorder %s21, 5
    %p362 = por %p360, %p361
    %p363 = scmp.ne.s32.totalorder %s355, %s358
    %p364 = scmp.eq.s32.totalorder %s21, 0
    %p365 = por %p363, %p364
    %p366 = scmp.ne.s32.totalorder %s355, %s358
    %p367 = scmp.eq.s32.totalorder %s26, 5
    %p368 = por %p366, %p367
    %p369 = scmp.ne.s32.totalorder %s358, %s359
    %p370 = scmp.eq.s32.totalorder %s26, 0
    %p371 = por %p369, %p370
    %p372 = scmp.ne.s32.totalorder %s358, %s359
    %p373 = scmp.eq.s32.totalorder %s27, 5
    %p374 = por %p372, %p373
    %p376 = scmp.ne.s32.totalorder %s359, %s375
    %p377 = scmp.eq.s32.totalorder %s27, 0
    %p378 = por %p376, %p377
    %s380 = sadd.s32 %s379, 1
    %p383 = scmp.eq.s32.totalorder %s21, 5
    %p384 = scmp.ne.s32.totalorder %s379, %s381
    %p385 = scmp.eq.s32.totalorder %s21, 0
    %p386 = por %p384, %p385
    %p387 = scmp.ne.s32.totalorder %s379, %s381
    %p388 = scmp.eq.s32.totalorder %s26, 5
    %p389 = por %p387, %p388
    %p390 = scmp.ne.s32.totalorder %s381, %s382
    %p391 = scmp.eq.s32.totalorder %s26, 0
    %p392 = por %p390, %p391
    %p393 = scmp.ne.s32.totalorder %s381, %s382
    %p394 = scmp.eq.s32.totalorder %s27, 5
    %p395 = por %p393, %p394
    %p397 = scmp.ne.s32.totalorder %s382, %s396
    %p398 = scmp.eq.s32.totalorder %s27, 0
    %p399 = por %p397, %p398
    %s401 = sadd.s32 %s400, 1
    %p404 = scmp.eq.s32.totalorder %s21, 5
    %p405 = scmp.ne.s32.totalorder %s400, %s402
    %p406 = scmp.eq.s32.totalorder %s21, 0
    %p407 = por %p405, %p406
    %p408 = scmp.ne.s32.totalorder %s400, %s402
    %p409 = scmp.eq.s32.totalorder %s26, 5
    %p410 = por %p408, %p409
    %p411 = scmp.ne.s32.totalorder %s402, %s403
    %p412 = scmp.eq.s32.totalorder %s26, 0
    %p413 = por %p411, %p412
    %p414 = scmp.ne.s32.totalorder %s402, %s403
    %p415 = scmp.eq.s32.totalorder %s27, 5
    %p416 = por %p414, %p415
    %p418 = scmp.ne.s32.totalorder %s403, %s417
    %p419 = scmp.eq.s32.totalorder %s27, 0
    %p420 = por %p418, %p419
    %s421 = ssub.s32 %s28, %s40
    %p422 = scmp.eq.s32.totalorder %s421, 0
    %s424 = sadd.s32 %s423, 1
    %s425 = scalar_select %p422, %s423, %s424
    %p428 = pneg %p422
    %p429 = scmp.eq.s32.totalorder %s21, 5
    %p430 = por %p428, %p429
    %p431 = scmp.ne.s32.totalorder %s423, %s426
    %p432 = scmp.eq.s32.totalorder %s21, 0
    %p433 = por %p431, %p432
    %p434 = scmp.ne.s32.totalorder %s423, %s426
    %p435 = scmp.eq.s32.totalorder %s26, 5
    %p436 = por %p434, %p435
    %p437 = scmp.ne.s32.totalorder %s426, %s427
    %p438 = scmp.eq.s32.totalorder %s26, 0
    %p439 = por %p437, %p438
    %p440 = scmp.ne.s32.totalorder %s426, %s427
    %p441 = scmp.eq.s32.totalorder %s27, 5
    %p442 = por %p440, %p441
    %p444 = scmp.ne.s32.totalorder %s427, %s443
    %p445 = scmp.eq.s32.totalorder %s27, 0
    %p446 = por %p444, %p445
    %p447 = scmp.le.s32.totalorder 1, %s21
    %p448 = scmp.lt.s32.totalorder %s21, 7
    %p449 = pnand %p447, %p448
    %p450 = pneg %p449
    // Predicated region
    $region9: #{vit_forward.3} parent=5 // pred_check
      _
    $region10: #{vit_forward.3} parent=5 // pred_check_branch
      %452 = sbr.rel (%p449) target = $region12
    $region11: #{vit_forward.3} parent=5 // pred_region
      %s453 = ssub.s32 %s21, 1
      // Predicated region
      $region13: #{vit_forward.3} parent=11 // pred_check
        %p454 = pneg %p392
      $region14: #{vit_forward.3} parent=11 // pred_check_branch
        %456 = sbr.rel (%p454) target = $region16
      $region15: #{vit_forward.3} parent=11 // pred_region
        _
      $region16: #{vit_forward.3} parent=11 // pred_fallthru
        _
      // Predicated region
      $region17: #{vit_forward.3} parent=11 // pred_check
        %p457 = pneg %p413
      $region18: #{vit_forward.3} parent=11 // pred_check_branch
        %459 = sbr.rel (%p457) target = $region20
      $region19: #{vit_forward.3} parent=11 // pred_region
        _
      $region20: #{vit_forward.3} parent=11 // pred_fallthru
        _
    $region12: #{vit_forward.3} parent=5 // pred_fallthru
      _
    %p460 = scmp.lt.s32.totalorder %s21, 6
    // Predicated region
    $region21: #{vit_forward.3} parent=5 // pred_check
      %p461 = pneg %p460
    $region22: #{vit_forward.3} parent=5 // pred_check_branch
      %463 = sbr.rel (%p461) target = $region24
    $region23: #{vit_forward.3} parent=5 // pred_region
      // Predicated region
      $region25: #{vit_forward.3} parent=23 // pred_check
        %p464 = pneg %p53
      $region26: #{vit_forward.3} parent=23 // pred_check_branch
        %466 = sbr.rel (%p464) target = $region28
      $region27: #{vit_forward.3} parent=23 // pred_region
        %s467 = smul.u32 2, %s28
        %p468 = scmp.lt.s32.totalorder %s467, 5
        %s469 = scalar_select %p468, %s467, 5
        %s470 = smul.addr %s469, 8
        %s471 = scalar_lea.vmem %s0, %s470
        %s472 = smul.u32 2, %s28
      $region28: #{vit_forward.3} parent=23 // pred_fallthru
        _
      // Predicated region
      $region29: #{vit_forward.3} parent=23 // pred_check
        %p473 = pneg %p79
      $region30: #{vit_forward.3} parent=23 // pred_check_branch
        %475 = sbr.rel (%p473) target = $region32
      $region31: #{vit_forward.3} parent=23 // pred_region
        %p476 = scmp.lt.s32.totalorder %s29, 1
        %s477 = scalar_select %p476, %s29, 1
        %s478 = smul.addr %s477, 4
        %s479 = smul.addr %s478, 4
        %s480 = scalar_lea.vmem %s1, %s479
      $region32: #{vit_forward.3} parent=23 // pred_fallthru
        _
      // Predicated region
      $region33: #{vit_forward.3} parent=23 // pred_check
        %p481 = pneg %p105
      $region34: #{vit_forward.3} parent=23 // pred_check_branch
        %483 = sbr.rel (%p481) target = $region36
      $region35: #{vit_forward.3} parent=23 // pred_region
        %p484 = scmp.lt.s32.totalorder %s29, 1
        %s485 = scalar_select %p484, %s29, 1
        %s486 = scalar_lea.vmem %s2, %s485
      $region36: #{vit_forward.3} parent=23 // pred_fallthru
        _
      // Predicated region
      $region37: #{vit_forward.3} parent=23 // pred_check
        %p487 = pneg %p131
      $region38: #{vit_forward.3} parent=23 // pred_check_branch
        %489 = sbr.rel (%p487) target = $region40
      $region39: #{vit_forward.3} parent=23 // pred_region
        %p490 = scmp.lt.s32.totalorder %s29, 1
        %s491 = scalar_select %p490, %s29, 1
        %s492 = smul.addr %s491, 4
        %s493 = smul.addr %s492, 4
        %s494 = scalar_lea.vmem %s3, %s493
      $region40: #{vit_forward.3} parent=23 // pred_fallthru
        _
      // Predicated region
      $region41: #{vit_forward.3} parent=23 // pred_check
        %p495 = pneg %p157
      $region42: #{vit_forward.3} parent=23 // pred_check_branch
        %497 = sbr.rel (%p495) target = $region44
      $region43: #{vit_forward.3} parent=23 // pred_region
        %p498 = scmp.lt.s32.totalorder %s29, 1
        %s499 = scalar_select %p498, %s29, 1
        %s500 = scalar_lea.vmem %s4, %s499
      $region44: #{vit_forward.3} parent=23 // pred_fallthru
        _
      // Predicated region
      $region45: #{vit_forward.3} parent=23 // pred_check
        %p501 = pneg %p183
      $region46: #{vit_forward.3} parent=23 // pred_check_branch
        %503 = sbr.rel (%p501) target = $region48
      $region47: #{vit_forward.3} parent=23 // pred_region
        %p504 = scmp.lt.s32.totalorder %s29, 1
        %s505 = scalar_select %p504, %s29, 1
        %s506 = smul.addr %s505, 4
        %s507 = smul.addr %s506, 4
        %s508 = scalar_lea.vmem %s5, %s507
      $region48: #{vit_forward.3} parent=23 // pred_fallthru
        _
      // Predicated region
      $region49: #{vit_forward.3} parent=23 // pred_check
        %p509 = pneg %p209
      $region50: #{vit_forward.3} parent=23 // pred_check_branch
        %511 = sbr.rel (%p509) target = $region52
      $region51: #{vit_forward.3} parent=23 // pred_region
        %p512 = scmp.lt.s32.totalorder %s29, 1
        %s513 = scalar_select %p512, %s29, 1
        %s514 = scalar_lea.vmem %s6, %s513
      $region52: #{vit_forward.3} parent=23 // pred_fallthru
        _
      // Predicated region
      $region53: #{vit_forward.3} parent=23 // pred_check
        %p515 = pneg %p235
      $region54: #{vit_forward.3} parent=23 // pred_check_branch
        %517 = sbr.rel (%p515) target = $region56
      $region55: #{vit_forward.3} parent=23 // pred_region
        %p518 = scmp.lt.s32.totalorder %s29, 1
        %s519 = scalar_select %p518, %s29, 1
        %s520 = smul.addr %s519, 16
        %s521 = smul.addr %s520, 4
        %s522 = scalar_lea.vmem %s7, %s521
      $region56: #{vit_forward.3} parent=23 // pred_fallthru
        _
      // Predicated region
      $region57: #{vit_forward.3} parent=23 // pred_check
        %p523 = pneg %p261
      $region58: #{vit_forward.3} parent=23 // pred_check_branch
        %525 = sbr.rel (%p523) target = $region60
      $region59: #{vit_forward.3} parent=23 // pred_region
        %p526 = scmp.lt.s32.totalorder %s29, 1
        %s527 = scalar_select %p526, %s29, 1
        %s528 = scalar_lea.vmem %s8, %s527
      $region60: #{vit_forward.3} parent=23 // pred_fallthru
        _
      // Predicated region
      $region61: #{vit_forward.3} parent=23 // pred_check
        %p529 = pneg %p287
      $region62: #{vit_forward.3} parent=23 // pred_check_branch
        %531 = sbr.rel (%p529) target = $region64
      $region63: #{vit_forward.3} parent=23 // pred_region
        %p532 = scmp.lt.s32.totalorder %s29, 1
        %s533 = scalar_select %p532, %s29, 1
        %s534 = scalar_lea.vmem %s9, %s533
      $region64: #{vit_forward.3} parent=23 // pred_fallthru
        _
      // Predicated region
      $region65: #{vit_forward.3} parent=23 // pred_check
        %p535 = pneg %p313
      $region66: #{vit_forward.3} parent=23 // pred_check_branch
        %537 = sbr.rel (%p535) target = $region68
      $region67: #{vit_forward.3} parent=23 // pred_region
        %p538 = scmp.lt.s32.totalorder %s29, 1
        %s539 = scalar_select %p538, %s29, 1
        %s540 = scalar_lea.vmem %s10, %s539
      $region68: #{vit_forward.3} parent=23 // pred_fallthru
        _
      // Predicated region
      $region69: #{vit_forward.3} parent=23 // pred_check
        %p541 = pneg %p339
      $region70: #{vit_forward.3} parent=23 // pred_check_branch
        %543 = sbr.rel (%p541) target = $region72
      $region71: #{vit_forward.3} parent=23 // pred_region
        %p544 = scmp.lt.s32.totalorder %s29, 1
        %s545 = scalar_select %p544, %s29, 1
        %s546 = scalar_lea.vmem %s11, %s545
      $region72: #{vit_forward.3} parent=23 // pred_fallthru
        _
      // Predicated region
      $region73: #{vit_forward.3} parent=23 // pred_check
        %p547 = pneg %p365
      $region74: #{vit_forward.3} parent=23 // pred_check_branch
        %549 = sbr.rel (%p547) target = $region76
      $region75: #{vit_forward.3} parent=23 // pred_region
        %p550 = scmp.lt.s32.totalorder %s29, 1
        %s551 = scalar_select %p550, %s29, 1
        %s552 = scalar_lea.vmem %s12, %s551
      $region76: #{vit_forward.3} parent=23 // pred_fallthru
        _
    $region24: #{vit_forward.3} parent=5 // pred_fallthru
      _
    %p553 = scmp.le.s32.totalorder 1, %s21
    %p554 = scmp.lt.s32.totalorder %s21, 7
    %p555 = pnand %p553, %p554
    %p556 = pneg %p555
    // Predicated region
    $region77: #{vit_forward.3} parent=5 // pred_check
      _
    $region78: #{vit_forward.3} parent=5 // pred_check_branch
      %558 = sbr.rel (%p555) target = $region80
    $region79: #{vit_forward.3} parent=5 // pred_region
      %s559 = ssub.s32 %s21, 1
      %s560 = smul.u32 2, %s30
      %p561 = scmp.lt.s32.totalorder %s560, 5
      %s562 = scalar_select %p561, %s560, 5
      %s563 = smul.addr %s562, 8
      %s564 = scalar_lea.vmem %s0, %s563
      %p565 = pneg %p59
      %p566 = pneg %p56
      %p567 = scmp.lt.s32.totalorder %s31, 1
      %s568 = scalar_select %p567, %s31, 1
      %s569 = smul.addr %s568, 4
      %s570 = smul.addr %s569, 4
      %s571 = scalar_lea.vmem %s1, %s570
      %p572 = pneg %p85
      %p573 = pneg %p82
      %p574 = scmp.lt.s32.totalorder %s31, 1
      %s575 = scalar_select %p574, %s31, 1
      %s576 = scalar_lea.vmem %s2, %s575
      %p577 = pneg %p111
      %p578 = pneg %p108
      %p579 = scmp.lt.s32.totalorder %s31, 1
      %s580 = scalar_select %p579, %s31, 1
      %s581 = smul.addr %s580, 4
      %s582 = smul.addr %s581, 4
      %s583 = scalar_lea.vmem %s3, %s582
      %p584 = pneg %p137
      %p585 = pneg %p134
      %p586 = scmp.lt.s32.totalorder %s31, 1
      %s587 = scalar_select %p586, %s31, 1
      %s588 = scalar_lea.vmem %s4, %s587
      %p589 = pneg %p163
      %p590 = pneg %p160
      %p591 = scmp.lt.s32.totalorder %s31, 1
      %s592 = scalar_select %p591, %s31, 1
      %s593 = smul.addr %s592, 4
      %s594 = smul.addr %s593, 4
      %s595 = scalar_lea.vmem %s5, %s594
      %p596 = pneg %p189
      %p597 = pneg %p186
      %p598 = scmp.lt.s32.totalorder %s31, 1
      %s599 = scalar_select %p598, %s31, 1
      %s600 = scalar_lea.vmem %s6, %s599
      %p601 = pneg %p215
      %p602 = pneg %p212
      %p603 = scmp.lt.s32.totalorder %s31, 1
      %s604 = scalar_select %p603, %s31, 1
      %s605 = smul.addr %s604, 16
      %s606 = smul.addr %s605, 4
      %s607 = scalar_lea.vmem %s7, %s606
      %p608 = pneg %p241
      %p609 = pneg %p238
      %p610 = scmp.lt.s32.totalorder %s31, 1
      %s611 = scalar_select %p610, %s31, 1
      %s612 = scalar_lea.vmem %s8, %s611
      %p613 = pneg %p267
      %p614 = pneg %p264
      %p615 = scmp.lt.s32.totalorder %s31, 1
      %s616 = scalar_select %p615, %s31, 1
      %s617 = scalar_lea.vmem %s9, %s616
      %p618 = pneg %p293
      %p619 = pneg %p290
      %p620 = scmp.lt.s32.totalorder %s31, 1
      %s621 = scalar_select %p620, %s31, 1
      %s622 = scalar_lea.vmem %s10, %s621
      %p623 = pneg %p319
      %p624 = pneg %p316
      %p625 = scmp.lt.s32.totalorder %s31, 1
      %s626 = scalar_select %p625, %s31, 1
      %s627 = scalar_lea.vmem %s11, %s626
      %p628 = pneg %p345
      %p629 = pneg %p342
      %p630 = scmp.lt.s32.totalorder %s31, 1
      %s631 = scalar_select %p630, %s31, 1
      %s632 = scalar_lea.vmem %s12, %s631
      %p633 = pneg %p371
      %p634 = pneg %p368
      %p635 = pneg %p392
      %p636 = pneg %p389
      %p637 = pneg %p413
      %p638 = pneg %p410
      %p639 = pneg %p439
      %p640 = pneg %p436
      %s641 = smul.u32 2, %s30
      %p642 = scmp.lt.s32.totalorder %s641, 5
      %s643 = scalar_select %p642, %s641, 5
      %s644 = smul.addr %s643, 8
      %s645 = scalar_lea.vmem %s15, %s644
      %s646 = smul.u32 2, %s30
      %p647 = scmp.lt.s32.totalorder %s646, 5
      %s648 = scalar_select %p647, %s646, 5
      %s649 = smul.addr %s648, 8
      %s650 = scalar_lea.vmem %s0, %s649
      %s651 = smul.u32 2, %s30
      %p652 = scmp.lt.s32.totalorder %s31, 1
      %s653 = scalar_select %p652, %s31, 1
      %s654 = smul.addr %s653, 4
      %s655 = smul.addr %s654, 4
      %s656 = scalar_lea.vmem %s1, %s655
      %p657 = scmp.lt.s32.totalorder %s31, 1
      %s658 = scalar_select %p657, %s31, 1
      %s659 = scalar_lea.vmem %s2, %s658
      %p660 = scmp.lt.s32.totalorder %s31, 1
      %s661 = scalar_select %p660, %s31, 1
      %s662 = smul.addr %s661, 4
      %s663 = smul.addr %s662, 4
      %s664 = scalar_lea.vmem %s3, %s663
      %p665 = scmp.lt.s32.totalorder %s31, 1
      %s666 = scalar_select %p665, %s31, 1
      %s667 = scalar_lea.vmem %s4, %s666
      %p668 = scmp.lt.s32.totalorder %s31, 1
      %s669 = scalar_select %p668, %s31, 1
      %s670 = smul.addr %s669, 4
      %s671 = smul.addr %s670, 4
      %s672 = scalar_lea.vmem %s5, %s671
      %p673 = scmp.lt.s32.totalorder %s31, 1
      %s674 = scalar_select %p673, %s31, 1
      %s675 = scalar_lea.vmem %s6, %s674
      %p676 = scmp.lt.s32.totalorder %s31, 1
      %s677 = scalar_select %p676, %s31, 1
      %s678 = smul.addr %s677, 16
      %s679 = smul.addr %s678, 4
      %s680 = scalar_lea.vmem %s7, %s679
      %p681 = scmp.lt.s32.totalorder %s31, 1
      %s682 = scalar_select %p681, %s31, 1
      %s683 = scalar_lea.vmem %s8, %s682
      %p684 = scmp.lt.s32.totalorder %s31, 1
      %s685 = scalar_select %p684, %s31, 1
      %s686 = scalar_lea.vmem %s9, %s685
      %p687 = scmp.lt.s32.totalorder %s31, 1
      %s688 = scalar_select %p687, %s31, 1
      %s689 = scalar_lea.vmem %s10, %s688
      %p690 = scmp.lt.s32.totalorder %s31, 1
      %s691 = scalar_select %p690, %s31, 1
      %s692 = scalar_lea.vmem %s11, %s691
      %p693 = scmp.lt.s32.totalorder %s31, 1
      %s694 = scalar_select %p693, %s31, 1
      %s695 = scalar_lea.vmem %s12, %s694
      %s696 = smul.u32 2, %s30
      %p697 = scmp.lt.s32.totalorder %s696, 5
      %s698 = scalar_select %p697, %s696, 5
      %s699 = smul.addr %s698, 8
      %s700 = scalar_lea.vmem %s15, %s699
      %s701 = smul.u32 2, %s30
      %p703 = scmp.eq.s32.totalorder %s31, 0
      // Predicated region
      $region81: #{vit_forward.3} parent=79 // pred_check
        %p704 = pneg %p703
      $region82: #{vit_forward.3} parent=79 // pred_check_branch
        %706 = sbr.rel (%p704) target = $region84
      $region83: #{vit_forward.3} parent=79 // pred_region
        %v707 = vld [vmem:[%s650] sm:$0xff]
        %v708 = vld [vmem:[%s650 + $0x8] sm:$0xff]
        %vm709 = vcmask 261120
        %710 = vst.msk [vmem:[%s700] sm:$0xff] %vm709, %v707
        %711 = vst.msk [vmem:[%s700 + $0x8] sm:$0xff] %vm709, %v708
      $region84: #{vit_forward.3} parent=79 // pred_fallthru
        _
      %v712 = vld [vmem:[%s700] sm:$0xff]
      %v713 = vld [vmem:[%s700 + $0x8] sm:$0xff]
      %v714 = vpack.c.bf16 %v713, %v712
      %v715 = vld [vmem:[%s656] sm:$0xf]
      %v716 = vld [vmem:[%s656 + $0x4] sm:$0xf]
      %v717 = vld [vmem:[%s656 + $0x8] sm:$0xf]
      %v718 = vld [vmem:[%s656 + $0xc] sm:$0xf]
      %v719 = vld [vmem:[%s659] sm:$0x1]
      %v721 = vperm.slane %v719, 0
      %v727 = vunpack.c.l.b16 %v715
      %v728 = vunpack.c.l.b16 %v716
      %v729 = vunpack.c.l.b16 %v717
      %v730 = vunpack.c.l.b16 %v718
      %v731 = vpack.c.b16 %v728, %v727
      %v732 = vpack.c.b16 %v730, %v729
      %vm735 = vcmask 261120
      %v737 = vsel %vm735, %v714, 0
      %739 = vmatpush.bf16.msra.mxu0 0
      %740 = vmatpush.bf16.msra.mxu0 0
      %741 = vmatpush.bf16.msra.mxu0 0
      %742 = vmatpush.bf16.msra.mxu0 0
      %743 = vmatpush.bf16.msra.mxu0 0
      %744 = vmatpush.bf16.msra.mxu0 0
      %745 = vmatpush.bf16.msra.mxu0 %v732
      %746 = vmatpush.bf16.msra.mxu0 %v731
      %747 = vmatmul.bf16.gmra.mxu0 %v737
      %v748 = vpop.f32.mrf.mxu0
      %v749 = vadd.f32 %v721, %v748
      %v750 = vpop.f32.mrf.mxu0
      %v751 = vadd.f32 %v721, %v750
      %752 = vdwg.mxu0
      %v753 = vmul.f32 %v749, 0.35355338
      %v754 = vmul.f32 %v751, 0.35355338
      %v755 = vpack.c.bf16 %v753, %v753
      %v756 = vpack.c.bf16 %v754, %v754
      %v759 = vrot.slane %v755, 3
      %v760 = vrot.slane %v756, 3
      %vm761 = vcmask 1040384
      %v764 = vsel %vm761, %v755, %v759
      %vm765 = vcmask 1041409
      %v766 = vsel %vm765, %v755, %v759
      %v768 = vrot.slane %v766, 1
      %vm769 = vcmask 1042434
      %v770 = vsel %vm769, %v755, %v759
      %v772 = vrot.slane %v770, 2
      %vm773 = vcmask 1043459
      %v774 = vsel %vm773, %v755, %v759
      %v776 = vrot.slane %v774, 3
      %v779 = vsel %vm761, %v756, %v760
      %v780 = vsel %vm765, %v756, %v760
      %v782 = vrot.slane %v780, 1
      %v783 = vsel %vm769, %v756, %v760
      %v785 = vrot.slane %v783, 2
      %v786 = vsel %vm773, %v756, %v760
      %v788 = vrot.slane %v786, 3
      %v789 = vpack.c.bf16 %v749, %v749
      %v790 = vpack.c.bf16 %v751, %v751
      %v793 = vrot.slane %v789, 3
      %v794 = vrot.slane %v790, 3
      %v797 = vsel %vm761, %v789, %v793
      %v798 = vsel %vm765, %v789, %v793
      %v800 = vrot.slane %v798, 1
      %v801 = vsel %vm769, %v789, %v793
      %v803 = vrot.slane %v801, 2
      %v804 = vsel %vm773, %v789, %v793
      %v806 = vrot.slane %v804, 3
      %v809 = vsel %vm761, %v790, %v794
      %v810 = vsel %vm765, %v790, %v794
      %v812 = vrot.slane %v810, 1
      %v813 = vsel %vm769, %v790, %v794
      %v815 = vrot.slane %v813, 2
      %v816 = vsel %vm773, %v790, %v794
      %v818 = vrot.slane %v816, 3
      %819 = vst [vmem:[#allocation1] ss:$9 sm:$0xff] %v797
      %v820 = vld [vmem:[#allocation1] sm:$0xff]
      %822 = vrot.lane.b32.xlu0 %v820, 96
      %v823 = vpop.permute.xlu0 %822
      %vm824 = vcmask 64512
      %v825 = vsel %vm824, %v764, 0
      %v828 = vsel %vm824, %v823, 0
      %830 = vmatpush.bf16.xpose.msra.mxu0 0
      %831 = vmatpush.bf16.xpose.msra.mxu0 0
      %832 = vmatpush.bf16.xpose.msra.mxu0 0
      %833 = vmatpush.bf16.xpose.msra.mxu0 0
      %834 = vmatpush.bf16.xpose.msra.mxu0 0
      %835 = vmatpush.bf16.xpose.msra.mxu0 0
      %836 = vmatpush.bf16.xpose.msra.mxu0 0
      %837 = vmatpush.bf16.xpose.msra.mxu0 %v828
      %838 = vmatmul.bf16.gmra.mxu0 %v825
      %v839 = vpop.f32.mrf.mxu0
      %v840 = vadd.f32 0.0, %v839
      %v841 = vpop.f32.mrf.mxu0
      %842 = vdwg.mxu0
      %844 = vst [vmem:[#allocation1] ss:$9 sm:$0xff] %v800
      %v845 = vld [vmem:[#allocation1] sm:$0xff]
      %847 = vrot.lane.b32.xlu0 %v845, 96
      %v848 = vpop.permute.xlu0 %847
      %v850 = vsel %vm824, %v768, 0
      %v853 = vsel %vm824, %v848, 0
      %855 = vmatpush.bf16.xpose.msra.mxu0 0
      %856 = vmatpush.bf16.xpose.msra.mxu0 0
      %857 = vmatpush.bf16.xpose.msra.mxu0 0
      %858 = vmatpush.bf16.xpose.msra.mxu0 0
      %859 = vmatpush.bf16.xpose.msra.mxu0 0
      %860 = vmatpush.bf16.xpose.msra.mxu0 0
      %861 = vmatpush.bf16.xpose.msra.mxu0 0
      %862 = vmatpush.bf16.xpose.msra.mxu0 %v853
      %863 = vmatmul.bf16.gmra.mxu0 %v850
      %v864 = vpop.f32.mrf.mxu0
      %v865 = vadd.f32 0.0, %v864
      %v866 = vpop.f32.mrf.mxu0
      %867 = vdwg.mxu0
      %869 = vst [vmem:[#allocation1] ss:$9 sm:$0xff] %v803
      %v870 = vld [vmem:[#allocation1] sm:$0xff]
      %872 = vrot.lane.b32.xlu0 %v870, 96
      %v873 = vpop.permute.xlu0 %872
      %v875 = vsel %vm824, %v772, 0
      %v878 = vsel %vm824, %v873, 0
      %880 = vmatpush.bf16.xpose.msra.mxu0 0
      %881 = vmatpush.bf16.xpose.msra.mxu0 0
      %882 = vmatpush.bf16.xpose.msra.mxu0 0
      %883 = vmatpush.bf16.xpose.msra.mxu0 0
      %884 = vmatpush.bf16.xpose.msra.mxu0 0
      %885 = vmatpush.bf16.xpose.msra.mxu0 0
      %886 = vmatpush.bf16.xpose.msra.mxu0 0
      %887 = vmatpush.bf16.xpose.msra.mxu0 %v878
      %888 = vmatmul.bf16.gmra.mxu0 %v875
      %v889 = vpop.f32.mrf.mxu0
      %v890 = vadd.f32 0.0, %v889
      %v891 = vpop.f32.mrf.mxu0
      %892 = vdwg.mxu0
      %894 = vst [vmem:[#allocation1] ss:$9 sm:$0xff] %v806
      %v895 = vld [vmem:[#allocation1] sm:$0xff]
      %897 = vrot.lane.b32.xlu0 %v895, 96
      %v898 = vpop.permute.xlu0 %897
      %v900 = vsel %vm824, %v776, 0
      %v903 = vsel %vm824, %v898, 0
      %905 = vmatpush.bf16.xpose.msra.mxu0 0
      %906 = vmatpush.bf16.xpose.msra.mxu0 0
      %907 = vmatpush.bf16.xpose.msra.mxu0 0
      %908 = vmatpush.bf16.xpose.msra.mxu0 0
      %909 = vmatpush.bf16.xpose.msra.mxu0 0
      %910 = vmatpush.bf16.xpose.msra.mxu0 0
      %911 = vmatpush.bf16.xpose.msra.mxu0 0
      %912 = vmatpush.bf16.xpose.msra.mxu0 %v903
      %913 = vmatmul.bf16.gmra.mxu0 %v900
      %v914 = vpop.f32.mrf.mxu0
      %v915 = vadd.f32 0.0, %v914
      %v916 = vpop.f32.mrf.mxu0
      %917 = vdwg.mxu0
      %918 = vst [vmem:[#allocation1] ss:$9 sm:$0xff] %v809
      %v919 = vld [vmem:[#allocation1] sm:$0xff]
      %921 = vrot.lane.b32.xlu0 %v919, 96
      %v922 = vpop.permute.xlu0 %921
      %v923 = vsel %vm824, %v779, 0
      %v926 = vsel %vm824, %v922, 0
      %928 = vmatpush.bf16.xpose.msra.mxu0 0
      %929 = vmatpush.bf16.xpose.msra.mxu0 0
      %930 = vmatpush.bf16.xpose.msra.mxu0 0
      %931 = vmatpush.bf16.xpose.msra.mxu0 0
      %932 = vmatpush.bf16.xpose.msra.mxu0 0
      %933 = vmatpush.bf16.xpose.msra.mxu0 0
      %934 = vmatpush.bf16.xpose.msra.mxu0 0
      %935 = vmatpush.bf16.xpose.msra.mxu0 %v926
      %936 = vmatmul.bf16.gmra.mxu0 %v923
      %v937 = vpop.f32.mrf.mxu0
      %v938 = vadd.f32 0.0, %v937
      %v939 = vpop.f32.mrf.mxu0
      %940 = vdwg.mxu0
      %942 = vst [vmem:[#allocation1] ss:$9 sm:$0xff] %v812
      %v943 = vld [vmem:[#allocation1] sm:$0xff]
      %945 = vrot.lane.b32.xlu0 %v943, 96
      %v946 = vpop.permute.xlu0 %945
      %v948 = vsel %vm824, %v782, 0
      %v951 = vsel %vm824, %v946, 0
      %953 = vmatpush.bf16.xpose.msra.mxu0 0
      %954 = vmatpush.bf16.xpose.msra.mxu0 0
      %955 = vmatpush.bf16.xpose.msra.mxu0 0
      %956 = vmatpush.bf16.xpose.msra.mxu0 0
      %957 = vmatpush.bf16.xpose.msra.mxu0 0
      %958 = vmatpush.bf16.xpose.msra.mxu0 0
      %959 = vmatpush.bf16.xpose.msra.mxu0 0
      %960 = vmatpush.bf16.xpose.msra.mxu0 %v951
      %961 = vmatmul.bf16.gmra.mxu0 %v948
      %v962 = vpop.f32.mrf.mxu0
      %v963 = vadd.f32 0.0, %v962
      %v964 = vpop.f32.mrf.mxu0
      %965 = vdwg.mxu0
      %967 = vst [vmem:[#allocation1] ss:$9 sm:$0xff] %v815
      %v968 = vld [vmem:[#allocation1] sm:$0xff]
      %970 = vrot.lane.b32.xlu0 %v968, 96
      %v971 = vpop.permute.xlu0 %970
      %v973 = vsel %vm824, %v785, 0
      %v976 = vsel %vm824, %v971, 0
      %978 = vmatpush.bf16.xpose.msra.mxu0 0
      %979 = vmatpush.bf16.xpose.msra.mxu0 0
      %980 = vmatpush.bf16.xpose.msra.mxu0 0
      %981 = vmatpush.bf16.xpose.msra.mxu0 0
      %982 = vmatpush.bf16.xpose.msra.mxu0 0
      %983 = vmatpush.bf16.xpose.msra.mxu0 0
      %984 = vmatpush.bf16.xpose.msra.mxu0 0
      %985 = vmatpush.bf16.xpose.msra.mxu0 %v976
      %986 = vmatmul.bf16.gmra.mxu0 %v973
      %v987 = vpop.f32.mrf.mxu0
      %v988 = vadd.f32 0.0, %v987
      %v989 = vpop.f32.mrf.mxu0
      %990 = vdwg.mxu0
      %992 = vst [vmem:[#allocation1] ss:$9 sm:$0xff] %v818
      %v993 = vld [vmem:[#allocation1] sm:$0xff]
      %995 = vrot.lane.b32.xlu0 %v993, 96
      %v996 = vpop.permute.xlu0 %995
      %v998 = vsel %vm824, %v788, 0
      %v1001 = vsel %vm824, %v996, 0
      %1003 = vmatpush.bf16.xpose.msra.mxu0 0
      %1004 = vmatpush.bf16.xpose.msra.mxu0 0
      %1005 = vmatpush.bf16.xpose.msra.mxu0 0
      %1006 = vmatpush.bf16.xpose.msra.mxu0 0
      %1007 = vmatpush.bf16.xpose.msra.mxu0 0
      %1008 = vmatpush.bf16.xpose.msra.mxu0 0
      %1009 = vmatpush.bf16.xpose.msra.mxu0 0
      %1010 = vmatpush.bf16.xpose.msra.mxu0 %v1001
      %1011 = vmatmul.bf16.gmra.mxu0 %v998
      %v1012 = vpop.f32.mrf.mxu0
      %v1013 = vadd.f32 0.0, %v1012
      %v1014 = vpop.f32.mrf.mxu0
      %1015 = vdwg.mxu0
      %vm1016 = vcmask 9216
      %v1017 = vsel %vm1016, %v840, -inf
      %1018 = vmax.xlane.f32.xlu0 %v1017
      %v1019 = vpop.xlane.xlu0 %1018
      %v1020 = vsel %vm1016, %v865, -inf
      %1021 = vmax.xlane.f32.xlu0 %v1020
      %v1022 = vpop.xlane.xlu0 %1021
      %v1023 = vsel %vm1016, %v890, -inf
      %1024 = vmax.xlane.f32.xlu0 %v1023
      %v1025 = vpop.xlane.xlu0 %1024
      %v1026 = vsel %vm1016, %v915, -inf
      %1027 = vmax.xlane.f32.xlu0 %v1026
      %v1028 = vpop.xlane.xlu0 %1027
      %v1029 = vsel %vm1016, %v938, -inf
      %1030 = vmax.xlane.f32.xlu0 %v1029
      %v1031 = vpop.xlane.xlu0 %1030
      %v1032 = vsel %vm1016, %v963, -inf
      %1033 = vmax.xlane.f32.xlu0 %v1032
      %v1034 = vpop.xlane.xlu0 %1033
      %v1035 = vsel %vm1016, %v988, -inf
      %1036 = vmax.xlane.f32.xlu0 %v1035
      %v1037 = vpop.xlane.xlu0 %1036
      %v1038 = vsel %vm1016, %v1013, -inf
      %1039 = vmax.xlane.f32.xlu0 %v1038
      %v1040 = vpop.xlane.xlu0 %1039
      %v1041 = vsub.f32 %v840, %v1019
      %v1042 = vsub.f32 %v865, %v1022
      %v1043 = vsub.f32 %v890, %v1025
      %v1044 = vsub.f32 %v915, %v1028
      %v1045 = vsub.f32 %v938, %v1031
      %v1046 = vsub.f32 %v963, %v1034
      %v1047 = vsub.f32 %v988, %v1037
      %v1048 = vsub.f32 %v1013, %v1040
      %v1049 = vmul.f32 %v1041, 1.442695
      %v1050 = vpow.pop %v1049
      %v1051 = vmul.f32 %v1042, 1.442695
      %v1052 = vpow.pop %v1051
      %v1053 = vmul.f32 %v1043, 1.442695
      %v1054 = vpow.pop %v1053
      %v1055 = vmul.f32 %v1044, 1.442695
      %v1056 = vpow.pop %v1055
      %v1057 = vmul.f32 %v1045, 1.442695
      %v1058 = vpow.pop %v1057
      %v1059 = vmul.f32 %v1046, 1.442695
      %v1060 = vpow.pop %v1059
      %v1061 = vmul.f32 %v1047, 1.442695
      %v1062 = vpow.pop %v1061
      %v1063 = vmul.f32 %v1048, 1.442695
      %v1064 = vpow.pop %v1063
      %v1065 = vsel %vm1016, %v1050, 0.0
      %1066 = vadd.xlane.f32.xlu0 %v1065
      %v1067 = vpop.xlane.xlu0 %1066
      %v1068 = vsel %vm1016, %v1052, 0.0
      %1069 = vadd.xlane.f32.xlu0 %v1068
      %v1070 = vpop.xlane.xlu0 %1069
      %v1071 = vsel %vm1016, %v1054, 0.0
      %1072 = vadd.xlane.f32.xlu0 %v1071
      %v1073 = vpop.xlane.xlu0 %1072
      %v1074 = vsel %vm1016, %v1056, 0.0
      %1075 = vadd.xlane.f32.xlu0 %v1074
      %v1076 = vpop.xlane.xlu0 %1075
      %v1077 = vsel %vm1016, %v1058, 0.0
      %1078 = vadd.xlane.f32.xlu0 %v1077
      %v1079 = vpop.xlane.xlu0 %1078
      %v1080 = vsel %vm1016, %v1060, 0.0
      %1081 = vadd.xlane.f32.xlu0 %v1080
      %v1082 = vpop.xlane.xlu0 %1081
      %v1083 = vsel %vm1016, %v1062, 0.0
      %1084 = vadd.xlane.f32.xlu0 %v1083
      %v1085 = vpop.xlane.xlu0 %1084
      %v1086 = vsel %vm1016, %v1064, 0.0
      %1087 = vadd.xlane.f32.xlu0 %v1086
      %v1088 = vpop.xlane.xlu0 %1087
      %v1089 = vrcp.pop %v1067
      %v1090 = vrcp.pop %v1070
      %v1091 = vrcp.pop %v1073
      %v1092 = vrcp.pop %v1076
      %v1093 = vrcp.pop %v1079
      %v1094 = vrcp.pop %v1082
      %v1095 = vrcp.pop %v1085
      %v1096 = vrcp.pop %v1088
      %v1097 = vmul.f32 %v1050, %v1089
      %v1098 = vmul.f32 %v1052, %v1090
      %v1099 = vmul.f32 %v1054, %v1091
      %v1100 = vmul.f32 %v1056, %v1092
      %v1101 = vmul.f32 %v1058, %v1093
      %v1102 = vmul.f32 %v1060, %v1094
      %v1103 = vmul.f32 %v1062, %v1095
      %v1104 = vmul.f32 %v1064, %v1096
      %v1105 = vpack.c.bf16 %v1097, %v1097
      %v1106 = vpack.c.bf16 %v1098, %v1098
      %v1107 = vpack.c.bf16 %v1099, %v1099
      %v1108 = vpack.c.bf16 %v1100, %v1100
      %v1109 = vpack.c.bf16 %v1101, %v1101
      %v1110 = vpack.c.bf16 %v1102, %v1102
      %v1111 = vpack.c.bf16 %v1103, %v1103
      %v1112 = vpack.c.bf16 %v1104, %v1104
      %1113 = vst [vmem:[#allocation1] ss:$9 sm:$0xff] %v797
      %v1114 = vld [vmem:[#allocation1] sm:$0xff]
      %1116 = vrot.lane.b32.xlu0 %v1114, 64
      %v1117 = vpop.permute.xlu0 %1116
      %vm1118 = vcmask 15360
      %v1120 = vsel %vm1118, %v1105, 0
      %v1123 = vsel %vm761, %v1117, 0
      %1125 = vmatpush.bf16.msra.mxu0 0
      %1126 = vmatpush.bf16.msra.mxu0 0
      %1127 = vmatpush.bf16.msra.mxu0 0
      %1128 = vmatpush.bf16.msra.mxu0 0
      %1129 = vmatpush.bf16.msra.mxu0 0
      %1130 = vmatpush.bf16.msra.mxu0 0
      %1131 = vmatpush.bf16.msra.mxu0 0
      %1132 = vmatpush.bf16.msra.mxu0 %v1123
      %1133 = vmatmul.bf16.gmra.mxu0 %v1120
      %v1134 = vpop.f32.mrf.mxu0
      %v1135 = vadd.f32 0.0, %v1134
      %v1136 = vpop.f32.mrf.mxu0
      %1137 = vdwg.mxu0
      %1138 = vst [vmem:[#allocation1] ss:$9 sm:$0xff] %v800
      %v1139 = vld [vmem:[#allocation1] sm:$0xff]
      %1141 = vrot.lane.b32.xlu0 %v1139, 64
      %v1142 = vpop.permute.xlu0 %1141
      %v1144 = vsel %vm1118, %v1106, 0
      %v1147 = vsel %vm761, %v1142, 0
      %1149 = vmatpush.bf16.msra.mxu0 0
      %1150 = vmatpush.bf16.msra.mxu0 0
      %1151 = vmatpush.bf16.msra.mxu0 0
      %1152 = vmatpush.bf16.msra.mxu0 0
      %1153 = vmatpush.bf16.msra.mxu0 0
      %1154 = vmatpush.bf16.msra.mxu0 0
      %1155 = vmatpush.bf16.msra.mxu0 0
      %1156 = vmatpush.bf16.msra.mxu0 %v1147
      %1157 = vmatmul.bf16.gmra.mxu0 %v1144
      %v1158 = vpop.f32.mrf.mxu0
      %v1159 = vadd.f32 0.0, %v1158
      %v1160 = vpop.f32.mrf.mxu0
      %1161 = vdwg.mxu0
      %1162 = vst [vmem:[#allocation1] ss:$9 sm:$0xff] %v803
      %v1163 = vld [vmem:[#allocation1] sm:$0xff]
      %1165 = vrot.lane.b32.xlu0 %v1163, 64
      %v1166 = vpop.permute.xlu0 %1165
      %v1168 = vsel %vm1118, %v1107, 0
      %v1171 = vsel %vm761, %v1166, 0
      %1173 = vmatpush.bf16.msra.mxu0 0
      %1174 = vmatpush.bf16.msra.mxu0 0
      %1175 = vmatpush.bf16.msra.mxu0 0
      %1176 = vmatpush.bf16.msra.mxu0 0
      %1177 = vmatpush.bf16.msra.mxu0 0
      %1178 = vmatpush.bf16.msra.mxu0 0
      %1179 = vmatpush.bf16.msra.mxu0 0
      %1180 = vmatpush.bf16.msra.mxu0 %v1171
      %1181 = vmatmul.bf16.gmra.mxu0 %v1168
      %v1182 = vpop.f32.mrf.mxu0
      %v1183 = vadd.f32 0.0, %v1182
      %v1184 = vpop.f32.mrf.mxu0
      %1185 = vdwg.mxu0
      %1186 = vst [vmem:[#allocation1] ss:$9 sm:$0xff] %v806
      %v1187 = vld [vmem:[#allocation1] sm:$0xff]
      %1189 = vrot.lane.b32.xlu0 %v1187, 64
      %v1190 = vpop.permute.xlu0 %1189
      %v1192 = vsel %vm1118, %v1108, 0
      %v1195 = vsel %vm761, %v1190, 0
      %1197 = vmatpush.bf16.msra.mxu0 0
      %1198 = vmatpush.bf16.msra.mxu0 0
      %1199 = vmatpush.bf16.msra.mxu0 0
      %1200 = vmatpush.bf16.msra.mxu0 0
      %1201 = vmatpush.bf16.msra.mxu0 0
      %1202 = vmatpush.bf16.msra.mxu0 0
      %1203 = vmatpush.bf16.msra.mxu0 0
      %1204 = vmatpush.bf16.msra.mxu0 %v1195
      %1205 = vmatmul.bf16.gmra.mxu0 %v1192
      %v1206 = vpop.f32.mrf.mxu0
      %v1207 = vadd.f32 0.0, %v1206
      %v1208 = vpop.f32.mrf.mxu0
      %1209 = vdwg.mxu0
      %1210 = vst [vmem:[#allocation1] ss:$9 sm:$0xff] %v809
      %v1211 = vld [vmem:[#allocation1] sm:$0xff]
      %1213 = vrot.lane.b32.xlu0 %v1211, 64
      %v1214 = vpop.permute.xlu0 %1213
      %v1216 = vsel %vm1118, %v1109, 0
      %v1219 = vsel %vm761, %v1214, 0
      %1221 = vmatpush.bf16.msra.mxu0 0
      %1222 = vmatpush.bf16.msra.mxu0 0
      %1223 = vmatpush.bf16.msra.mxu0 0
      %1224 = vmatpush.bf16.msra.mxu0 0
      %1225 = vmatpush.bf16.msra.mxu0 0
      %1226 = vmatpush.bf16.msra.mxu0 0
      %1227 = vmatpush.bf16.msra.mxu0 0
      %1228 = vmatpush.bf16.msra.mxu0 %v1219
      %1229 = vmatmul.bf16.gmra.mxu0 %v1216
      %v1230 = vpop.f32.mrf.mxu0
      %v1231 = vadd.f32 0.0, %v1230
      %v1232 = vpop.f32.mrf.mxu0
      %1233 = vdwg.mxu0
      %1234 = vst [vmem:[#allocation1] ss:$9 sm:$0xff] %v812
      %v1235 = vld [vmem:[#allocation1] sm:$0xff]
      %1237 = vrot.lane.b32.xlu0 %v1235, 64
      %v1238 = vpop.permute.xlu0 %1237
      %v1240 = vsel %vm1118, %v1110, 0
      %v1243 = vsel %vm761, %v1238, 0
      %1245 = vmatpush.bf16.msra.mxu0 0
      %1246 = vmatpush.bf16.msra.mxu0 0
      %1247 = vmatpush.bf16.msra.mxu0 0
      %1248 = vmatpush.bf16.msra.mxu0 0
      %1249 = vmatpush.bf16.msra.mxu0 0
      %1250 = vmatpush.bf16.msra.mxu0 0
      %1251 = vmatpush.bf16.msra.mxu0 0
      %1252 = vmatpush.bf16.msra.mxu0 %v1243
      %1253 = vmatmul.bf16.gmra.mxu0 %v1240
      %v1254 = vpop.f32.mrf.mxu0
      %v1255 = vadd.f32 0.0, %v1254
      %v1256 = vpop.f32.mrf.mxu0
      %1257 = vdwg.mxu0
      %1258 = vst [vmem:[#allocation1] ss:$9 sm:$0xff] %v815
      %v1259 = vld [vmem:[#allocation1] sm:$0xff]
      %1261 = vrot.lane.b32.xlu0 %v1259, 64
      %v1262 = vpop.permute.xlu0 %1261
      %v1264 = vsel %vm1118, %v1111, 0
      %v1267 = vsel %vm761, %v1262, 0
      %1269 = vmatpush.bf16.msra.mxu0 0
      %1270 = vmatpush.bf16.msra.mxu0 0
      %1271 = vmatpush.bf16.msra.mxu0 0
      %1272 = vmatpush.bf16.msra.mxu0 0
      %1273 = vmatpush.bf16.msra.mxu0 0
      %1274 = vmatpush.bf16.msra.mxu0 0
      %1275 = vmatpush.bf16.msra.mxu0 0
      %1276 = vmatpush.bf16.msra.mxu0 %v1267
      %1277 = vmatmul.bf16.gmra.mxu0 %v1264
      %v1278 = vpop.f32.mrf.mxu0
      %v1279 = vadd.f32 0.0, %v1278
      %v1280 = vpop.f32.mrf.mxu0
      %1281 = vdwg.mxu0
      %1282 = vst [vmem:[#allocation1] ss:$9 sm:$0xff] %v818
      %v1283 = vld [vmem:[#allocation1] sm:$0xff]
      %1285 = vrot.lane.b32.xlu0 %v1283, 64
      %v1286 = vpop.permute.xlu0 %1285
      %v1288 = vsel %vm1118, %v1112, 0
      %v1291 = vsel %vm761, %v1286, 0
      %1293 = vmatpush.bf16.msra.mxu0 0
      %1294 = vmatpush.bf16.msra.mxu0 0
      %1295 = vmatpush.bf16.msra.mxu0 0
      %1296 = vmatpush.bf16.msra.mxu0 0
      %1297 = vmatpush.bf16.msra.mxu0 0
      %1298 = vmatpush.bf16.msra.mxu0 0
      %1299 = vmatpush.bf16.msra.mxu0 0
      %1300 = vmatpush.bf16.msra.mxu0 %v1291
      %1301 = vmatmul.bf16.gmra.mxu0 %v1288
      %v1302 = vpop.f32.mrf.mxu0
      %v1303 = vadd.f32 0.0, %v1302
      %v1304 = vpop.f32.mrf.mxu0
      %1305 = vdwg.mxu0
      %1306 = vst [vmem:[#allocation1] ss:$9 sm:$0xff] %v764
      %v1307 = vld [vmem:[#allocation1] sm:$0xff]
      %1309 = vrot.lane.b32.xlu0 %v1307, 120
      %v1310 = vpop.permute.xlu0 %1309
      %1311 = vst [vmem:[#allocation1] ss:$9 sm:$0xff] %v797
      %v1312 = vld [vmem:[#allocation1] sm:$0xff]
      %1314 = vrot.lane.b32.xlu0 %v1312, 88
      %v1315 = vpop.permute.xlu0 %1314
      %v1317 = vsel %vm824, %v1310, 0
      %v1320 = vsel %vm824, %v1315, 0
      %1322 = vmatpush.bf16.xpose.msra.mxu0 0
      %1323 = vmatpush.bf16.xpose.msra.mxu0 0
      %1324 = vmatpush.bf16.xpose.msra.mxu0 0
      %1325 = vmatpush.bf16.xpose.msra.mxu0 0
      %1326 = vmatpush.bf16.xpose.msra.mxu0 0
      %1327 = vmatpush.bf16.xpose.msra.mxu0 0
      %1328 = vmatpush.bf16.xpose.msra.mxu0 0
      %1329 = vmatpush.bf16.xpose.msra.mxu0 %v1320
      %1330 = vmatmul.bf16.gmra.mxu0 %v1317
      %v1331 = vpop.f32.mrf.mxu0
      %v1332 = vadd.f32 0.0, %v1331
      %v1333 = vpop.f32.mrf.mxu0
      %1334 = vdwg.mxu0
      %1335 = vst [vmem:[#allocation1] ss:$9 sm:$0xff] %v768
      %v1336 = vld [vmem:[#allocation1] sm:$0xff]
      %1338 = vrot.lane.b32.xlu0 %v1336, 120
      %v1339 = vpop.permute.xlu0 %1338
      %1340 = vst [vmem:[#allocation1] ss:$9 sm:$0xff] %v800
      %v1341 = vld [vmem:[#allocation1] sm:$0xff]
      %1343 = vrot.lane.b32.xlu0 %v1341, 88
      %v1344 = vpop.permute.xlu0 %1343
      %v1346 = vsel %vm824, %v1339, 0
      %v1349 = vsel %vm824, %v1344, 0
      %1351 = vmatpush.bf16.xpose.msra.mxu0 0
      %1352 = vmatpush.bf16.xpose.msra.mxu0 0
      %1353 = vmatpush.bf16.xpose.msra.mxu0 0
      %1354 = vmatpush.bf16.xpose.msra.mxu0 0
      %1355 = vmatpush.bf16.xpose.msra.mxu0 0
      %1356 = vmatpush.bf16.xpose.msra.mxu0 0
      %1357 = vmatpush.bf16.xpose.msra.mxu0 0
      %1358 = vmatpush.bf16.xpose.msra.mxu0 %v1349
      %1359 = vmatmul.bf16.gmra.mxu0 %v1346
      %v1360 = vpop.f32.mrf.mxu0
      %v1361 = vadd.f32 0.0, %v1360
      %v1362 = vpop.f32.mrf.mxu0
      %1363 = vdwg.mxu0
      %1364 = vst [vmem:[#allocation1] ss:$9 sm:$0xff] %v772
      %v1365 = vld [vmem:[#allocation1] sm:$0xff]
      %1367 = vrot.lane.b32.xlu0 %v1365, 120
      %v1368 = vpop.permute.xlu0 %1367
      %1369 = vst [vmem:[#allocation1] ss:$9 sm:$0xff] %v803
      %v1370 = vld [vmem:[#allocation1] sm:$0xff]
      %1372 = vrot.lane.b32.xlu0 %v1370, 88
      %v1373 = vpop.permute.xlu0 %1372
      %v1375 = vsel %vm824, %v1368, 0
      %v1378 = vsel %vm824, %v1373, 0
      %1380 = vmatpush.bf16.xpose.msra.mxu0 0
      %1381 = vmatpush.bf16.xpose.msra.mxu0 0
      %1382 = vmatpush.bf16.xpose.msra.mxu0 0
      %1383 = vmatpush.bf16.xpose.msra.mxu0 0
      %1384 = vmatpush.bf16.xpose.msra.mxu0 0
      %1385 = vmatpush.bf16.xpose.msra.mxu0 0
      %1386 = vmatpush.bf16.xpose.msra.mxu0 0
      %1387 = vmatpush.bf16.xpose.msra.mxu0 %v1378
      %1388 = vmatmul.bf16.gmra.mxu0 %v1375
      %v1389 = vpop.f32.mrf.mxu0
      %v1390 = vadd.f32 0.0, %v1389
      %v1391 = vpop.f32.mrf.mxu0
      %1392 = vdwg.mxu0
      %1393 = vst [vmem:[#allocation1] ss:$9 sm:$0xff] %v776
      %v1394 = vld [vmem:[#allocation1] sm:$0xff]
      %1396 = vrot.lane.b32.xlu0 %v1394, 120
      %v1397 = vpop.permute.xlu0 %1396
      %1398 = vst [vmem:[#allocation1] ss:$9 sm:$0xff] %v806
      %v1399 = vld [vmem:[#allocation1] sm:$0xff]
      %1401 = vrot.lane.b32.xlu0 %v1399, 88
      %v1402 = vpop.permute.xlu0 %1401
      %v1404 = vsel %vm824, %v1397, 0
      %v1407 = vsel %vm824, %v1402, 0
      %1409 = vmatpush.bf16.xpose.msra.mxu0 0
      %1410 = vmatpush.bf16.xpose.msra.mxu0 0
      %1411 = vmatpush.bf16.xpose.msra.mxu0 0
      %1412 = vmatpush.bf16.xpose.msra.mxu0 0
      %1413 = vmatpush.bf16.xpose.msra.mxu0 0
      %1414 = vmatpush.bf16.xpose.msra.mxu0 0
      %1415 = vmatpush.bf16.xpose.msra.mxu0 0
      %1416 = vmatpush.bf16.xpose.msra.mxu0 %v1407
      %1417 = vmatmul.bf16.gmra.mxu0 %v1404
      %v1418 = vpop.f32.mrf.mxu0
      %v1419 = vadd.f32 0.0, %v1418
      %v1420 = vpop.f32.mrf.mxu0
      %1421 = vdwg.mxu0
      %1422 = vst [vmem:[#allocation1] ss:$9 sm:$0xff] %v779
      %v1423 = vld [vmem:[#allocation1] sm:$0xff]
      %1425 = vrot.lane.b32.xlu0 %v1423, 120
      %v1426 = vpop.permute.xlu0 %1425
      %1427 = vst [vmem:[#allocation1] ss:$9 sm:$0xff] %v809
      %v1428 = vld [vmem:[#allocation1] sm:$0xff]
      %1430 = vrot.lane.b32.xlu0 %v1428, 88
      %v1431 = vpop.permute.xlu0 %1430
      %v1433 = vsel %vm824, %v1426, 0
      %v1436 = vsel %vm824, %v1431, 0
      %1438 = vmatpush.bf16.xpose.msra.mxu0 0
      %1439 = vmatpush.bf16.xpose.msra.mxu0 0
      %1440 = vmatpush.bf16.xpose.msra.mxu0 0
      %1441 = vmatpush.bf16.xpose.msra.mxu0 0
      %1442 = vmatpush.bf16.xpose.msra.mxu0 0
      %1443 = vmatpush.bf16.xpose.msra.mxu0 0
      %1444 = vmatpush.bf16.xpose.msra.mxu0 0
      %1445 = vmatpush.bf16.xpose.msra.mxu0 %v1436
      %1446 = vmatmul.bf16.gmra.mxu0 %v1433
      %v1447 = vpop.f32.mrf.mxu0
      %v1448 = vadd.f32 0.0, %v1447
      %v1449 = vpop.f32.mrf.mxu0
      %1450 = vdwg.mxu0
      %1451 = vst [vmem:[#allocation1] ss:$9 sm:$0xff] %v782
      %v1452 = vld [vmem:[#allocation1] sm:$0xff]
      %1454 = vrot.lane.b32.xlu0 %v1452, 120
      %v1455 = vpop.permute.xlu0 %1454
      %1456 = vst [vmem:[#allocation1] ss:$9 sm:$0xff] %v812
      %v1457 = vld [vmem:[#allocation1] sm:$0xff]
      %1459 = vrot.lane.b32.xlu0 %v1457, 88
      %v1460 = vpop.permute.xlu0 %1459
      %v1462 = vsel %vm824, %v1455, 0
      %v1465 = vsel %vm824, %v1460, 0
      %1467 = vmatpush.bf16.xpose.msra.mxu0 0
      %1468 = vmatpush.bf16.xpose.msra.mxu0 0
      %1469 = vmatpush.bf16.xpose.msra.mxu0 0
      %1470 = vmatpush.bf16.xpose.msra.mxu0 0
      %1471 = vmatpush.bf16.xpose.msra.mxu0 0
      %1472 = vmatpush.bf16.xpose.msra.mxu0 0
      %1473 = vmatpush.bf16.xpose.msra.mxu0 0
      %1474 = vmatpush.bf16.xpose.msra.mxu0 %v1465
      %1475 = vmatmul.bf16.gmra.mxu0 %v1462
      %v1476 = vpop.f32.mrf.mxu0
      %v1477 = vadd.f32 0.0, %v1476
      %v1478 = vpop.f32.mrf.mxu0
      %1479 = vdwg.mxu0
      %1480 = vst [vmem:[#allocation1] ss:$9 sm:$0xff] %v785
      %v1481 = vld [vmem:[#allocation1] sm:$0xff]
      %1483 = vrot.lane.b32.xlu0 %v1481, 120
      %v1484 = vpop.permute.xlu0 %1483
      %1485 = vst [vmem:[#allocation1] ss:$9 sm:$0xff] %v815
      %v1486 = vld [vmem:[#allocation1] sm:$0xff]
      %1488 = vrot.lane.b32.xlu0 %v1486, 88
      %v1489 = vpop.permute.xlu0 %1488
      %v1491 = vsel %vm824, %v1484, 0
      %v1494 = vsel %vm824, %v1489, 0
      %1496 = vmatpush.bf16.xpose.msra.mxu0 0
      %1497 = vmatpush.bf16.xpose.msra.mxu0 0
      %1498 = vmatpush.bf16.xpose.msra.mxu0 0
      %1499 = vmatpush.bf16.xpose.msra.mxu0 0
      %1500 = vmatpush.bf16.xpose.msra.mxu0 0
      %1501 = vmatpush.bf16.xpose.msra.mxu0 0
      %1502 = vmatpush.bf16.xpose.msra.mxu0 0
      %1503 = vmatpush.bf16.xpose.msra.mxu0 %v1494
      %1504 = vmatmul.bf16.gmra.mxu0 %v1491
      %v1505 = vpop.f32.mrf.mxu0
      %v1506 = vadd.f32 0.0, %v1505
      %v1507 = vpop.f32.mrf.mxu0
      %1508 = vdwg.mxu0
      %1509 = vst [vmem:[#allocation1] ss:$9 sm:$0xff] %v788
      %v1510 = vld [vmem:[#allocation1] sm:$0xff]
      %1512 = vrot.lane.b32.xlu0 %v1510, 120
      %v1513 = vpop.permute.xlu0 %1512
      %1514 = vst [vmem:[#allocation1] ss:$9 sm:$0xff] %v818
      %v1515 = vld [vmem:[#allocation1] sm:$0xff]
      %1517 = vrot.lane.b32.xlu0 %v1515, 88
      %v1518 = vpop.permute.xlu0 %1517
      %v1520 = vsel %vm824, %v1513, 0
      %v1523 = vsel %vm824, %v1518, 0
      %1525 = vmatpush.bf16.xpose.msra.mxu0 0
      %1526 = vmatpush.bf16.xpose.msra.mxu0 0
      %1527 = vmatpush.bf16.xpose.msra.mxu0 0
      %1528 = vmatpush.bf16.xpose.msra.mxu0 0
      %1529 = vmatpush.bf16.xpose.msra.mxu0 0
      %1530 = vmatpush.bf16.xpose.msra.mxu0 0
      %1531 = vmatpush.bf16.xpose.msra.mxu0 0
      %1532 = vmatpush.bf16.xpose.msra.mxu0 %v1523
      %1533 = vmatmul.bf16.gmra.mxu0 %v1520
      %v1534 = vpop.f32.mrf.mxu0
      %v1535 = vadd.f32 0.0, %v1534
      %v1536 = vpop.f32.mrf.mxu0
      %1537 = vdwg.mxu0
      %v1538 = vsel %vm1016, %v1332, -inf
      %1539 = vmax.xlane.f32.xlu0 %v1538
      %v1540 = vpop.xlane.xlu0 %1539
      %v1541 = vsel %vm1016, %v1361, -inf
      %1542 = vmax.xlane.f32.xlu0 %v1541
      %v1543 = vpop.xlane.xlu0 %1542
      %v1544 = vsel %vm1016, %v1390, -inf
      %1545 = vmax.xlane.f32.xlu0 %v1544
      %v1546 = vpop.xlane.xlu0 %1545
      %v1547 = vsel %vm1016, %v1419, -inf
      %1548 = vmax.xlane.f32.xlu0 %v1547
      %v1549 = vpop.xlane.xlu0 %1548
      %v1550 = vsel %vm1016, %v1448, -inf
      %1551 = vmax.xlane.f32.xlu0 %v1550
      %v1552 = vpop.xlane.xlu0 %1551
      %v1553 = vsel %vm1016, %v1477, -inf
      %1554 = vmax.xlane.f32.xlu0 %v1553
      %v1555 = vpop.xlane.xlu0 %1554
      %v1556 = vsel %vm1016, %v1506, -inf
      %1557 = vmax.xlane.f32.xlu0 %v1556
      %v1558 = vpop.xlane.xlu0 %1557
      %v1559 = vsel %vm1016, %v1535, -inf
      %1560 = vmax.xlane.f32.xlu0 %v1559
      %v1561 = vpop.xlane.xlu0 %1560
      %v1562 = vsub.f32 %v1332, %v1540
      %v1563 = vsub.f32 %v1361, %v1543
      %v1564 = vsub.f32 %v1390, %v1546
      %v1565 = vsub.f32 %v1419, %v1549
      %v1566 = vsub.f32 %v1448, %v1552
      %v1567 = vsub.f32 %v1477, %v1555
      %v1568 = vsub.f32 %v1506, %v1558
      %v1569 = vsub.f32 %v1535, %v1561
      %v1570 = vmul.f32 %v1562, 1.442695
      %v1571 = vpow.pop %v1570
      %v1572 = vmul.f32 %v1563, 1.442695
      %v1573 = vpow.pop %v1572
      %v1574 = vmul.f32 %v1564, 1.442695
      %v1575 = vpow.pop %v1574
      %v1576 = vmul.f32 %v1565, 1.442695
      %v1577 = vpow.pop %v1576
      %v1578 = vmul.f32 %v1566, 1.442695
      %v1579 = vpow.pop %v1578
      %v1580 = vmul.f32 %v1567, 1.442695
      %v1581 = vpow.pop %v1580
      %v1582 = vmul.f32 %v1568, 1.442695
      %v1583 = vpow.pop %v1582
      %v1584 = vmul.f32 %v1569, 1.442695
      %v1585 = vpow.pop %v1584
      %v1586 = vsel %vm1016, %v1571, 0.0
      %1587 = vadd.xlane.f32.xlu0 %v1586
      %v1588 = vpop.xlane.xlu0 %1587
      %v1589 = vsel %vm1016, %v1573, 0.0
      %1590 = vadd.xlane.f32.xlu0 %v1589
      %v1591 = vpop.xlane.xlu0 %1590
      %v1592 = vsel %vm1016, %v1575, 0.0
      %1593 = vadd.xlane.f32.xlu0 %v1592
      %v1594 = vpop.xlane.xlu0 %1593
      %v1595 = vsel %vm1016, %v1577, 0.0
      %1596 = vadd.xlane.f32.xlu0 %v1595
      %v1597 = vpop.xlane.xlu0 %1596
      %v1598 = vsel %vm1016, %v1579, 0.0
      %1599 = vadd.xlane.f32.xlu0 %v1598
      %v1600 = vpop.xlane.xlu0 %1599
      %v1601 = vsel %vm1016, %v1581, 0.0
      %1602 = vadd.xlane.f32.xlu0 %v1601
      %v1603 = vpop.xlane.xlu0 %1602
      %v1604 = vsel %vm1016, %v1583, 0.0
      %1605 = vadd.xlane.f32.xlu0 %v1604
      %v1606 = vpop.xlane.xlu0 %1605
      %v1607 = vsel %vm1016, %v1585, 0.0
      %1608 = vadd.xlane.f32.xlu0 %v1607
      %v1609 = vpop.xlane.xlu0 %1608
      %v1610 = vrcp.pop %v1588
      %v1611 = vrcp.pop %v1591
      %v1612 = vrcp.pop %v1594
      %v1613 = vrcp.pop %v1597
      %v1614 = vrcp.pop %v1600
      %v1615 = vrcp.pop %v1603
      %v1616 = vrcp.pop %v1606
      %v1617 = vrcp.pop %v1609
      %v1618 = vmul.f32 %v1571, %v1610
      %v1619 = vmul.f32 %v1573, %v1611
      %v1620 = vmul.f32 %v1575, %v1612
      %v1621 = vmul.f32 %v1577, %v1613
      %v1622 = vmul.f32 %v1579, %v1614
      %v1623 = vmul.f32 %v1581, %v1615
      %v1624 = vmul.f32 %v1583, %v1616
      %v1625 = vmul.f32 %v1585, %v1617
      %v1626 = vpack.c.bf16 %v1618, %v1618
      %v1627 = vpack.c.bf16 %v1619, %v1619
      %v1628 = vpack.c.bf16 %v1620, %v1620
      %v1629 = vpack.c.bf16 %v1621, %v1621
      %v1630 = vpack.c.bf16 %v1622, %v1622
      %v1631 = vpack.c.bf16 %v1623, %v1623
      %v1632 = vpack.c.bf16 %v1624, %v1624
      %v1633 = vpack.c.bf16 %v1625, %v1625
      %1634 = vst [vmem:[#allocation1] ss:$9 sm:$0xff] %v797
      %v1635 = vld [vmem:[#allocation1] sm:$0xff]
      %1637 = vrot.lane.b32.xlu0 %v1635, 56
      %v1638 = vpop.permute.xlu0 %1637
      %v1640 = vsel %vm1118, %v1626, 0
      %v1643 = vsel %vm761, %v1638, 0
      %1645 = vmatpush.bf16.msra.mxu0 0
      %1646 = vmatpush.bf16.msra.mxu0 0
      %1647 = vmatpush.bf16.msra.mxu0 0
      %1648 = vmatpush.bf16.msra.mxu0 0
      %1649 = vmatpush.bf16.msra.mxu0 0
      %1650 = vmatpush.bf16.msra.mxu0 0
      %1651 = vmatpush.bf16.msra.mxu0 0
      %1652 = vmatpush.bf16.msra.mxu0 %v1643
      %1653 = vmatmul.bf16.gmra.mxu0 %v1640
      %v1654 = vpop.f32.mrf.mxu0
      %v1655 = vadd.f32 0.0, %v1654
      %v1656 = vpop.f32.mrf.mxu0
      %1657 = vdwg.mxu0
      %1658 = vst [vmem:[#allocation1] ss:$9 sm:$0xff] %v800
      %v1659 = vld [vmem:[#allocation1] sm:$0xff]
      %1661 = vrot.lane.b32.xlu0 %v1659, 56
      %v1662 = vpop.permute.xlu0 %1661
      %v1664 = vsel %vm1118, %v1627, 0
      %v1667 = vsel %vm761, %v1662, 0
      %1669 = vmatpush.bf16.msra.mxu0 0
      %1670 = vmatpush.bf16.msra.mxu0 0
      %1671 = vmatpush.bf16.msra.mxu0 0
      %1672 = vmatpush.bf16.msra.mxu0 0
      %1673 = vmatpush.bf16.msra.mxu0 0
      %1674 = vmatpush.bf16.msra.mxu0 0
      %1675 = vmatpush.bf16.msra.mxu0 0
      %1676 = vmatpush.bf16.msra.mxu0 %v1667
      %1677 = vmatmul.bf16.gmra.mxu0 %v1664
      %v1678 = vpop.f32.mrf.mxu0
      %v1679 = vadd.f32 0.0, %v1678
      %v1680 = vpop.f32.mrf.mxu0
      %1681 = vdwg.mxu0
      %1682 = vst [vmem:[#allocation1] ss:$9 sm:$0xff] %v803
      %v1683 = vld [vmem:[#allocation1] sm:$0xff]
      %1685 = vrot.lane.b32.xlu0 %v1683, 56
      %v1686 = vpop.permute.xlu0 %1685
      %v1688 = vsel %vm1118, %v1628, 0
      %v1691 = vsel %vm761, %v1686, 0
      %1693 = vmatpush.bf16.msra.mxu0 0
      %1694 = vmatpush.bf16.msra.mxu0 0
      %1695 = vmatpush.bf16.msra.mxu0 0
      %1696 = vmatpush.bf16.msra.mxu0 0
      %1697 = vmatpush.bf16.msra.mxu0 0
      %1698 = vmatpush.bf16.msra.mxu0 0
      %1699 = vmatpush.bf16.msra.mxu0 0
      %1700 = vmatpush.bf16.msra.mxu0 %v1691
      %1701 = vmatmul.bf16.gmra.mxu0 %v1688
      %v1702 = vpop.f32.mrf.mxu0
      %v1703 = vadd.f32 0.0, %v1702
      %v1704 = vpop.f32.mrf.mxu0
      %1705 = vdwg.mxu0
      %1706 = vst [vmem:[#allocation1] ss:$9 sm:$0xff] %v806
      %v1707 = vld [vmem:[#allocation1] sm:$0xff]
      %1709 = vrot.lane.b32.xlu0 %v1707, 56
      %v1710 = vpop.permute.xlu0 %1709
      %v1712 = vsel %vm1118, %v1629, 0
      %v1715 = vsel %vm761, %v1710, 0
      %1717 = vmatpush.bf16.msra.mxu0 0
      %1718 = vmatpush.bf16.msra.mxu0 0
      %1719 = vmatpush.bf16.msra.mxu0 0
      %1720 = vmatpush.bf16.msra.mxu0 0
      %1721 = vmatpush.bf16.msra.mxu0 0
      %1722 = vmatpush.bf16.msra.mxu0 0
      %1723 = vmatpush.bf16.msra.mxu0 0
      %1724 = vmatpush.bf16.msra.mxu0 %v1715
      %1725 = vmatmul.bf16.gmra.mxu0 %v1712
      %v1726 = vpop.f32.mrf.mxu0
      %v1727 = vadd.f32 0.0, %v1726
      %v1728 = vpop.f32.mrf.mxu0
      %1729 = vdwg.mxu0
      %1730 = vst [vmem:[#allocation1] ss:$9 sm:$0xff] %v809
      %v1731 = vld [vmem:[#allocation1] sm:$0xff]
      %1733 = vrot.lane.b32.xlu0 %v1731, 56
      %v1734 = vpop.permute.xlu0 %1733
      %v1736 = vsel %vm1118, %v1630, 0
      %v1739 = vsel %vm761, %v1734, 0
      %1741 = vmatpush.bf16.msra.mxu0 0
      %1742 = vmatpush.bf16.msra.mxu0 0
      %1743 = vmatpush.bf16.msra.mxu0 0
      %1744 = vmatpush.bf16.msra.mxu0 0
      %1745 = vmatpush.bf16.msra.mxu0 0
      %1746 = vmatpush.bf16.msra.mxu0 0
      %1747 = vmatpush.bf16.msra.mxu0 0
      %1748 = vmatpush.bf16.msra.mxu0 %v1739
      %1749 = vmatmul.bf16.gmra.mxu0 %v1736
      %v1750 = vpop.f32.mrf.mxu0
      %v1751 = vadd.f32 0.0, %v1750
      %v1752 = vpop.f32.mrf.mxu0
      %1753 = vdwg.mxu0
      %1754 = vst [vmem:[#allocation1] ss:$9 sm:$0xff] %v812
      %v1755 = vld [vmem:[#allocation1] sm:$0xff]
      %1757 = vrot.lane.b32.xlu0 %v1755, 56
      %v1758 = vpop.permute.xlu0 %1757
      %v1760 = vsel %vm1118, %v1631, 0
      %v1763 = vsel %vm761, %v1758, 0
      %1765 = vmatpush.bf16.msra.mxu0 0
      %1766 = vmatpush.bf16.msra.mxu0 0
      %1767 = vmatpush.bf16.msra.mxu0 0
      %1768 = vmatpush.bf16.msra.mxu0 0
      %1769 = vmatpush.bf16.msra.mxu0 0
      %1770 = vmatpush.bf16.msra.mxu0 0
      %1771 = vmatpush.bf16.msra.mxu0 0
      %1772 = vmatpush.bf16.msra.mxu0 %v1763
      %1773 = vmatmul.bf16.gmra.mxu0 %v1760
      %v1774 = vpop.f32.mrf.mxu0
      %v1775 = vadd.f32 0.0, %v1774
      %v1776 = vpop.f32.mrf.mxu0
      %1777 = vdwg.mxu0
      %1778 = vst [vmem:[#allocation1] ss:$9 sm:$0xff] %v815
      %v1779 = vld [vmem:[#allocation1] sm:$0xff]
      %1781 = vrot.lane.b32.xlu0 %v1779, 56
      %v1782 = vpop.permute.xlu0 %1781
      %v1784 = vsel %vm1118, %v1632, 0
      %v1787 = vsel %vm761, %v1782, 0
      %1789 = vmatpush.bf16.msra.mxu0 0
      %1790 = vmatpush.bf16.msra.mxu0 0
      %1791 = vmatpush.bf16.msra.mxu0 0
      %1792 = vmatpush.bf16.msra.mxu0 0
      %1793 = vmatpush.bf16.msra.mxu0 0
      %1794 = vmatpush.bf16.msra.mxu0 0
      %1795 = vmatpush.bf16.msra.mxu0 0
      %1796 = vmatpush.bf16.msra.mxu0 %v1787
      %1797 = vmatmul.bf16.gmra.mxu0 %v1784
      %v1798 = vpop.f32.mrf.mxu0
      %v1799 = vadd.f32 0.0, %v1798
      %v1800 = vpop.f32.mrf.mxu0
      %1801 = vdwg.mxu0
      %1802 = vst [vmem:[#allocation1] ss:$9 sm:$0xff] %v818
      %v1803 = vld [vmem:[#allocation1] sm:$0xff]
      %1805 = vrot.lane.b32.xlu0 %v1803, 56
      %v1806 = vpop.permute.xlu0 %1805
      %v1808 = vsel %vm1118, %v1633, 0
      %v1811 = vsel %vm761, %v1806, 0
      %1813 = vmatpush.bf16.msra.mxu0 0
      %1814 = vmatpush.bf16.msra.mxu0 0
      %1815 = vmatpush.bf16.msra.mxu0 0
      %1816 = vmatpush.bf16.msra.mxu0 0
      %1817 = vmatpush.bf16.msra.mxu0 0
      %1818 = vmatpush.bf16.msra.mxu0 0
      %1819 = vmatpush.bf16.msra.mxu0 0
      %1820 = vmatpush.bf16.msra.mxu0 %v1811
      %1821 = vmatmul.bf16.gmra.mxu0 %v1808
      %v1822 = vpop.f32.mrf.mxu0
      %v1823 = vadd.f32 0.0, %v1822
      %v1824 = vpop.f32.mrf.mxu0
      %1825 = vdwg.mxu0
      %1826 = vst [vmem:[#allocation1] ss:$9 sm:$0xff] %v764
      %v1827 = vld [vmem:[#allocation1] sm:$0xff]
      %1829 = vrot.lane.b32.xlu0 %v1827, 112
      %v1830 = vpop.permute.xlu0 %1829
      %1831 = vst [vmem:[#allocation1] ss:$9 sm:$0xff] %v797
      %v1832 = vld [vmem:[#allocation1] sm:$0xff]
      %1834 = vrot.lane.b32.xlu0 %v1832, 80
      %v1835 = vpop.permute.xlu0 %1834
      %v1837 = vsel %vm824, %v1830, 0
      %v1840 = vsel %vm824, %v1835, 0
      %1842 = vmatpush.bf16.xpose.msra.mxu0 0
      %1843 = vmatpush.bf16.xpose.msra.mxu0 0
      %1844 = vmatpush.bf16.xpose.msra.mxu0 0
      %1845 = vmatpush.bf16.xpose.msra.mxu0 0
      %1846 = vmatpush.bf16.xpose.msra.mxu0 0
      %1847 = vmatpush.bf16.xpose.msra.mxu0 0
      %1848 = vmatpush.bf16.xpose.msra.mxu0 0
      %1849 = vmatpush.bf16.xpose.msra.mxu0 %v1840
      %1850 = vmatmul.bf16.gmra.mxu0 %v1837
      %v1851 = vpop.f32.mrf.mxu0
      %v1852 = vadd.f32 0.0, %v1851
      %v1853 = vpop.f32.mrf.mxu0
      %1854 = vdwg.mxu0
      %1855 = vst [vmem:[#allocation1] ss:$9 sm:$0xff] %v768
      %v1856 = vld [vmem:[#allocation1] sm:$0xff]
      %1858 = vrot.lane.b32.xlu0 %v1856, 112
      %v1859 = vpop.permute.xlu0 %1858
      %1860 = vst [vmem:[#allocation1] ss:$9 sm:$0xff] %v800
      %v1861 = vld [vmem:[#allocation1] sm:$0xff]
      %1863 = vrot.lane.b32.xlu0 %v1861, 80
      %v1864 = vpop.permute.xlu0 %1863
      %v1866 = vsel %vm824, %v1859, 0
      %v1869 = vsel %vm824, %v1864, 0
      %1871 = vmatpush.bf16.xpose.msra.mxu0 0
      %1872 = vmatpush.bf16.xpose.msra.mxu0 0
      %1873 = vmatpush.bf16.xpose.msra.mxu0 0
      %1874 = vmatpush.bf16.xpose.msra.mxu0 0
      %1875 = vmatpush.bf16.xpose.msra.mxu0 0
      %1876 = vmatpush.bf16.xpose.msra.mxu0 0
      %1877 = vmatpush.bf16.xpose.msra.mxu0 0
      %1878 = vmatpush.bf16.xpose.msra.mxu0 %v1869
      %1879 = vmatmul.bf16.gmra.mxu0 %v1866
      %v1880 = vpop.f32.mrf.mxu0
      %v1881 = vadd.f32 0.0, %v1880
      %v1882 = vpop.f32.mrf.mxu0
      %1883 = vdwg.mxu0
      %1884 = vst [vmem:[#allocation1] ss:$9 sm:$0xff] %v772
      %v1885 = vld [vmem:[#allocation1] sm:$0xff]
      %1887 = vrot.lane.b32.xlu0 %v1885, 112
      %v1888 = vpop.permute.xlu0 %1887
      %1889 = vst [vmem:[#allocation1] ss:$9 sm:$0xff] %v803
      %v1890 = vld [vmem:[#allocation1] sm:$0xff]
      %1892 = vrot.lane.b32.xlu0 %v1890, 80
      %v1893 = vpop.permute.xlu0 %1892
      %v1895 = vsel %vm824, %v1888, 0
      %v1898 = vsel %vm824, %v1893, 0
      %1900 = vmatpush.bf16.xpose.msra.mxu0 0
      %1901 = vmatpush.bf16.xpose.msra.mxu0 0
      %1902 = vmatpush.bf16.xpose.msra.mxu0 0
      %1903 = vmatpush.bf16.xpose.msra.mxu0 0
      %1904 = vmatpush.bf16.xpose.msra.mxu0 0
      %1905 = vmatpush.bf16.xpose.msra.mxu0 0
      %1906 = vmatpush.bf16.xpose.msra.mxu0 0
      %1907 = vmatpush.bf16.xpose.msra.mxu0 %v1898
      %1908 = vmatmul.bf16.gmra.mxu0 %v1895
      %v1909 = vpop.f32.mrf.mxu0
      %v1910 = vadd.f32 0.0, %v1909
      %v1911 = vpop.f32.mrf.mxu0
      %1912 = vdwg.mxu0
      %1913 = vst [vmem:[#allocation1] ss:$9 sm:$0xff] %v776
      %v1914 = vld [vmem:[#allocation1] sm:$0xff]
      %1916 = vrot.lane.b32.xlu0 %v1914, 112
      %v1917 = vpop.permute.xlu0 %1916
      %1918 = vst [vmem:[#allocation1] ss:$9 sm:$0xff] %v806
      %v1919 = vld [vmem:[#allocation1] sm:$0xff]
      %1921 = vrot.lane.b32.xlu0 %v1919, 80
      %v1922 = vpop.permute.xlu0 %1921
      %v1924 = vsel %vm824, %v1917, 0
      %v1927 = vsel %vm824, %v1922, 0
      %1929 = vmatpush.bf16.xpose.msra.mxu0 0
      %1930 = vmatpush.bf16.xpose.msra.mxu0 0
      %1931 = vmatpush.bf16.xpose.msra.mxu0 0
      %1932 = vmatpush.bf16.xpose.msra.mxu0 0
      %1933 = vmatpush.bf16.xpose.msra.mxu0 0
      %1934 = vmatpush.bf16.xpose.msra.mxu0 0
      %1935 = vmatpush.bf16.xpose.msra.mxu0 0
      %1936 = vmatpush.bf16.xpose.msra.mxu0 %v1927
      %1937 = vmatmul.bf16.gmra.mxu0 %v1924
      %v1938 = vpop.f32.mrf.mxu0
      %v1939 = vadd.f32 0.0, %v1938
      %v1940 = vpop.f32.mrf.mxu0
      %1941 = vdwg.mxu0
      %1942 = vst [vmem:[#allocation1] ss:$9 sm:$0xff] %v779
      %v1943 = vld [vmem:[#allocation1] sm:$0xff]
      %1945 = vrot.lane.b32.xlu0 %v1943, 112
      %v1946 = vpop.permute.xlu0 %1945
      %1947 = vst [vmem:[#allocation1] ss:$9 sm:$0xff] %v809
      %v1948 = vld [vmem:[#allocation1] sm:$0xff]
      %1950 = vrot.lane.b32.xlu0 %v1948, 80
      %v1951 = vpop.permute.xlu0 %1950
      %v1953 = vsel %vm824, %v1946, 0
      %v1956 = vsel %vm824, %v1951, 0
      %1958 = vmatpush.bf16.xpose.msra.mxu0 0
      %1959 = vmatpush.bf16.xpose.msra.mxu0 0
      %1960 = vmatpush.bf16.xpose.msra.mxu0 0
      %1961 = vmatpush.bf16.xpose.msra.mxu0 0
      %1962 = vmatpush.bf16.xpose.msra.mxu0 0
      %1963 = vmatpush.bf16.xpose.msra.mxu0 0
      %1964 = vmatpush.bf16.xpose.msra.mxu0 0
      %1965 = vmatpush.bf16.xpose.msra.mxu0 %v1956
      %1966 = vmatmul.bf16.gmra.mxu0 %v1953
      %v1967 = vpop.f32.mrf.mxu0
      %v1968 = vadd.f32 0.0, %v1967
      %v1969 = vpop.f32.mrf.mxu0
      %1970 = vdwg.mxu0
      %1971 = vst [vmem:[#allocation1] ss:$9 sm:$0xff] %v782
      %v1972 = vld [vmem:[#allocation1] sm:$0xff]
      %1974 = vrot.lane.b32.xlu0 %v1972, 112
      %v1975 = vpop.permute.xlu0 %1974
      %1976 = vst [vmem:[#allocation1] ss:$9 sm:$0xff] %v812
      %v1977 = vld [vmem:[#allocation1] sm:$0xff]
      %1979 = vrot.lane.b32.xlu0 %v1977, 80
      %v1980 = vpop.permute.xlu0 %1979
      %v1982 = vsel %vm824, %v1975, 0
      %v1985 = vsel %vm824, %v1980, 0
      %1987 = vmatpush.bf16.xpose.msra.mxu0 0
      %1988 = vmatpush.bf16.xpose.msra.mxu0 0
      %1989 = vmatpush.bf16.xpose.msra.mxu0 0
      %1990 = vmatpush.bf16.xpose.msra.mxu0 0
      %1991 = vmatpush.bf16.xpose.msra.mxu0 0
      %1992 = vmatpush.bf16.xpose.msra.mxu0 0
      %1993 = vmatpush.bf16.xpose.msra.mxu0 0
      %1994 = vmatpush.bf16.xpose.msra.mxu0 %v1985
      %1995 = vmatmul.bf16.gmra.mxu0 %v1982
      %v1996 = vpop.f32.mrf.mxu0
      %v1997 = vadd.f32 0.0, %v1996
      %v1998 = vpop.f32.mrf.mxu0
      %1999 = vdwg.mxu0
      %2000 = vst [vmem:[#allocation1] ss:$9 sm:$0xff] %v785
      %v2001 = vld [vmem:[#allocation1] sm:$0xff]
      %2003 = vrot.lane.b32.xlu0 %v2001, 112
      %v2004 = vpop.permute.xlu0 %2003
      %2005 = vst [vmem:[#allocation1] ss:$9 sm:$0xff] %v815
      %v2006 = vld [vmem:[#allocation1] sm:$0xff]
      %2008 = vrot.lane.b32.xlu0 %v2006, 80
      %v2009 = vpop.permute.xlu0 %2008
      %v2011 = vsel %vm824, %v2004, 0
      %v2014 = vsel %vm824, %v2009, 0
      %2016 = vmatpush.bf16.xpose.msra.mxu0 0
      %2017 = vmatpush.bf16.xpose.msra.mxu0 0
      %2018 = vmatpush.bf16.xpose.msra.mxu0 0
      %2019 = vmatpush.bf16.xpose.msra.mxu0 0
      %2020 = vmatpush.bf16.xpose.msra.mxu0 0
      %2021 = vmatpush.bf16.xpose.msra.mxu0 0
      %2022 = vmatpush.bf16.xpose.msra.mxu0 0
      %2023 = vmatpush.bf16.xpose.msra.mxu0 %v2014
      %2024 = vmatmul.bf16.gmra.mxu0 %v2011
      %v2025 = vpop.f32.mrf.mxu0
      %v2026 = vadd.f32 0.0, %v2025
      %v2027 = vpop.f32.mrf.mxu0
      %2028 = vdwg.mxu0
      %2029 = vst [vmem:[#allocation1] ss:$9 sm:$0xff] %v788
      %v2030 = vld [vmem:[#allocation1] sm:$0xff]
      %2032 = vrot.lane.b32.xlu0 %v2030, 112
      %v2033 = vpop.permute.xlu0 %2032
      %2034 = vst [vmem:[#allocation1] ss:$9 sm:$0xff] %v818
      %v2035 = vld [vmem:[#allocation1] sm:$0xff]
      %2037 = vrot.lane.b32.xlu0 %v2035, 80
      %v2038 = vpop.permute.xlu0 %2037
      %v2040 = vsel %vm824, %v2033, 0
      %v2043 = vsel %vm824, %v2038, 0
      %2045 = vmatpush.bf16.xpose.msra.mxu0 0
      %2046 = vmatpush.bf16.xpose.msra.mxu0 0
      %2047 = vmatpush.bf16.xpose.msra.mxu0 0
      %2048 = vmatpush.bf16.xpose.msra.mxu0 0
      %2049 = vmatpush.bf16.xpose.msra.mxu0 0
      %2050 = vmatpush.bf16.xpose.msra.mxu0 0
      %2051 = vmatpush.bf16.xpose.msra.mxu0 0
      %2052 = vmatpush.bf16.xpose.msra.mxu0 %v2043
      %2053 = vmatmul.bf16.gmra.mxu0 %v2040
      %v2054 = vpop.f32.mrf.mxu0
      %v2055 = vadd.f32 0.0, %v2054
      %v2056 = vpop.f32.mrf.mxu0
      %2057 = vdwg.mxu0
      %v2058 = vsel %vm1016, %v1852, -inf
      %2059 = vmax.xlane.f32.xlu0 %v2058
      %v2060 = vpop.xlane.xlu0 %2059
      %v2061 = vsel %vm1016, %v1881, -inf
      %2062 = vmax.xlane.f32.xlu0 %v2061
      %v2063 = vpop.xlane.xlu0 %2062
      %v2064 = vsel %vm1016, %v1910, -inf
      %2065 = vmax.xlane.f32.xlu0 %v2064
      %v2066 = vpop.xlane.xlu0 %2065
      %v2067 = vsel %vm1016, %v1939, -inf
      %2068 = vmax.xlane.f32.xlu0 %v2067
      %v2069 = vpop.xlane.xlu0 %2068
      %v2070 = vsel %vm1016, %v1968, -inf
      %2071 = vmax.xlane.f32.xlu0 %v2070
      %v2072 = vpop.xlane.xlu0 %2071
      %v2073 = vsel %vm1016, %v1997, -inf
      %2074 = vmax.xlane.f32.xlu0 %v2073
      %v2075 = vpop.xlane.xlu0 %2074
      %v2076 = vsel %vm1016, %v2026, -inf
      %2077 = vmax.xlane.f32.xlu0 %v2076
      %v2078 = vpop.xlane.xlu0 %2077
      %v2079 = vsel %vm1016, %v2055, -inf
      %2080 = vmax.xlane.f32.xlu0 %v2079
      %v2081 = vpop.xlane.xlu0 %2080
      %v2082 = vsub.f32 %v1852, %v2060
      %v2083 = vsub.f32 %v1881, %v2063
      %v2084 = vsub.f32 %v1910, %v2066
      %v2085 = vsub.f32 %v1939, %v2069
      %v2086 = vsub.f32 %v1968, %v2072
      %v2087 = vsub.f32 %v1997, %v2075
      %v2088 = vsub.f32 %v2026, %v2078
      %v2089 = vsub.f32 %v2055, %v2081
      %v2090 = vmul.f32 %v2082, 1.442695
      %v2091 = vpow.pop %v2090
      %v2092 = vmul.f32 %v2083, 1.442695
      %v2093 = vpow.pop %v2092
      %v2094 = vmul.f32 %v2084, 1.442695
      %v2095 = vpow.pop %v2094
      %v2096 = vmul.f32 %v2085, 1.442695
      %v2097 = vpow.pop %v2096
      %v2098 = vmul.f32 %v2086, 1.442695
      %v2099 = vpow.pop %v2098
      %v2100 = vmul.f32 %v2087, 1.442695
      %v2101 = vpow.pop %v2100
      %v2102 = vmul.f32 %v2088, 1.442695
      %v2103 = vpow.pop %v2102
      %v2104 = vmul.f32 %v2089, 1.442695
      %v2105 = vpow.pop %v2104
      %v2106 = vsel %vm1016, %v2091, 0.0
      %2107 = vadd.xlane.f32.xlu0 %v2106
      %v2108 = vpop.xlane.xlu0 %2107
      %v2109 = vsel %vm1016, %v2093, 0.0
      %2110 = vadd.xlane.f32.xlu0 %v2109
      %v2111 = vpop.xlane.xlu0 %2110
      %v2112 = vsel %vm1016, %v2095, 0.0
      %2113 = vadd.xlane.f32.xlu0 %v2112
      %v2114 = vpop.xlane.xlu0 %2113
      %v2115 = vsel %vm1016, %v2097, 0.0
      %2116 = vadd.xlane.f32.xlu0 %v2115
      %v2117 = vpop.xlane.xlu0 %2116
      %v2118 = vsel %vm1016, %v2099, 0.0
      %2119 = vadd.xlane.f32.xlu0 %v2118
      %v2120 = vpop.xlane.xlu0 %2119
      %v2121 = vsel %vm1016, %v2101, 0.0
      %2122 = vadd.xlane.f32.xlu0 %v2121
      %v2123 = vpop.xlane.xlu0 %2122
      %v2124 = vsel %vm1016, %v2103, 0.0
      %2125 = vadd.xlane.f32.xlu0 %v2124
      %v2126 = vpop.xlane.xlu0 %2125
      %v2127 = vsel %vm1016, %v2105, 0.0
      %2128 = vadd.xlane.f32.xlu0 %v2127
      %v2129 = vpop.xlane.xlu0 %2128
      %v2130 = vrcp.pop %v2108
      %v2131 = vrcp.pop %v2111
      %v2132 = vrcp.pop %v2114
      %v2133 = vrcp.pop %v2117
      %v2134 = vrcp.pop %v2120
      %v2135 = vrcp.pop %v2123
      %v2136 = vrcp.pop %v2126
      %v2137 = vrcp.pop %v2129
      %v2138 = vmul.f32 %v2091, %v2130
      %v2139 = vmul.f32 %v2093, %v2131
      %v2140 = vmul.f32 %v2095, %v2132
      %v2141 = vmul.f32 %v2097, %v2133
      %v2142 = vmul.f32 %v2099, %v2134
      %v2143 = vmul.f32 %v2101, %v2135
      %v2144 = vmul.f32 %v2103, %v2136
      %v2145 = vmul.f32 %v2105, %v2137
      %v2146 = vpack.c.bf16 %v2138, %v2138
      %v2147 = vpack.c.bf16 %v2139, %v2139
      %v2148 = vpack.c.bf16 %v2140, %v2140
      %v2149 = vpack.c.bf16 %v2141, %v2141
      %v2150 = vpack.c.bf16 %v2142, %v2142
      %v2151 = vpack.c.bf16 %v2143, %v2143
      %v2152 = vpack.c.bf16 %v2144, %v2144
      %v2153 = vpack.c.bf16 %v2145, %v2145
      %2154 = vst [vmem:[#allocation1] ss:$9 sm:$0xff] %v797
      %v2155 = vld [vmem:[#allocation1] sm:$0xff]
      %2157 = vrot.lane.b32.xlu0 %v2155, 48
      %v2158 = vpop.permute.xlu0 %2157
      %v2160 = vsel %vm1118, %v2146, 0
      %v2163 = vsel %vm761, %v2158, 0
      %2165 = vmatpush.bf16.msra.mxu0 0
      %2166 = vmatpush.bf16.msra.mxu0 0
      %2167 = vmatpush.bf16.msra.mxu0 0
      %2168 = vmatpush.bf16.msra.mxu0 0
      %2169 = vmatpush.bf16.msra.mxu0 0
      %2170 = vmatpush.bf16.msra.mxu0 0
      %2171 = vmatpush.bf16.msra.mxu0 0
      %2172 = vmatpush.bf16.msra.mxu0 %v2163
      %2173 = vmatmul.bf16.gmra.mxu0 %v2160
      %v2174 = vpop.f32.mrf.mxu0
      %v2175 = vadd.f32 0.0, %v2174
      %v2176 = vpop.f32.mrf.mxu0
      %2177 = vdwg.mxu0
      %2178 = vst [vmem:[#allocation1] ss:$9 sm:$0xff] %v800
      %v2179 = vld [vmem:[#allocation1] sm:$0xff]
      %2181 = vrot.lane.b32.xlu0 %v2179, 48
      %v2182 = vpop.permute.xlu0 %2181
      %v2184 = vsel %vm1118, %v2147, 0
      %v2187 = vsel %vm761, %v2182, 0
      %2189 = vmatpush.bf16.msra.mxu0 0
      %2190 = vmatpush.bf16.msra.mxu0 0
      %2191 = vmatpush.bf16.msra.mxu0 0
      %2192 = vmatpush.bf16.msra.mxu0 0
      %2193 = vmatpush.bf16.msra.mxu0 0
      %2194 = vmatpush.bf16.msra.mxu0 0
      %2195 = vmatpush.bf16.msra.mxu0 0
      %2196 = vmatpush.bf16.msra.mxu0 %v2187
      %2197 = vmatmul.bf16.gmra.mxu0 %v2184
      %v2198 = vpop.f32.mrf.mxu0
      %v2199 = vadd.f32 0.0, %v2198
      %v2200 = vpop.f32.mrf.mxu0
      %2201 = vdwg.mxu0
      %2202 = vst [vmem:[#allocation1] ss:$9 sm:$0xff] %v803
      %v2203 = vld [vmem:[#allocation1] sm:$0xff]
      %2205 = vrot.lane.b32.xlu0 %v2203, 48
      %v2206 = vpop.permute.xlu0 %2205
      %v2208 = vsel %vm1118, %v2148, 0
      %v2211 = vsel %vm761, %v2206, 0
      %2213 = vmatpush.bf16.msra.mxu0 0
      %2214 = vmatpush.bf16.msra.mxu0 0
      %2215 = vmatpush.bf16.msra.mxu0 0
      %2216 = vmatpush.bf16.msra.mxu0 0
      %2217 = vmatpush.bf16.msra.mxu0 0
      %2218 = vmatpush.bf16.msra.mxu0 0
      %2219 = vmatpush.bf16.msra.mxu0 0
      %2220 = vmatpush.bf16.msra.mxu0 %v2211
      %2221 = vmatmul.bf16.gmra.mxu0 %v2208
      %v2222 = vpop.f32.mrf.mxu0
      %v2223 = vadd.f32 0.0, %v2222
      %v2224 = vpop.f32.mrf.mxu0
      %2225 = vdwg.mxu0
      %2226 = vst [vmem:[#allocation1] ss:$9 sm:$0xff] %v806
      %v2227 = vld [vmem:[#allocation1] sm:$0xff]
      %2229 = vrot.lane.b32.xlu0 %v2227, 48
      %v2230 = vpop.permute.xlu0 %2229
      %v2232 = vsel %vm1118, %v2149, 0
      %v2235 = vsel %vm761, %v2230, 0
      %2237 = vmatpush.bf16.msra.mxu0 0
      %2238 = vmatpush.bf16.msra.mxu0 0
      %2239 = vmatpush.bf16.msra.mxu0 0
      %2240 = vmatpush.bf16.msra.mxu0 0
      %2241 = vmatpush.bf16.msra.mxu0 0
      %2242 = vmatpush.bf16.msra.mxu0 0
      %2243 = vmatpush.bf16.msra.mxu0 0
      %2244 = vmatpush.bf16.msra.mxu0 %v2235
      %2245 = vmatmul.bf16.gmra.mxu0 %v2232
      %v2246 = vpop.f32.mrf.mxu0
      %v2247 = vadd.f32 0.0, %v2246
      %v2248 = vpop.f32.mrf.mxu0
      %2249 = vdwg.mxu0
      %2250 = vst [vmem:[#allocation1] ss:$9 sm:$0xff] %v809
      %v2251 = vld [vmem:[#allocation1] sm:$0xff]
      %2253 = vrot.lane.b32.xlu0 %v2251, 48
      %v2254 = vpop.permute.xlu0 %2253
      %v2256 = vsel %vm1118, %v2150, 0
      %v2259 = vsel %vm761, %v2254, 0
      %2261 = vmatpush.bf16.msra.mxu0 0
      %2262 = vmatpush.bf16.msra.mxu0 0
      %2263 = vmatpush.bf16.msra.mxu0 0
      %2264 = vmatpush.bf16.msra.mxu0 0
      %2265 = vmatpush.bf16.msra.mxu0 0
      %2266 = vmatpush.bf16.msra.mxu0 0
      %2267 = vmatpush.bf16.msra.mxu0 0
      %2268 = vmatpush.bf16.msra.mxu0 %v2259
      %2269 = vmatmul.bf16.gmra.mxu0 %v2256
      %v2270 = vpop.f32.mrf.mxu0
      %v2271 = vadd.f32 0.0, %v2270
      %v2272 = vpop.f32.mrf.mxu0
      %2273 = vdwg.mxu0
      %2274 = vst [vmem:[#allocation1] ss:$9 sm:$0xff] %v812
      %v2275 = vld [vmem:[#allocation1] sm:$0xff]
      %2277 = vrot.lane.b32.xlu0 %v2275, 48
      %v2278 = vpop.permute.xlu0 %2277
      %v2280 = vsel %vm1118, %v2151, 0
      %v2283 = vsel %vm761, %v2278, 0
      %2285 = vmatpush.bf16.msra.mxu0 0
      %2286 = vmatpush.bf16.msra.mxu0 0
      %2287 = vmatpush.bf16.msra.mxu0 0
      %2288 = vmatpush.bf16.msra.mxu0 0
      %2289 = vmatpush.bf16.msra.mxu0 0
      %2290 = vmatpush.bf16.msra.mxu0 0
      %2291 = vmatpush.bf16.msra.mxu0 0
      %2292 = vmatpush.bf16.msra.mxu0 %v2283
      %2293 = vmatmul.bf16.gmra.mxu0 %v2280
      %v2294 = vpop.f32.mrf.mxu0
      %v2295 = vadd.f32 0.0, %v2294
      %v2296 = vpop.f32.mrf.mxu0
      %2297 = vdwg.mxu0
      %2298 = vst [vmem:[#allocation1] ss:$9 sm:$0xff] %v815
      %v2299 = vld [vmem:[#allocation1] sm:$0xff]
      %2301 = vrot.lane.b32.xlu0 %v2299, 48
      %v2302 = vpop.permute.xlu0 %2301
      %v2304 = vsel %vm1118, %v2152, 0
      %v2307 = vsel %vm761, %v2302, 0
      %2309 = vmatpush.bf16.msra.mxu0 0
      %2310 = vmatpush.bf16.msra.mxu0 0
      %2311 = vmatpush.bf16.msra.mxu0 0
      %2312 = vmatpush.bf16.msra.mxu0 0
      %2313 = vmatpush.bf16.msra.mxu0 0
      %2314 = vmatpush.bf16.msra.mxu0 0
      %2315 = vmatpush.bf16.msra.mxu0 0
      %2316 = vmatpush.bf16.msra.mxu0 %v2307
      %2317 = vmatmul.bf16.gmra.mxu0 %v2304
      %v2318 = vpop.f32.mrf.mxu0
      %v2319 = vadd.f32 0.0, %v2318
      %v2320 = vpop.f32.mrf.mxu0
      %2321 = vdwg.mxu0
      %2322 = vst [vmem:[#allocation1] ss:$9 sm:$0xff] %v818
      %v2323 = vld [vmem:[#allocation1] sm:$0xff]
      %2325 = vrot.lane.b32.xlu0 %v2323, 48
      %v2326 = vpop.permute.xlu0 %2325
      %v2328 = vsel %vm1118, %v2153, 0
      %v2331 = vsel %vm761, %v2326, 0
      %2333 = vmatpush.bf16.msra.mxu0 0
      %2334 = vmatpush.bf16.msra.mxu0 0
      %2335 = vmatpush.bf16.msra.mxu0 0
      %2336 = vmatpush.bf16.msra.mxu0 0
      %2337 = vmatpush.bf16.msra.mxu0 0
      %2338 = vmatpush.bf16.msra.mxu0 0
      %2339 = vmatpush.bf16.msra.mxu0 0
      %2340 = vmatpush.bf16.msra.mxu0 %v2331
      %2341 = vmatmul.bf16.gmra.mxu0 %v2328
      %v2342 = vpop.f32.mrf.mxu0
      %v2343 = vadd.f32 0.0, %v2342
      %v2344 = vpop.f32.mrf.mxu0
      %2345 = vdwg.mxu0
      %2346 = vst [vmem:[#allocation1] ss:$9 sm:$0xff] %v764
      %v2347 = vld [vmem:[#allocation1] sm:$0xff]
      %2349 = vrot.lane.b32.xlu0 %v2347, 104
      %v2350 = vpop.permute.xlu0 %2349
      %2351 = vst [vmem:[#allocation1] ss:$9 sm:$0xff] %v797
      %v2352 = vld [vmem:[#allocation1] sm:$0xff]
      %2354 = vrot.lane.b32.xlu0 %v2352, 72
      %v2355 = vpop.permute.xlu0 %2354
      %v2357 = vsel %vm824, %v2350, 0
      %v2360 = vsel %vm824, %v2355, 0
      %2362 = vmatpush.bf16.xpose.msra.mxu0 0
      %2363 = vmatpush.bf16.xpose.msra.mxu0 0
      %2364 = vmatpush.bf16.xpose.msra.mxu0 0
      %2365 = vmatpush.bf16.xpose.msra.mxu0 0
      %2366 = vmatpush.bf16.xpose.msra.mxu0 0
      %2367 = vmatpush.bf16.xpose.msra.mxu0 0
      %2368 = vmatpush.bf16.xpose.msra.mxu0 0
      %2369 = vmatpush.bf16.xpose.msra.mxu0 %v2360
      %2370 = vmatmul.bf16.gmra.mxu0 %v2357
      %v2371 = vpop.f32.mrf.mxu0
      %v2372 = vadd.f32 0.0, %v2371
      %v2373 = vpop.f32.mrf.mxu0
      %2374 = vdwg.mxu0
      %2375 = vst [vmem:[#allocation1] ss:$9 sm:$0xff] %v768
      %v2376 = vld [vmem:[#allocation1] sm:$0xff]
      %2378 = vrot.lane.b32.xlu0 %v2376, 104
      %v2379 = vpop.permute.xlu0 %2378
      %2380 = vst [vmem:[#allocation1] ss:$9 sm:$0xff] %v800
      %v2381 = vld [vmem:[#allocation1] sm:$0xff]
      %2383 = vrot.lane.b32.xlu0 %v2381, 72
      %v2384 = vpop.permute.xlu0 %2383
      %v2386 = vsel %vm824, %v2379, 0
      %v2389 = vsel %vm824, %v2384, 0
      %2391 = vmatpush.bf16.xpose.msra.mxu0 0
      %2392 = vmatpush.bf16.xpose.msra.mxu0 0
      %2393 = vmatpush.bf16.xpose.msra.mxu0 0
      %2394 = vmatpush.bf16.xpose.msra.mxu0 0
      %2395 = vmatpush.bf16.xpose.msra.mxu0 0
      %2396 = vmatpush.bf16.xpose.msra.mxu0 0
      %2397 = vmatpush.bf16.xpose.msra.mxu0 0
      %2398 = vmatpush.bf16.xpose.msra.mxu0 %v2389
      %2399 = vmatmul.bf16.gmra.mxu0 %v2386
      %v2400 = vpop.f32.mrf.mxu0
      %v2401 = vadd.f32 0.0, %v2400
      %v2402 = vpop.f32.mrf.mxu0
      %2403 = vdwg.mxu0
      %2404 = vst [vmem:[#allocation1] ss:$9 sm:$0xff] %v772
      %v2405 = vld [vmem:[#allocation1] sm:$0xff]
      %2407 = vrot.lane.b32.xlu0 %v2405, 104
      %v2408 = vpop.permute.xlu0 %2407
      %2409 = vst [vmem:[#allocation1] ss:$9 sm:$0xff] %v803
      %v2410 = vld [vmem:[#allocation1] sm:$0xff]
      %2412 = vrot.lane.b32.xlu0 %v2410, 72
      %v2413 = vpop.permute.xlu0 %2412
      %v2415 = vsel %vm824, %v2408, 0
      %v2418 = vsel %vm824, %v2413, 0
      %2420 = vmatpush.bf16.xpose.msra.mxu0 0
      %2421 = vmatpush.bf16.xpose.msra.mxu0 0
      %2422 = vmatpush.bf16.xpose.msra.mxu0 0
      %2423 = vmatpush.bf16.xpose.msra.mxu0 0
      %2424 = vmatpush.bf16.xpose.msra.mxu0 0
      %2425 = vmatpush.bf16.xpose.msra.mxu0 0
      %2426 = vmatpush.bf16.xpose.msra.mxu0 0
      %2427 = vmatpush.bf16.xpose.msra.mxu0 %v2418
      %2428 = vmatmul.bf16.gmra.mxu0 %v2415
      %v2429 = vpop.f32.mrf.mxu0
      %v2430 = vadd.f32 0.0, %v2429
      %v2431 = vpop.f32.mrf.mxu0
      %2432 = vdwg.mxu0
      %2433 = vst [vmem:[#allocation1] ss:$9 sm:$0xff] %v776
      %v2434 = vld [vmem:[#allocation1] sm:$0xff]
      %2436 = vrot.lane.b32.xlu0 %v2434, 104
      %v2437 = vpop.permute.xlu0 %2436
      %2438 = vst [vmem:[#allocation1] ss:$9 sm:$0xff] %v806
      %v2439 = vld [vmem:[#allocation1] sm:$0xff]
      %2441 = vrot.lane.b32.xlu0 %v2439, 72
      %v2442 = vpop.permute.xlu0 %2441
      %v2444 = vsel %vm824, %v2437, 0
      %v2447 = vsel %vm824, %v2442, 0
      %2449 = vmatpush.bf16.xpose.msra.mxu0 0
      %2450 = vmatpush.bf16.xpose.msra.mxu0 0
      %2451 = vmatpush.bf16.xpose.msra.mxu0 0
      %2452 = vmatpush.bf16.xpose.msra.mxu0 0
      %2453 = vmatpush.bf16.xpose.msra.mxu0 0
      %2454 = vmatpush.bf16.xpose.msra.mxu0 0
      %2455 = vmatpush.bf16.xpose.msra.mxu0 0
      %2456 = vmatpush.bf16.xpose.msra.mxu0 %v2447
      %2457 = vmatmul.bf16.gmra.mxu0 %v2444
      %v2458 = vpop.f32.mrf.mxu0
      %v2459 = vadd.f32 0.0, %v2458
      %v2460 = vpop.f32.mrf.mxu0
      %2461 = vdwg.mxu0
      %2462 = vst [vmem:[#allocation1] ss:$9 sm:$0xff] %v779
      %v2463 = vld [vmem:[#allocation1] sm:$0xff]
      %2465 = vrot.lane.b32.xlu0 %v2463, 104
      %v2466 = vpop.permute.xlu0 %2465
      %2467 = vst [vmem:[#allocation1] ss:$9 sm:$0xff] %v809
      %v2468 = vld [vmem:[#allocation1] sm:$0xff]
      %2470 = vrot.lane.b32.xlu0 %v2468, 72
      %v2471 = vpop.permute.xlu0 %2470
      %v2473 = vsel %vm824, %v2466, 0
      %v2476 = vsel %vm824, %v2471, 0
      %2478 = vmatpush.bf16.xpose.msra.mxu0 0
      %2479 = vmatpush.bf16.xpose.msra.mxu0 0
      %2480 = vmatpush.bf16.xpose.msra.mxu0 0
      %2481 = vmatpush.bf16.xpose.msra.mxu0 0
      %2482 = vmatpush.bf16.xpose.msra.mxu0 0
      %2483 = vmatpush.bf16.xpose.msra.mxu0 0
      %2484 = vmatpush.bf16.xpose.msra.mxu0 0
      %2485 = vmatpush.bf16.xpose.msra.mxu0 %v2476
      %2486 = vmatmul.bf16.gmra.mxu0 %v2473
      %v2487 = vpop.f32.mrf.mxu0
      %v2488 = vadd.f32 0.0, %v2487
      %v2489 = vpop.f32.mrf.mxu0
      %2490 = vdwg.mxu0
      %2491 = vst [vmem:[#allocation1] ss:$9 sm:$0xff] %v782
      %v2492 = vld [vmem:[#allocation1] sm:$0xff]
      %2494 = vrot.lane.b32.xlu0 %v2492, 104
      %v2495 = vpop.permute.xlu0 %2494
      %2496 = vst [vmem:[#allocation1] ss:$9 sm:$0xff] %v812
      %v2497 = vld [vmem:[#allocation1] sm:$0xff]
      %2499 = vrot.lane.b32.xlu0 %v2497, 72
      %v2500 = vpop.permute.xlu0 %2499
      %v2502 = vsel %vm824, %v2495, 0
      %v2505 = vsel %vm824, %v2500, 0
      %2507 = vmatpush.bf16.xpose.msra.mxu0 0
      %2508 = vmatpush.bf16.xpose.msra.mxu0 0
      %2509 = vmatpush.bf16.xpose.msra.mxu0 0
      %2510 = vmatpush.bf16.xpose.msra.mxu0 0
      %2511 = vmatpush.bf16.xpose.msra.mxu0 0
      %2512 = vmatpush.bf16.xpose.msra.mxu0 0
      %2513 = vmatpush.bf16.xpose.msra.mxu0 0
      %2514 = vmatpush.bf16.xpose.msra.mxu0 %v2505
      %2515 = vmatmul.bf16.gmra.mxu0 %v2502
      %v2516 = vpop.f32.mrf.mxu0
      %v2517 = vadd.f32 0.0, %v2516
      %v2518 = vpop.f32.mrf.mxu0
      %2519 = vdwg.mxu0
      %2520 = vst [vmem:[#allocation1] ss:$9 sm:$0xff] %v785
      %v2521 = vld [vmem:[#allocation1] sm:$0xff]
      %2523 = vrot.lane.b32.xlu0 %v2521, 104
      %v2524 = vpop.permute.xlu0 %2523
      %2525 = vst [vmem:[#allocation1] ss:$9 sm:$0xff] %v815
      %v2526 = vld [vmem:[#allocation1] sm:$0xff]
      %2528 = vrot.lane.b32.xlu0 %v2526, 72
      %v2529 = vpop.permute.xlu0 %2528
      %v2531 = vsel %vm824, %v2524, 0
      %v2534 = vsel %vm824, %v2529, 0
      %2536 = vmatpush.bf16.xpose.msra.mxu0 0
      %2537 = vmatpush.bf16.xpose.msra.mxu0 0
      %2538 = vmatpush.bf16.xpose.msra.mxu0 0
      %2539 = vmatpush.bf16.xpose.msra.mxu0 0
      %2540 = vmatpush.bf16.xpose.msra.mxu0 0
      %2541 = vmatpush.bf16.xpose.msra.mxu0 0
      %2542 = vmatpush.bf16.xpose.msra.mxu0 0
      %2543 = vmatpush.bf16.xpose.msra.mxu0 %v2534
      %2544 = vmatmul.bf16.gmra.mxu0 %v2531
      %v2545 = vpop.f32.mrf.mxu0
      %v2546 = vadd.f32 0.0, %v2545
      %v2547 = vpop.f32.mrf.mxu0
      %2548 = vdwg.mxu0
      %2549 = vst [vmem:[#allocation1] ss:$9 sm:$0xff] %v788
      %v2550 = vld [vmem:[#allocation1] sm:$0xff]
      %2552 = vrot.lane.b32.xlu0 %v2550, 104
      %v2553 = vpop.permute.xlu0 %2552
      %2554 = vst [vmem:[#allocation1] ss:$9 sm:$0xff] %v818
      %v2555 = vld [vmem:[#allocation1] sm:$0xff]
      %2557 = vrot.lane.b32.xlu0 %v2555, 72
      %v2558 = vpop.permute.xlu0 %2557
      %v2560 = vsel %vm824, %v2553, 0
      %v2563 = vsel %vm824, %v2558, 0
      %2565 = vmatpush.bf16.xpose.msra.mxu0 0
      %2566 = vmatpush.bf16.xpose.msra.mxu0 0
      %2567 = vmatpush.bf16.xpose.msra.mxu0 0
      %2568 = vmatpush.bf16.xpose.msra.mxu0 0
      %2569 = vmatpush.bf16.xpose.msra.mxu0 0
      %2570 = vmatpush.bf16.xpose.msra.mxu0 0
      %2571 = vmatpush.bf16.xpose.msra.mxu0 0
      %2572 = vmatpush.bf16.xpose.msra.mxu0 %v2563
      %2573 = vmatmul.bf16.gmra.mxu0 %v2560
      %v2574 = vpop.f32.mrf.mxu0
      %v2575 = vadd.f32 0.0, %v2574
      %v2576 = vpop.f32.mrf.mxu0
      %2577 = vdwg.mxu0
      %v2578 = vsel %vm1016, %v2372, -inf
      %2579 = vmax.xlane.f32.xlu0 %v2578
      %v2580 = vpop.xlane.xlu0 %2579
      %v2581 = vsel %vm1016, %v2401, -inf
      %2582 = vmax.xlane.f32.xlu0 %v2581
      %v2583 = vpop.xlane.xlu0 %2582
      %v2584 = vsel %vm1016, %v2430, -inf
      %2585 = vmax.xlane.f32.xlu0 %v2584
      %v2586 = vpop.xlane.xlu0 %2585
      %v2587 = vsel %vm1016, %v2459, -inf
      %2588 = vmax.xlane.f32.xlu0 %v2587
      %v2589 = vpop.xlane.xlu0 %2588
      %v2590 = vsel %vm1016, %v2488, -inf
      %2591 = vmax.xlane.f32.xlu0 %v2590
      %v2592 = vpop.xlane.xlu0 %2591
      %v2593 = vsel %vm1016, %v2517, -inf
      %2594 = vmax.xlane.f32.xlu0 %v2593
      %v2595 = vpop.xlane.xlu0 %2594
      %v2596 = vsel %vm1016, %v2546, -inf
      %2597 = vmax.xlane.f32.xlu0 %v2596
      %v2598 = vpop.xlane.xlu0 %2597
      %v2599 = vsel %vm1016, %v2575, -inf
      %2600 = vmax.xlane.f32.xlu0 %v2599
      %v2601 = vpop.xlane.xlu0 %2600
      %v2602 = vsub.f32 %v2372, %v2580
      %v2603 = vsub.f32 %v2401, %v2583
      %v2604 = vsub.f32 %v2430, %v2586
      %v2605 = vsub.f32 %v2459, %v2589
      %v2606 = vsub.f32 %v2488, %v2592
      %v2607 = vsub.f32 %v2517, %v2595
      %v2608 = vsub.f32 %v2546, %v2598
      %v2609 = vsub.f32 %v2575, %v2601
      %v2610 = vmul.f32 %v2602, 1.442695
      %v2611 = vpow.pop %v2610
      %v2612 = vmul.f32 %v2603, 1.442695
      %v2613 = vpow.pop %v2612
      %v2614 = vmul.f32 %v2604, 1.442695
      %v2615 = vpow.pop %v2614
      %v2616 = vmul.f32 %v2605, 1.442695
      %v2617 = vpow.pop %v2616
      %v2618 = vmul.f32 %v2606, 1.442695
      %v2619 = vpow.pop %v2618
      %v2620 = vmul.f32 %v2607, 1.442695
      %v2621 = vpow.pop %v2620
      %v2622 = vmul.f32 %v2608, 1.442695
      %v2623 = vpow.pop %v2622
      %v2624 = vmul.f32 %v2609, 1.442695
      %v2625 = vpow.pop %v2624
      %v2626 = vsel %vm1016, %v2611, 0.0
      %2627 = vadd.xlane.f32.xlu0 %v2626
      %v2628 = vpop.xlane.xlu0 %2627
      %v2629 = vsel %vm1016, %v2613, 0.0
      %2630 = vadd.xlane.f32.xlu0 %v2629
      %v2631 = vpop.xlane.xlu0 %2630
      %v2632 = vsel %vm1016, %v2615, 0.0
      %2633 = vadd.xlane.f32.xlu0 %v2632
      %v2634 = vpop.xlane.xlu0 %2633
      %v2635 = vsel %vm1016, %v2617, 0.0
      %2636 = vadd.xlane.f32.xlu0 %v2635
      %v2637 = vpop.xlane.xlu0 %2636
      %v2638 = vsel %vm1016, %v2619, 0.0
      %2639 = vadd.xlane.f32.xlu0 %v2638
      %v2640 = vpop.xlane.xlu0 %2639
      %v2641 = vsel %vm1016, %v2621, 0.0
      %2642 = vadd.xlane.f32.xlu0 %v2641
      %v2643 = vpop.xlane.xlu0 %2642
      %v2644 = vsel %vm1016, %v2623, 0.0
      %2645 = vadd.xlane.f32.xlu0 %v2644
      %v2646 = vpop.xlane.xlu0 %2645
      %v2647 = vsel %vm1016, %v2625, 0.0
      %2648 = vadd.xlane.f32.xlu0 %v2647
      %v2649 = vpop.xlane.xlu0 %2648
      %v2650 = vrcp.pop %v2628
      %v2651 = vrcp.pop %v2631
      %v2652 = vrcp.pop %v2634
      %v2653 = vrcp.pop %v2637
      %v2654 = vrcp.pop %v2640
      %v2655 = vrcp.pop %v2643
      %v2656 = vrcp.pop %v2646
      %v2657 = vrcp.pop %v2649
      %v2658 = vmul.f32 %v2611, %v2650
      %v2659 = vmul.f32 %v2613, %v2651
      %v2660 = vmul.f32 %v2615, %v2652
      %v2661 = vmul.f32 %v2617, %v2653
      %v2662 = vmul.f32 %v2619, %v2654
      %v2663 = vmul.f32 %v2621, %v2655
      %v2664 = vmul.f32 %v2623, %v2656
      %v2665 = vmul.f32 %v2625, %v2657
      %v2666 = vpack.c.bf16 %v2658, %v2658
      %v2667 = vpack.c.bf16 %v2659, %v2659
      %v2668 = vpack.c.bf16 %v2660, %v2660
      %v2669 = vpack.c.bf16 %v2661, %v2661
      %v2670 = vpack.c.bf16 %v2662, %v2662
      %v2671 = vpack.c.bf16 %v2663, %v2663
      %v2672 = vpack.c.bf16 %v2664, %v2664
      %v2673 = vpack.c.bf16 %v2665, %v2665
      %2674 = vst [vmem:[#allocation1] ss:$9 sm:$0xff] %v797
      %v2675 = vld [vmem:[#allocation1] sm:$0xff]
      %2677 = vrot.lane.b32.xlu0 %v2675, 40
      %v2678 = vpop.permute.xlu0 %2677
      %v2680 = vsel %vm1118, %v2666, 0
      %v2683 = vsel %vm761, %v2678, 0
      %2685 = vmatpush.bf16.msra.mxu0 0
      %2686 = vmatpush.bf16.msra.mxu0 0
      %2687 = vmatpush.bf16.msra.mxu0 0
      %2688 = vmatpush.bf16.msra.mxu0 0
      %2689 = vmatpush.bf16.msra.mxu0 0
      %2690 = vmatpush.bf16.msra.mxu0 0
      %2691 = vmatpush.bf16.msra.mxu0 0
      %2692 = vmatpush.bf16.msra.mxu0 %v2683
      %2693 = vmatmul.bf16.gmra.mxu0 %v2680
      %v2694 = vpop.f32.mrf.mxu0
      %v2695 = vadd.f32 0.0, %v2694
      %v2696 = vpop.f32.mrf.mxu0
      %2697 = vdwg.mxu0
      %2698 = vst [vmem:[#allocation1] ss:$9 sm:$0xff] %v800
      %v2699 = vld [vmem:[#allocation1] sm:$0xff]
      %2701 = vrot.lane.b32.xlu0 %v2699, 40
      %v2702 = vpop.permute.xlu0 %2701
      %v2704 = vsel %vm1118, %v2667, 0
      %v2707 = vsel %vm761, %v2702, 0
      %2709 = vmatpush.bf16.msra.mxu0 0
      %2710 = vmatpush.bf16.msra.mxu0 0
      %2711 = vmatpush.bf16.msra.mxu0 0
      %2712 = vmatpush.bf16.msra.mxu0 0
      %2713 = vmatpush.bf16.msra.mxu0 0
      %2714 = vmatpush.bf16.msra.mxu0 0
      %2715 = vmatpush.bf16.msra.mxu0 0
      %2716 = vmatpush.bf16.msra.mxu0 %v2707
      %2717 = vmatmul.bf16.gmra.mxu0 %v2704
      %v2718 = vpop.f32.mrf.mxu0
      %v2719 = vadd.f32 0.0, %v2718
      %v2720 = vpop.f32.mrf.mxu0
      %2721 = vdwg.mxu0
      %2722 = vst [vmem:[#allocation1] ss:$9 sm:$0xff] %v803
      %v2723 = vld [vmem:[#allocation1] sm:$0xff]
      %2725 = vrot.lane.b32.xlu0 %v2723, 40
      %v2726 = vpop.permute.xlu0 %2725
      %v2728 = vsel %vm1118, %v2668, 0
      %v2731 = vsel %vm761, %v2726, 0
      %2733 = vmatpush.bf16.msra.mxu0 0
      %2734 = vmatpush.bf16.msra.mxu0 0
      %2735 = vmatpush.bf16.msra.mxu0 0
      %2736 = vmatpush.bf16.msra.mxu0 0
      %2737 = vmatpush.bf16.msra.mxu0 0
      %2738 = vmatpush.bf16.msra.mxu0 0
      %2739 = vmatpush.bf16.msra.mxu0 0
      %2740 = vmatpush.bf16.msra.mxu0 %v2731
      %2741 = vmatmul.bf16.gmra.mxu0 %v2728
      %v2742 = vpop.f32.mrf.mxu0
      %v2743 = vadd.f32 0.0, %v2742
      %v2744 = vpop.f32.mrf.mxu0
      %2745 = vdwg.mxu0
      %2746 = vst [vmem:[#allocation1] ss:$9 sm:$0xff] %v806
      %v2747 = vld [vmem:[#allocation1] sm:$0xff]
      %2749 = vrot.lane.b32.xlu0 %v2747, 40
      %v2750 = vpop.permute.xlu0 %2749
      %v2752 = vsel %vm1118, %v2669, 0
      %v2755 = vsel %vm761, %v2750, 0
      %2757 = vmatpush.bf16.msra.mxu0 0
      %2758 = vmatpush.bf16.msra.mxu0 0
      %2759 = vmatpush.bf16.msra.mxu0 0
      %2760 = vmatpush.bf16.msra.mxu0 0
      %2761 = vmatpush.bf16.msra.mxu0 0
      %2762 = vmatpush.bf16.msra.mxu0 0
      %2763 = vmatpush.bf16.msra.mxu0 0
      %2764 = vmatpush.bf16.msra.mxu0 %v2755
      %2765 = vmatmul.bf16.gmra.mxu0 %v2752
      %v2766 = vpop.f32.mrf.mxu0
      %v2767 = vadd.f32 0.0, %v2766
      %v2768 = vpop.f32.mrf.mxu0
      %2769 = vdwg.mxu0
      %2770 = vst [vmem:[#allocation1] ss:$9 sm:$0xff] %v809
      %v2771 = vld [vmem:[#allocation1] sm:$0xff]
      %2773 = vrot.lane.b32.xlu0 %v2771, 40
      %v2774 = vpop.permute.xlu0 %2773
      %v2776 = vsel %vm1118, %v2670, 0
      %v2779 = vsel %vm761, %v2774, 0
      %2781 = vmatpush.bf16.msra.mxu0 0
      %2782 = vmatpush.bf16.msra.mxu0 0
      %2783 = vmatpush.bf16.msra.mxu0 0
      %2784 = vmatpush.bf16.msra.mxu0 0
      %2785 = vmatpush.bf16.msra.mxu0 0
      %2786 = vmatpush.bf16.msra.mxu0 0
      %2787 = vmatpush.bf16.msra.mxu0 0
      %2788 = vmatpush.bf16.msra.mxu0 %v2779
      %2789 = vmatmul.bf16.gmra.mxu0 %v2776
      %v2790 = vpop.f32.mrf.mxu0
      %v2791 = vadd.f32 0.0, %v2790
      %v2792 = vpop.f32.mrf.mxu0
      %2793 = vdwg.mxu0
      %2794 = vst [vmem:[#allocation1] ss:$9 sm:$0xff] %v812
      %v2795 = vld [vmem:[#allocation1] sm:$0xff]
      %2797 = vrot.lane.b32.xlu0 %v2795, 40
      %v2798 = vpop.permute.xlu0 %2797
      %v2800 = vsel %vm1118, %v2671, 0
      %v2803 = vsel %vm761, %v2798, 0
      %2805 = vmatpush.bf16.msra.mxu0 0
      %2806 = vmatpush.bf16.msra.mxu0 0
      %2807 = vmatpush.bf16.msra.mxu0 0
      %2808 = vmatpush.bf16.msra.mxu0 0
      %2809 = vmatpush.bf16.msra.mxu0 0
      %2810 = vmatpush.bf16.msra.mxu0 0
      %2811 = vmatpush.bf16.msra.mxu0 0
      %2812 = vmatpush.bf16.msra.mxu0 %v2803
      %2813 = vmatmul.bf16.gmra.mxu0 %v2800
      %v2814 = vpop.f32.mrf.mxu0
      %v2815 = vadd.f32 0.0, %v2814
      %v2816 = vpop.f32.mrf.mxu0
      %2817 = vdwg.mxu0
      %2818 = vst [vmem:[#allocation1] ss:$9 sm:$0xff] %v815
      %v2819 = vld [vmem:[#allocation1] sm:$0xff]
      %2821 = vrot.lane.b32.xlu0 %v2819, 40
      %v2822 = vpop.permute.xlu0 %2821
      %v2824 = vsel %vm1118, %v2672, 0
      %v2827 = vsel %vm761, %v2822, 0
      %2829 = vmatpush.bf16.msra.mxu0 0
      %2830 = vmatpush.bf16.msra.mxu0 0
      %2831 = vmatpush.bf16.msra.mxu0 0
      %2832 = vmatpush.bf16.msra.mxu0 0
      %2833 = vmatpush.bf16.msra.mxu0 0
      %2834 = vmatpush.bf16.msra.mxu0 0
      %2835 = vmatpush.bf16.msra.mxu0 0
      %2836 = vmatpush.bf16.msra.mxu0 %v2827
      %2837 = vmatmul.bf16.gmra.mxu0 %v2824
      %v2838 = vpop.f32.mrf.mxu0
      %v2839 = vadd.f32 0.0, %v2838
      %v2840 = vpop.f32.mrf.mxu0
      %2841 = vdwg.mxu0
      %2842 = vst [vmem:[#allocation1] ss:$9 sm:$0xff] %v818
      %v2843 = vld [vmem:[#allocation1] sm:$0xff]
      %2845 = vrot.lane.b32.xlu0 %v2843, 40
      %v2846 = vpop.permute.xlu0 %2845
      %v2848 = vsel %vm1118, %v2673, 0
      %v2851 = vsel %vm761, %v2846, 0
      %2853 = vmatpush.bf16.msra.mxu0 0
      %2854 = vmatpush.bf16.msra.mxu0 0
      %2855 = vmatpush.bf16.msra.mxu0 0
      %2856 = vmatpush.bf16.msra.mxu0 0
      %2857 = vmatpush.bf16.msra.mxu0 0
      %2858 = vmatpush.bf16.msra.mxu0 0
      %2859 = vmatpush.bf16.msra.mxu0 0
      %2860 = vmatpush.bf16.msra.mxu0 %v2851
      %2861 = vmatmul.bf16.gmra.mxu0 %v2848
      %v2862 = vpop.f32.mrf.mxu0
      %v2863 = vadd.f32 0.0, %v2862
      %v2864 = vpop.f32.mrf.mxu0
      %2865 = vdwg.mxu0
      %2874 = vst [vmem:[#allocation1] ss:$4 sm:$0xff] %v1135
      %s2875 = scalar_lea.vmem [#allocation1], 1
      %2876 = vst [vmem:[%s2875] ss:$4 sm:$0xff] %v1159
      %s2877 = scalar_lea.vmem [#allocation1], 2
      %2878 = vst [vmem:[%s2877] ss:$4 sm:$0xff] %v1183
      %s2879 = scalar_lea.vmem [#allocation1], 3
      %2880 = vst [vmem:[%s2879] ss:$4 sm:$0xff] %v1207
      %s2881 = scalar_lea.vmem [#allocation1], 32
      %2882 = vst [vmem:[%s2881] ss:$4 sm:$0xff] %v1231
      %s2883 = scalar_lea.vmem [#allocation1], 33
      %2884 = vst [vmem:[%s2883] ss:$4 sm:$0xff] %v1255
      %s2885 = scalar_lea.vmem [#allocation1], 34
      %2886 = vst [vmem:[%s2885] ss:$4 sm:$0xff] %v1279
      %s2887 = scalar_lea.vmem [#allocation1], 35
      %2888 = vst [vmem:[%s2887] ss:$4 sm:$0xff] %v1303
      %v2889 = vld.sshfl [vmem:[#allocation1] sm:$0xff pattern:$0x73625140]
      %v2890 = vld.sshfl [vmem:[#allocation1 + $0x20] sm:$0xff pattern:$0x73625140]
      %2901 = vst [vmem:[#allocation1] ss:$4 sm:$0xff] %v1655
      %s2902 = scalar_lea.vmem [#allocation1], 1
      %2903 = vst [vmem:[%s2902] ss:$4 sm:$0xff] %v1679
      %s2904 = scalar_lea.vmem [#allocation1], 2
      %2905 = vst [vmem:[%s2904] ss:$4 sm:$0xff] %v1703
      %s2906 = scalar_lea.vmem [#allocation1], 3
      %2907 = vst [vmem:[%s2906] ss:$4 sm:$0xff] %v1727
      %s2908 = scalar_lea.vmem [#allocation1], 32
      %2909 = vst [vmem:[%s2908] ss:$4 sm:$0xff] %v1751
      %s2910 = scalar_lea.vmem [#allocation1], 33
      %2911 = vst [vmem:[%s2910] ss:$4 sm:$0xff] %v1775
      %s2912 = scalar_lea.vmem [#allocation1], 34
      %2913 = vst [vmem:[%s2912] ss:$4 sm:$0xff] %v1799
      %s2914 = scalar_lea.vmem [#allocation1], 35
      %2915 = vst [vmem:[%s2914] ss:$4 sm:$0xff] %v1823
      %v2916 = vld.sshfl [vmem:[#allocation1] sm:$0xff pattern:$0x73625140]
      %v2917 = vld.sshfl [vmem:[#allocation1 + $0x20] sm:$0xff pattern:$0x73625140]
      %2918 = vrot.lane.b32.xlu0 %v2916, 8
      %v2919 = vpop.permute.xlu0 %2918
      %2920 = vrot.lane.b32.xlu0 %v2917, 8
      %v2921 = vpop.permute.xlu0 %2920
      %2932 = vst [vmem:[#allocation1] ss:$4 sm:$0xff] %v2175
      %s2933 = scalar_lea.vmem [#allocation1], 1
      %2934 = vst [vmem:[%s2933] ss:$4 sm:$0xff] %v2199
      %s2935 = scalar_lea.vmem [#allocation1], 2
      %2936 = vst [vmem:[%s2935] ss:$4 sm:$0xff] %v2223
      %s2937 = scalar_lea.vmem [#allocation1], 3
      %2938 = vst [vmem:[%s2937] ss:$4 sm:$0xff] %v2247
      %s2939 = scalar_lea.vmem [#allocation1], 32
      %2940 = vst [vmem:[%s2939] ss:$4 sm:$0xff] %v2271
      %s2941 = scalar_lea.vmem [#allocation1], 33
      %2942 = vst [vmem:[%s2941] ss:$4 sm:$0xff] %v2295
      %s2943 = scalar_lea.vmem [#allocation1], 34
      %2944 = vst [vmem:[%s2943] ss:$4 sm:$0xff] %v2319
      %s2945 = scalar_lea.vmem [#allocation1], 35
      %2946 = vst [vmem:[%s2945] ss:$4 sm:$0xff] %v2343
      %v2947 = vld.sshfl [vmem:[#allocation1] sm:$0xff pattern:$0x73625140]
      %v2948 = vld.sshfl [vmem:[#allocation1 + $0x20] sm:$0xff pattern:$0x73625140]
      %2949 = vrot.lane.b32.xlu0 %v2947, 16
      %v2950 = vpop.permute.xlu0 %2949
      %2951 = vrot.lane.b32.xlu0 %v2948, 16
      %v2952 = vpop.permute.xlu0 %2951
      %2963 = vst [vmem:[#allocation1] ss:$4 sm:$0xff] %v2695
      %s2964 = scalar_lea.vmem [#allocation1], 1
      %2965 = vst [vmem:[%s2964] ss:$4 sm:$0xff] %v2719
      %s2966 = scalar_lea.vmem [#allocation1], 2
      %2967 = vst [vmem:[%s2966] ss:$4 sm:$0xff] %v2743
      %s2968 = scalar_lea.vmem [#allocation1], 3
      %2969 = vst [vmem:[%s2968] ss:$4 sm:$0xff] %v2767
      %s2970 = scalar_lea.vmem [#allocation1], 32
      %2971 = vst [vmem:[%s2970] ss:$4 sm:$0xff] %v2791
      %s2972 = scalar_lea.vmem [#allocation1], 33
      %2973 = vst [vmem:[%s2972] ss:$4 sm:$0xff] %v2815
      %s2974 = scalar_lea.vmem [#allocation1], 34
      %2975 = vst [vmem:[%s2974] ss:$4 sm:$0xff] %v2839
      %s2976 = scalar_lea.vmem [#allocation1], 35
      %2977 = vst [vmem:[%s2976] ss:$4 sm:$0xff] %v2863
      %v2978 = vld.sshfl [vmem:[#allocation1] sm:$0xff pattern:$0x73625140]
      %v2979 = vld.sshfl [vmem:[#allocation1 + $0x20] sm:$0xff pattern:$0x73625140]
      %2980 = vrot.lane.b32.xlu0 %v2978, 24
      %v2981 = vpop.permute.xlu0 %2980
      %2982 = vrot.lane.b32.xlu0 %v2979, 24
      %v2983 = vpop.permute.xlu0 %2982
      %v2986 = vsel %vm824, %v2889, %v2919
      %v2987 = vsel %vm824, %v2890, %v2921
      %vm2988 = vcmask 130048
      %v2989 = vsel %vm2988, %v2986, %v2950
      %v2990 = vsel %vm2988, %v2987, %v2952
      %vm2991 = vcmask 195584
      %v2992 = vsel %vm2991, %v2989, %v2981
      %v2993 = vsel %vm2991, %v2990, %v2983
      %v2994 = vpack.c.bf16 %v2993, %v2992
      %v2995 = vld [vmem:[%s664] sm:$0xf]
      %v2996 = vld [vmem:[%s664 + $0x4] sm:$0xf]
      %v2997 = vld [vmem:[%s664 + $0x8] sm:$0xf]
      %v2998 = vld [vmem:[%s664 + $0xc] sm:$0xf]
      %v2999 = vld [vmem:[%s667] sm:$0x1]
      %v3001 = vperm.slane %v2999, 0
      %v3007 = vunpack.c.l.b16 %v2995
      %v3008 = vunpack.c.l.b16 %v2996
      %v3009 = vunpack.c.l.b16 %v2997
      %v3010 = vunpack.c.l.b16 %v2998
      %v3011 = vpack.c.b16 %v3008, %v3007
      %v3012 = vpack.c.b16 %v3010, %v3009
      %v3016 = vsel %vm735, %v2994, 0
      %3018 = vmatpush.bf16.msra.mxu0 0
      %3019 = vmatpush.bf16.msra.mxu0 0
      %3020 = vmatpush.bf16.msra.mxu0 0
      %3021 = vmatpush.bf16.msra.mxu0 0
      %3022 = vmatpush.bf16.msra.mxu0 0
      %3023 = vmatpush.bf16.msra.mxu0 0
      %3024 = vmatpush.bf16.msra.mxu0 %v3012
      %3025 = vmatpush.bf16.msra.mxu0 %v3011
      %3026 = vmatmul.bf16.gmra.mxu0 %v3016
      %v3027 = vpop.f32.mrf.mxu0
      %v3028 = vadd.f32 %v3001, %v3027
      %v3029 = vpop.f32.mrf.mxu0
      %v3030 = vadd.f32 %v3001, %v3029
      %3031 = vdwg.mxu0
      %v3032 = vadd.f32 %v712, %v3028
      %v3033 = vadd.f32 %v713, %v3030
      %v3034 = vld [vmem:[%s686] sm:$0x1]
      %v3035 = vld [vmem:[%s689] sm:$0x1]
      %v3036 = vsel %vm735, %v3032, 0.0
      %3037 = vadd.xlane.f32.xlu0 %v3036
      %v3038 = vpop.xlane.xlu0 %3037
      %v3039 = vsel %vm735, %v3033, 0.0
      %3040 = vadd.xlane.f32.xlu0 %v3039
      %v3041 = vpop.xlane.xlu0 %3040
      %v3042 = vrcp.pop 32.0
      %v3043 = vmul.f32 32.0, %v3042
      %v3044 = vsub.f32 1.0, %v3043
      %v3045 = vmul.f32 %v3042, %v3044
      %v3046 = vadd.f32 %v3042, %v3045
      %vm3047 = vweird.f32 %v3042
      %v3048 = vsel %vm3047, %v3042, %v3046
      %v3049 = vmul.f32 %v3038, %v3048
      %v3050 = vmul.f32 %v3041, %v3048
      %v3051 = vsub.f32 %v3032, %v3049
      %v3052 = vsub.f32 %v3033, %v3050
      %v3053 = vmul.f32 %v3051, %v3051
      %v3054 = vmul.f32 %v3052, %v3052
      %v3055 = vsel %vm735, %v3053, 0.0
      %3056 = vadd.xlane.f32.xlu0 %v3055
      %v3057 = vpop.xlane.xlu0 %3056
      %v3058 = vsel %vm735, %v3054, 0.0
      %3059 = vadd.xlane.f32.xlu0 %v3058
      %v3060 = vpop.xlane.xlu0 %3059
      %v3061 = vmul.f32 %v3057, %v3048
      %v3062 = vmul.f32 %v3060, %v3048
      %v3063 = vadd.f32 %v3061, 1e-05
      %v3064 = vadd.f32 %v3062, 1e-05
      %v3065 = vrsqrt.pop %v3063
      %v3066 = vmul.f32 %v3065, %v3063
      %v3067 = vmul.f32 %v3066, %v3065
      %v3068 = vmul.f32 0.5, %v3067
      %v3069 = vsub.f32 1.5, %v3068
      %v3070 = vmul.f32 %v3065, %v3069
      %vm3071 = vweird.f32 %v3063
      %vm3072 = vweird.f32 %v3065
      %vm3073 = vmor %vm3071, %vm3072
      %v3074 = vsel %vm3073, %v3065, %v3070
      %v3075 = vrsqrt.pop %v3064
      %v3076 = vmul.f32 %v3075, %v3064
      %v3077 = vmul.f32 %v3076, %v3075
      %v3078 = vmul.f32 0.5, %v3077
      %v3079 = vsub.f32 1.5, %v3078
      %v3080 = vmul.f32 %v3075, %v3079
      %vm3081 = vweird.f32 %v3064
      %vm3082 = vweird.f32 %v3075
      %vm3083 = vmor %vm3081, %vm3082
      %v3084 = vsel %vm3083, %v3075, %v3080
      %v3085 = vmul.f32 %v3051, %v3074
      %v3086 = vmul.f32 %v3052, %v3084
      %v3088 = vperm.slane %v3034, 0
      %v3090 = vmul.f32 %v3085, %v3088
      %v3091 = vmul.f32 %v3086, %v3088
      %v3093 = vperm.slane %v3035, 0
      %v3095 = vadd.f32 %v3090, %v3093
      %v3096 = vadd.f32 %v3091, %v3093
      %v3097 = vpack.c.bf16 %v3096, %v3095
      %v3098 = vld [vmem:[%s672] sm:$0xf]
      %v3099 = vld [vmem:[%s672 + $0x4] sm:$0xf]
      %v3100 = vld [vmem:[%s672 + $0x8] sm:$0xf]
      %v3101 = vld [vmem:[%s672 + $0xc] sm:$0xf]
      %v3102 = vld [vmem:[%s675] sm:$0x1]
      %v3104 = vperm.slane %v3102, 0
      %v3110 = vunpack.c.l.b16 %v3098
      %v3111 = vunpack.c.l.b16 %v3099
      %v3112 = vunpack.c.l.b16 %v3100
      %v3113 = vunpack.c.l.b16 %v3101
      %v3114 = vpack.c.b16 %v3111, %v3110
      %v3115 = vpack.c.b16 %v3113, %v3112
      %v3119 = vsel %vm735, %v3097, 0
      %3121 = vmatpush.bf16.msra.mxu0 0
      %3122 = vmatpush.bf16.msra.mxu0 0
      %3123 = vmatpush.bf16.msra.mxu0 0
      %3124 = vmatpush.bf16.msra.mxu0 0
      %3125 = vmatpush.bf16.msra.mxu0 0
      %3126 = vmatpush.bf16.msra.mxu0 0
      %3127 = vmatpush.bf16.msra.mxu0 %v3115
      %3128 = vmatpush.bf16.msra.mxu0 %v3114
      %3129 = vmatmul.bf16.gmra.mxu0 %v3119
      %v3130 = vpop.f32.mrf.mxu0
      %v3131 = vadd.f32 %v3104, %v3130
      %v3132 = vpop.f32.mrf.mxu0
      %v3133 = vadd.f32 %v3104, %v3132
      %3134 = vdwg.mxu0
      %v3135 = vmul.f32 %v3131, 0.5
      %v3136 = vmul.f32 %v3133, 0.5
      %v3137 = vmul.f32 %v3131, 0.70710677
      %v3138 = vmul.f32 %v3133, 0.70710677
      %v3139 = vmul.f32 %v3137, %v3137
      %v3140 = vmin.f32 16.0, %v3139
      %v3141 = vmul.f32 %v3140, 2.1237322e-06
      %v3142 = vadd.f32 %v3141, 0.00028619796
      %v3143 = vmul.f32 %v3140, %v3142
      %v3144 = vadd.f32 %v3143, 0.0036580483
      %v3145 = vmul.f32 %v3140, %v3144
      %v3146 = vadd.f32 %v3145, 0.05243302
      %v3147 = vmul.f32 %v3140, %v3146
      %v3148 = vadd.f32 %v3147, 0.18741608
      %v3149 = vmul.f32 %v3140, %v3148
      %v3150 = vadd.f32 %v3149, 1.1283791
      %v3151 = vmul.f32 %v3137, %v3150
      %v3152 = vmul.f32 %v3140, 3.8918573e-05
      %v3153 = vadd.f32 %v3152, 0.001143296
      %v3154 = vmul.f32 %v3140, %v3153
      %v3155 = vadd.f32 %v3154, 0.014752088
      %v3156 = vmul.f32 %v3140, %v3155
      %v3157 = vadd.f32 %v3156, 0.112945676
      %v3158 = vmul.f32 %v3140, %v3157
      %v3159 = vadd.f32 %v3158, 0.4994258
      %v3160 = vmul.f32 %v3140, %v3159
      %v3161 = vadd.f32 %v3160, 1.0
      %v3162 = vrcp.pop %v3161
      %v3163 = vmul.f32 %v3161, %v3162
      %v3164 = vsub.f32 1.0, %v3163
      %v3165 = vmul.f32 %v3162, %v3164
      %v3166 = vadd.f32 %v3162, %v3165
      %vm3167 = vweird.f32 %v3161
      %vm3168 = vweird.f32 %v3162
      %vm3169 = vmor %vm3167, %vm3168
      %v3170 = vsel %vm3169, %v3162, %v3166
      %v3171 = vand.u32 2147483647, %v3161
      %vm3172 = vcmp.eq.f32.partialorder %v3171, 8.507059e+37
      %v3173 = vand.u32 %v3161, 2147483648
      %v3174 = vor.u32 1.1754944e-38, %v3173
      %v3175 = vsel %vm3172, %v3174, %v3170
      %v3176 = vmul.f32 %v3151, %v3175
      %v3177 = vmin.f32 %v3176, 1.0
      %v3178 = vmax.f32 %v3177, -1.0
      %v3179 = vmul.f32 %v3138, %v3138
      %v3180 = vmin.f32 16.0, %v3179
      %v3181 = vmul.f32 %v3180, 2.1237322e-06
      %v3182 = vadd.f32 %v3181, 0.00028619796
      %v3183 = vmul.f32 %v3180, %v3182
      %v3184 = vadd.f32 %v3183, 0.0036580483
      %v3185 = vmul.f32 %v3180, %v3184
      %v3186 = vadd.f32 %v3185, 0.05243302
      %v3187 = vmul.f32 %v3180, %v3186
      %v3188 = vadd.f32 %v3187, 0.18741608
      %v3189 = vmul.f32 %v3180, %v3188
      %v3190 = vadd.f32 %v3189, 1.1283791
      %v3191 = vmul.f32 %v3138, %v3190
      %v3192 = vmul.f32 %v3180, 3.8918573e-05
      %v3193 = vadd.f32 %v3192, 0.001143296
      %v3194 = vmul.f32 %v3180, %v3193
      %v3195 = vadd.f32 %v3194, 0.014752088
      %v3196 = vmul.f32 %v3180, %v3195
      %v3197 = vadd.f32 %v3196, 0.112945676
      %v3198 = vmul.f32 %v3180, %v3197
      %v3199 = vadd.f32 %v3198, 0.4994258
      %v3200 = vmul.f32 %v3180, %v3199
      %v3201 = vadd.f32 %v3200, 1.0
      %v3202 = vrcp.pop %v3201
      %v3203 = vmul.f32 %v3201, %v3202
      %v3204 = vsub.f32 1.0, %v3203
      %v3205 = vmul.f32 %v3202, %v3204
      %v3206 = vadd.f32 %v3202, %v3205
      %vm3207 = vweird.f32 %v3201
      %vm3208 = vweird.f32 %v3202
      %vm3209 = vmor %vm3207, %vm3208
      %v3210 = vsel %vm3209, %v3202, %v3206
      %v3211 = vand.u32 2147483647, %v3201
      %vm3212 = vcmp.eq.f32.partialorder %v3211, 8.507059e+37
      %v3213 = vand.u32 %v3201, 2147483648
      %v3214 = vor.u32 1.1754944e-38, %v3213
      %v3215 = vsel %vm3212, %v3214, %v3210
      %v3216 = vmul.f32 %v3191, %v3215
      %v3217 = vmin.f32 %v3216, 1.0
      %v3218 = vmax.f32 %v3217, -1.0
      %v3219 = vadd.f32 %v3178, 1.0
      %v3220 = vadd.f32 %v3218, 1.0
      %v3221 = vmul.f32 %v3135, %v3219
      %v3222 = vmul.f32 %v3136, %v3220
      %v3223 = vpack.c.bf16 %v3222, %v3221
      %v3224 = vld [vmem:[%s680] sm:$0xf]
      %v3225 = vld [vmem:[%s680 + $0x4] sm:$0xf]
      %v3226 = vld [vmem:[%s680 + $0x8] sm:$0xf]
      %v3227 = vld [vmem:[%s680 + $0xc] sm:$0xf]
      %v3228 = vld [vmem:[%s680 + $0x10] sm:$0xf]
      %v3229 = vld [vmem:[%s680 + $0x14] sm:$0xf]
      %v3230 = vld [vmem:[%s680 + $0x18] sm:$0xf]
      %v3231 = vld [vmem:[%s680 + $0x1c] sm:$0xf]
      %v3232 = vld [vmem:[%s680 + $0x20] sm:$0xf]
      %v3233 = vld [vmem:[%s680 + $0x24] sm:$0xf]
      %v3234 = vld [vmem:[%s680 + $0x28] sm:$0xf]
      %v3235 = vld [vmem:[%s680 + $0x2c] sm:$0xf]
      %v3236 = vld [vmem:[%s680 + $0x30] sm:$0xf]
      %v3237 = vld [vmem:[%s680 + $0x34] sm:$0xf]
      %v3238 = vld [vmem:[%s680 + $0x38] sm:$0xf]
      %v3239 = vld [vmem:[%s680 + $0x3c] sm:$0xf]
      %v3240 = vld [vmem:[%s683] sm:$0x1]
      %v3242 = vperm.slane %v3240, 0
      %v3260 = vunpack.c.l.b16 %v3224
      %v3261 = vunpack.c.l.b16 %v3225
      %v3262 = vunpack.c.l.b16 %v3226
      %v3263 = vunpack.c.l.b16 %v3227
      %v3264 = vunpack.c.l.b16 %v3228
      %v3265 = vunpack.c.l.b16 %v3229
      %v3266 = vunpack.c.l.b16 %v3230
      %v3267 = vunpack.c.l.b16 %v3231
      %v3268 = vunpack.c.l.b16 %v3232
      %v3269 = vunpack.c.l.b16 %v3233
      %v3270 = vunpack.c.l.b16 %v3234
      %v3271 = vunpack.c.l.b16 %v3235
      %v3272 = vunpack.c.l.b16 %v3236
      %v3273 = vunpack.c.l.b16 %v3237
      %v3274 = vunpack.c.l.b16 %v3238
      %v3275 = vunpack.c.l.b16 %v3239
      %v3276 = vpack.c.b16 %v3261, %v3260
      %v3277 = vpack.c.b16 %v3263, %v3262
      %v3278 = vpack.c.b16 %v3265, %v3264
      %v3279 = vpack.c.b16 %v3267, %v3266
      %v3280 = vpack.c.b16 %v3269, %v3268
      %v3281 = vpack.c.b16 %v3271, %v3270
      %v3282 = vpack.c.b16 %v3273, %v3272
      %v3283 = vpack.c.b16 %v3275, %v3274
      %3292 = vmatpush.bf16.msra.mxu0 %v3283
      %3293 = vmatpush.bf16.msra.mxu0 %v3282
      %3294 = vmatpush.bf16.msra.mxu0 %v3281
      %3295 = vmatpush.bf16.msra.mxu0 %v3280
      %3296 = vmatpush.bf16.msra.mxu0 %v3279
      %3297 = vmatpush.bf16.msra.mxu0 %v3278
      %3298 = vmatpush.bf16.msra.mxu0 %v3277
      %3299 = vmatpush.bf16.msra.mxu0 %v3276
      %3300 = vmatmul.bf16.gmra.mxu0 %v3223
      %v3301 = vpop.f32.mrf.mxu0
      %v3302 = vadd.f32 %v3242, %v3301
      %v3303 = vpop.f32.mrf.mxu0
      %v3304 = vadd.f32 %v3242, %v3303
      %3305 = vdwg.mxu0
      %v3306 = vadd.f32 %v3095, %v3302
      %v3307 = vadd.f32 %v3096, %v3304
      %v3308 = vld [vmem:[%s692] sm:$0x1]
      %v3309 = vld [vmem:[%s695] sm:$0x1]
      %v3310 = vsel %vm735, %v3306, 0.0
      %3311 = vadd.xlane.f32.xlu0 %v3310
      %v3312 = vpop.xlane.xlu0 %3311
      %v3313 = vsel %vm735, %v3307, 0.0
      %3314 = vadd.xlane.f32.xlu0 %v3313
      %v3315 = vpop.xlane.xlu0 %3314
      %v3316 = vmul.f32 %v3312, %v3048
      %v3317 = vmul.f32 %v3315, %v3048
      %v3318 = vsub.f32 %v3306, %v3316
      %v3319 = vsub.f32 %v3307, %v3317
      %v3320 = vmul.f32 %v3318, %v3318
      %v3321 = vmul.f32 %v3319, %v3319
      %v3322 = vsel %vm735, %v3320, 0.0
      %3323 = vadd.xlane.f32.xlu0 %v3322
      %v3324 = vpop.xlane.xlu0 %3323
      %v3325 = vsel %vm735, %v3321, 0.0
      %3326 = vadd.xlane.f32.xlu0 %v3325
      %v3327 = vpop.xlane.xlu0 %3326
      %v3328 = vmul.f32 %v3324, %v3048
      %v3329 = vmul.f32 %v3327, %v3048
      %v3330 = vadd.f32 %v3328, 1e-05
      %v3331 = vadd.f32 %v3329, 1e-05
      %v3332 = vrsqrt.pop %v3330
      %v3333 = vmul.f32 %v3332, %v3330
      %v3334 = vmul.f32 %v3333, %v3332
      %v3335 = vmul.f32 0.5, %v3334
      %v3336 = vsub.f32 1.5, %v3335
      %v3337 = vmul.f32 %v3332, %v3336
      %vm3338 = vweird.f32 %v3330
      %vm3339 = vweird.f32 %v3332
      %vm3340 = vmor %vm3338, %vm3339
      %v3341 = vsel %vm3340, %v3332, %v3337
      %v3342 = vrsqrt.pop %v3331
      %v3343 = vmul.f32 %v3342, %v3331
      %v3344 = vmul.f32 %v3343, %v3342
      %v3345 = vmul.f32 0.5, %v3344
      %v3346 = vsub.f32 1.5, %v3345
      %v3347 = vmul.f32 %v3342, %v3346
      %vm3348 = vweird.f32 %v3331
      %vm3349 = vweird.f32 %v3342
      %vm3350 = vmor %vm3348, %vm3349
      %v3351 = vsel %vm3350, %v3342, %v3347
      %v3352 = vmul.f32 %v3318, %v3341
      %v3353 = vmul.f32 %v3319, %v3351
      %v3355 = vperm.slane %v3308, 0
      %v3357 = vmul.f32 %v3352, %v3355
      %v3358 = vmul.f32 %v3353, %v3355
      %v3360 = vperm.slane %v3309, 0
      %v3362 = vadd.f32 %v3357, %v3360
      %v3363 = vadd.f32 %v3358, %v3360
      %p3364 = scmp.lt.s32.totalorder %s31, 1
      // Predicated region
      $region85: #{vit_forward.3} parent=79 // pred_check
        %p3365 = pneg %p3364
      $region86: #{vit_forward.3} parent=79 // pred_check_branch
        %3367 = sbr.rel (%p3365) target = $region88
      $region87: #{vit_forward.3} parent=79 // pred_region
        %3368 = vst.msk [vmem:[%s700] sm:$0xff] %vm735, %v3362
        %3369 = vst.msk [vmem:[%s700 + $0x8] sm:$0xff] %vm735, %v3363
      $region88: #{vit_forward.3} parent=79 // pred_fallthru
        _
      %p3370 = scmp.eq.s32.totalorder %s31, 1
      // Predicated region
      $region89: #{vit_forward.3} parent=79 // pred_check
        %p3371 = pneg %p3370
      $region90: #{vit_forward.3} parent=79 // pred_check_branch
        %3373 = sbr.rel (%p3371) target = $region92
      $region91: #{vit_forward.3} parent=79 // pred_region
        %v3374 = vld [vmem:[%s13] sm:$0x1]
        %v3375 = vld [vmem:[%s14] sm:$0x1]
        %v3376 = vsel %vm735, %v3362, 0.0
        %3377 = vadd.xlane.f32.xlu0 %v3376
        %v3378 = vpop.xlane.xlu0 %3377
        %v3379 = vsel %vm735, %v3363, 0.0
        %3380 = vadd.xlane.f32.xlu0 %v3379
        %v3381 = vpop.xlane.xlu0 %3380
        %v3382 = vmul.f32 %v3378, %v3048
        %v3383 = vmul.f32 %v3381, %v3048
        %v3384 = vsub.f32 %v3362, %v3382
        %v3385 = vsub.f32 %v3363, %v3383
        %v3386 = vmul.f32 %v3384, %v3384
        %v3387 = vmul.f32 %v3385, %v3385
        %v3388 = vsel %vm735, %v3386, 0.0
        %3389 = vadd.xlane.f32.xlu0 %v3388
        %v3390 = vpop.xlane.xlu0 %3389
        %v3391 = vsel %vm735, %v3387, 0.0
        %3392 = vadd.xlane.f32.xlu0 %v3391
        %v3393 = vpop.xlane.xlu0 %3392
        %v3394 = vmul.f32 %v3390, %v3048
        %v3395 = vmul.f32 %v3393, %v3048
        %v3396 = vadd.f32 %v3394, 1e-05
        %v3397 = vadd.f32 %v3395, 1e-05
        %v3398 = vrsqrt.pop %v3396
        %v3399 = vmul.f32 %v3398, %v3396
        %v3400 = vmul.f32 %v3399, %v3398
        %v3401 = vmul.f32 0.5, %v3400
        %v3402 = vsub.f32 1.5, %v3401
        %v3403 = vmul.f32 %v3398, %v3402
        %vm3404 = vweird.f32 %v3396
        %vm3405 = vweird.f32 %v3398
        %vm3406 = vmor %vm3404, %vm3405
        %v3407 = vsel %vm3406, %v3398, %v3403
        %v3408 = vrsqrt.pop %v3397
        %v3409 = vmul.f32 %v3408, %v3397
        %v3410 = vmul.f32 %v3409, %v3408
        %v3411 = vmul.f32 0.5, %v3410
        %v3412 = vsub.f32 1.5, %v3411
        %v3413 = vmul.f32 %v3408, %v3412
        %vm3414 = vweird.f32 %v3397
        %vm3415 = vweird.f32 %v3408
        %vm3416 = vmor %vm3414, %vm3415
        %v3417 = vsel %vm3416, %v3408, %v3413
        %v3418 = vmul.f32 %v3384, %v3407
        %v3419 = vmul.f32 %v3385, %v3417
        %v3421 = vperm.slane %v3374, 0
        %v3423 = vmul.f32 %v3418, %v3421
        %v3424 = vmul.f32 %v3419, %v3421
        %v3426 = vperm.slane %v3375, 0
        %v3428 = vadd.f32 %v3423, %v3426
        %v3429 = vadd.f32 %v3424, %v3426
        %3430 = vst.msk [vmem:[%s700] sm:$0xff] %vm735, %v3428
        %3431 = vst.msk [vmem:[%s700 + $0x8] sm:$0xff] %vm735, %v3429
      $region92: #{vit_forward.3} parent=79 // pred_fallthru
        _
      %s3432 = smul.u32 2, %s30
      %p3433 = scmp.lt.s32.totalorder %s3432, 5
      %s3434 = scalar_select %p3433, %s3432, 5
      %s3435 = smul.addr %s3434, 8
      %s3436 = scalar_lea.vmem %s15, %s3435
      // Predicated region
      $region93: #{vit_forward.3} parent=79 // pred_check
        %p3437 = pneg %p436
      $region94: #{vit_forward.3} parent=79 // pred_check_branch
        %3439 = sbr.rel (%p3437) target = $region96
      $region95: #{vit_forward.3} parent=79 // pred_region
        %s3440 = smul.u32 2, %s30
      $region96: #{vit_forward.3} parent=79 // pred_fallthru
        _
    $region80: #{vit_forward.3} parent=5 // pred_fallthru
      _
    %p3441 = scmp.le.s32.totalorder 2, %s21
    // Predicated region
    $region97: #{vit_forward.3} parent=5 // pred_check
      %p3442 = pneg %p3441
    $region98: #{vit_forward.3} parent=5 // pred_check_branch
      %3444 = sbr.rel (%p3442) target = $region100
    $region99: #{vit_forward.3} parent=5 // pred_region
      %s3445 = ssub.s32 %s21, 2
      // Predicated region
      $region101: #{vit_forward.3} parent=99 // pred_check
        %p3446 = pneg %p442
      $region102: #{vit_forward.3} parent=99 // pred_check_branch
        %3448 = sbr.rel (%p3446) target = $region104
      $region103: #{vit_forward.3} parent=99 // pred_region
        %s3449 = smul.u32 2, %s32
        %p3450 = scmp.lt.s32.totalorder %s3449, 5
        %s3451 = scalar_select %p3450, %s3449, 5
        %s3452 = smul.addr %s3451, 8
        %s3453 = scalar_lea.vmem %s15, %s3452
      $region104: #{vit_forward.3} parent=99 // pred_fallthru
        _
    $region100: #{vit_forward.3} parent=5 // pred_fallthru
      _
  $region6: #{vit_forward.3} parent=0 // loop_footer
    %s25 = sadd.s32 1, %s21
  $region7: #{vit_forward.3} parent=0 // loop_footer_branch
    %20 = sbr.rel target = $region3
  $region8: #{vit_forward.3} parent=0 // loop_exit
    _

</llo_original>
